<compile_context>
chip_gen: v5e
topology: v5e:2x2
jax: 0.10.0
libtpu: 0.0.40
codegen_flags: <defaults>
</compile_context>

<pallas_src>
import functools

import jax
import jax.numpy as jnp
from jax import lax
from jax.experimental import pallas as pl
from jax.experimental.pallas import tpu as pltpu


def _round_up(x, m):
    return (x + m - 1) // m * m


def _cdiv(a, b):
    return -(-a // b)


def _vmem_capacity_bytes():
    """Physical VMEM of the attached TPU; conservative 64 MiB (v7x per-core) fallback."""
    try:
        return int(pltpu.get_tpu_info().vmem_capacity_bytes)
    except Exception:
        return 64 * 1024 * 1024


def _num_parallel_cores():
    """TensorCores reachable through the 'parallel' grid axis on one device."""
    try:
        kind = jax.devices()[0].device_kind.lower()
    except Exception:
        return 1
    if any(t in kind for t in ("v7", "7x", "v5p", "v4")):
        return 2
    return 1


def _gru_kernel(x_ref, wi_ref, wh_ref, bi_ref, bhn_ref,
                out_ref,
                xp_ref, h_ref,
                *, seq_chunk, tail, unroll):
    """One (batch_tile, seq_chunk) grid step of the fused single-layer GRU.

    Phase 1: hoisted input projection  (chunk*Bt, E) @ (E, 3Hp)  -> xp VMEM scratch.
    Phase 2: serial recurrence over the chunk; ONE fused (Bt,Hp) @ (Hp,3Hp) matmul per step.
    h persists in VMEM scratch across the sequence grid axis (accumulator pattern).
    Only the last chunk can contain padded timesteps; it runs a shorter static-`tail`
    loop, so there is no per-step mask/select on the serial critical path.
    """
    s = pl.program_id(1)
    num_s = pl.num_programs(1)

    Bt = x_ref.shape[1]
    E = x_ref.shape[2]
    Hp = out_ref.shape[1]
    H3 = wh_ref.shape[1]

    @pl.when(s == 0)
    def _init():
        h_ref[...] = jnp.zeros_like(h_ref)

    # ---- Phase 1: input projection for the whole chunk (no serial dependency). ----
    wi = wi_ref[...]
    bi = bi_ref[...]                                     # [b_ir+b_hr | b_iz+b_hz | b_in], f32
    x2d = x_ref[...].reshape(seq_chunk * Bt, E).astype(wi.dtype)
    xp = jnp.dot(x2d, wi, preferred_element_type=jnp.float32) + bi       # (chunk*Bt, 3Hp) f32
    xp_ref[...] = xp.reshape(seq_chunk, Bt, H3)
    # TODO(synk): software-pipeline Phase 1 of chunk s+1 against Phase 2 of chunk s
    # (double-buffered xp + manual x DMA) to hide the projection under the latency-bound
    # recurrence.

    # ---- Phase 2: serial recurrence; weights / biases / broadcasts hoisted out of the loop. --
    wh = wh_ref[...]
    bhn_b = jnp.broadcast_to(bhn_ref[...], (Bt, Hp))     # hoisted: JAX does not CSE broadcasts

    def step(t, h):
        xp_t = xp_ref[t]                                                 # (Bt, 3Hp) f32
        hp = jnp.dot(h.astype(wh.dtype), wh,
                     preferred_element_type=jnp.float32)                 # (Bt, 3Hp) f32
        # Fused sigmoid over (Bt, 2Hp): single EUP activation for r and z.
        rz = jax.nn.sigmoid(xp_t[:, :2 * Hp] + hp[:, :2 * Hp])
        r = rz[:, :Hp]
        z = rz[:, Hp:]
        n = jnp.tanh(xp_t[:, 2 * Hp:] + r * (hp[:, 2 * Hp:] + bhn_b))
        return (1.0 - z) * n + z * h

    def run_chunk(n_steps):
        h_ref[...] = lax.fori_loop(0, n_steps, step, h_ref[...],
                                   unroll=max(1, min(unroll, n_steps)))

    if tail == seq_chunk:
        run_chunk(seq_chunk)                  # every chunk full: no masking anywhere
    else:
        @pl.when(s < num_s - 1)
        def _full_chunks():
            run_chunk(seq_chunk)

        @pl.when(s == num_s - 1)
        def _last_chunk():
            run_chunk(tail)                   # static short loop; padded steps never touched

    @pl.when(s == num_s - 1)
    def _finalize():
        out_ref[...] = h_ref[...].astype(out_ref.dtype)


def prepare_gru_params(params, *, lane=128, matmul_dtype=jnp.bfloat16):
    """One-time (per model) prep: transpose, fuse gates [r|z|n], pre-sum the r/z biases,
    pad hidden to a multiple of `lane` lanes, and cast MXU operands to `matmul_dtype`.

    bf16 default: full MXU rate on v5e / v6e / v7x and half the weight/x VMEM & DMA bytes;
    accumulation and all gate math stay f32. Use matmul_dtype=jnp.float32 when bit-tight
    agreement with an f32 reference over long sequences is required. On v6e/v7x, lane=256
    fills the 256-wide MXU when H is an odd multiple of 128."""
    H = params["w_hr"].shape[0]
    Hp = _round_up(H, lane)

    def pad_in(w):   # (H, E) -> (E, Hp)
        return jnp.pad(w.T, ((0, 0), (0, Hp - H)))

    def pad_hh(w):   # (H, H) -> (Hp, Hp)
        return jnp.pad(w.T, ((0, Hp - H), (0, Hp - H)))

    def pad_b(b):    # (H,) -> (Hp,)
        return jnp.pad(b, (0, Hp - H))

    wi = jnp.concatenate([pad_in(params["w_ir"]), pad_in(params["w_iz"]),
                          pad_in(params["w_in"])], axis=1).astype(matmul_dtype)
    wh = jnp.concatenate([pad_hh(params["w_hr"]), pad_hh(params["w_hz"]),
                          pad_hh(params["w_hn"])], axis=1).astype(matmul_dtype)
    bi = jnp.concatenate([pad_b(params["b_ir"] + params["b_hr"]),
                          pad_b(params["b_iz"] + params["b_hz"]),
                          pad_b(params["b_in"])]).reshape(1, 3 * Hp).astype(jnp.float32)
    bhn = pad_b(params["b_hn"]).reshape(1, Hp).astype(jnp.float32)
    return {"wi": wi, "wh": wh, "bi": bi, "bhn": bhn, "hidden": H, "hidden_pad": Hp}


def disc_utterance_encoder(x, prepared, *, seq_chunk=64, batch_tile=None, unroll=8):
    """x: (batch, seq_len, input_size) -> (batch, hidden_size) final GRU hidden state."""
    B, S, E = x.shape
    H, Hp = prepared["hidden"], prepared["hidden_pad"]
    wi, wh, bi, bhn = prepared["wi"], prepared["wh"], prepared["bi"], prepared["bhn"]
    mm_dtype = wi.dtype
    mm_bytes = jnp.dtype(mm_dtype).itemsize

    # ---- Batch tiling: sublane grain; split across TensorCores on 2-TC chips (v7x). ----
    Bp8 = _round_up(B, 8)
    if batch_tile is None:
        split = _num_parallel_cores()
        if split > 1 and Bp8 >= 8 * split:
            b_tile = _round_up(_cdiv(Bp8, split), 8)   # keep both cores busy
        else:
            b_tile = Bp8                               # 1 TC: biggest tile for MXU M
    else:
        b_tile = _round_up(min(batch_tile, Bp8), 8)
    num_b = _cdiv(B, b_tile)
    Bp = num_b * b_tile

    # ---- Sequence tiling: big chunks (MXU-filling Phase-1 M, few grid steps), (8,·) grain. ----
    seq_chunk = max(1, min(seq_chunk, S))
    if seq_chunk < S:
        seq_chunk = min(_round_up(seq_chunk, 8), S)

    # ---- VMEM budget: auto-shrink seq_chunk to fit, then set vmem_limit_bytes explicitly. ----
    vmem_cap = _vmem_capacity_bytes()

    def vmem_est(chunk):
        weights = 2 * (E * 3 * Hp + Hp * 3 * Hp + 4 * Hp) * mm_bytes  # double-buffer worst case
        x_blk = 2 * chunk * b_tile * E * mm_bytes                     # double-buffered x chunk
        xp = chunk * b_tile * 3 * Hp * 4                              # f32 projection scratch
        h = b_tile * Hp * 4
        o = 2 * b_tile * Hp * 4
        return weights + x_blk + xp + h + o

    while seq_chunk > 8 and vmem_est(seq_chunk) > (3 * vmem_cap) // 4:
        seq_chunk = max(8, _round_up(seq_chunk // 2, 8))

    num_s = _cdiv(S, seq_chunk)
    Sp = num_s * seq_chunk
    tail = S - (num_s - 1) * seq_chunk            # static; only the last chunk may be short
    vmem_limit = int(min(max(vmem_est(seq_chunk) * 3 // 2, 32 * 1024 * 1024), vmem_cap))

    # Time-major layout + matmul-dtype cast + pad as ONE fused host op.
    # TODO(synk): consume (B,S,E) directly with an in-kernel relayout to drop this extra HBM
    # pass; allow_input_fusion below already lets XLA fuse it into the operand when supported.
    x_t = jnp.transpose(x, (1, 0, 2)).astype(mm_dtype)
    x_t = jnp.pad(x_t, ((0, Sp - S), (0, Bp - B), (0, 0)))

    kernel = functools.partial(_gru_kernel, seq_chunk=seq_chunk, tail=tail, unroll=unroll)

    def build_and_call(optimized):
        # Weight/bias operands have constant index_maps: single-buffer them (saves a full
        # copy of wi+wh in VMEM — a must at large H on v7x's 64 MiB VMEM).
        w_kwargs = {"pipeline_mode": pl.Buffered(1)} if optimized else {}
        in_specs = [
            pl.BlockSpec((seq_chunk, b_tile, E), lambda b, s: (s, b, 0)),    # x chunk
            pl.BlockSpec((E, 3 * Hp), lambda b, s: (0, 0), **w_kwargs),      # W_i fused
            pl.BlockSpec((Hp, 3 * Hp), lambda b, s: (0, 0), **w_kwargs),     # W_h fused
            pl.BlockSpec((1, 3 * Hp), lambda b, s: (0, 0), **w_kwargs),      # b_i fused
            pl.BlockSpec((1, Hp), lambda b, s: (0, 0), **w_kwargs),          # b_hn
        ]
        cp = dict(dimension_semantics=("parallel", "arbitrary"),
                  vmem_limit_bytes=vmem_limit)
        if optimized:
            cp["allow_input_fusion"] = [True, False, False, False, False]
        return pl.pallas_call(
            kernel,
            out_shape=jax.ShapeDtypeStruct((Bp, Hp), jnp.float32),
            grid_spec=pltpu.PrefetchScalarGridSpec(
                num_scalar_prefetch=0,
                grid=(num_b, num_s),
                in_specs=in_specs,
                out_specs=pl.BlockSpec((b_tile, Hp), lambda b, s: (b, 0)),
                scratch_shapes=[
                    pltpu.VMEM((seq_chunk, b_tile, 3 * Hp), jnp.float32),  # chunk projection
                    pltpu.VMEM((b_tile, Hp), jnp.float32),                 # persistent h
                ],
            ),
            compiler_params=pltpu.CompilerParams(**cp),
        )(x_t, wi, wh, bi, bhn)

    try:
        out = build_and_call(True)
    except Exception:
        # Fallback for jaxlibs lacking pipeline_mode=pl.Buffered / allow_input_fusion support.
        out = build_and_call(False)

    return out[:B, :H]


def init_gru_params(key, input_size, hidden_size):
    """Deterministic init matching nn.GRU's U(-1/sqrt(H), 1/sqrt(H)) per-tensor shapes."""
    bound = 1.0 / jnp.sqrt(jnp.float32(hidden_size))
    names = ["w_ir", "w_iz", "w_in", "w_hr", "w_hz", "w_hn",
             "b_ir", "b_iz", "b_in", "b_hr", "b_hz", "b_hn"]
    shapes = [(hidden_size, input_size)] * 3 + [(hidden_size, hidden_size)] * 3 \
             + [(hidden_size,)] * 6
    keys = jax.random.split(key, len(names))
    return {n: jax.random.uniform(k, s, jnp.float32, -bound, bound)
            for n, s, k in zip(names, shapes, keys)}


def _reference_gru(x, p):
    """Pure-JAX reference of the same forward pass (PyTorch GRU equations, f32)."""
    def step(h, x_t):
        r = jax.nn.sigmoid(x_t @ p["w_ir"].T + p["b_ir"] + h @ p["w_hr"].T + p["b_hr"])
        z = jax.nn.sigmoid(x_t @ p["w_iz"].T + p["b_iz"] + h @ p["w_hz"].T + p["b_hz"])
        n = jnp.tanh(x_t @ p["w_in"].T + p["b_in"] + r * (h @ p["w_hn"].T + p["b_hn"]))
        return (1.0 - z) * n + z * h, None
    B = x.shape[0]
    H = p["w_hr"].shape[0]
    h0 = jnp.zeros((B, H), jnp.float32)
    hT, _ = lax.scan(step, h0, jnp.transpose(x, (1, 0, 2)))
    return hT


if __name__ == "__main__":
    batch, seq_len, input_size, hidden_size = 2, 8, 32, 32

    key = jax.random.PRNGKey(0)
    k_x, k_p = jax.random.split(key)
    x = jax.random.normal(k_x, (batch, seq_len, input_size), dtype=jnp.float32)
    params = init_gru_params(k_p, input_size, hidden_size)
    ref = _reference_gru(x, params)

    # f32 MXU operands: bit-tight agreement with the f32 reference.
    prep_f32 = prepare_gru_params(params, matmul_dtype=jnp.float32)
    out_f32 = jax.block_until_ready(disc_utterance_encoder(x, prep_f32))
    assert out_f32.shape == (batch, hidden_size)
    assert jnp.allclose(out_f32, ref, atol=1e-5, rtol=1e-5), "f32 mismatch vs JAX GRU reference"

    # Default (bf16 MXU operands, f32 accumulation/gates): looser tolerance.
    prep_bf16 = prepare_gru_params(params)
    out_bf16 = jax.block_until_ready(disc_utterance_encoder(x, prep_bf16))
    assert out_bf16.shape == (batch, hidden_size)
    assert jnp.allclose(out_bf16, ref, atol=5e-2, rtol=5e-2), "bf16 mismatch vs reference"

    # Multi-chunk sequence grid + short static tail chunk + batch padding path.
    x2 = jax.random.normal(jax.random.PRNGKey(1), (3, 20, input_size), dtype=jnp.float32)
    ref2 = _reference_gru(x2, params)
    out2 = jax.block_until_ready(disc_utterance_encoder(x2, prep_f32, seq_chunk=8))
    assert jnp.allclose(out2, ref2, atol=1e-5, rtol=1e-5), "multi-chunk mismatch vs reference"

    print("KERNEL_OK")
</pallas_src>

<mosaic_0001>
module attributes {stable_mosaic.version = 11 : i64} {
  func.func @_gru_kernel(%arg0: i32, %arg1: i32, %arg2: memref<8x8x32xf32, #tpu.memory_space<vmem>>, %arg3: memref<32x384xf32, #tpu.memory_space<vmem>>, %arg4: memref<128x384xf32, #tpu.memory_space<vmem>>, %arg5: memref<1x384xf32, #tpu.memory_space<vmem>>, %arg6: memref<1x128xf32, #tpu.memory_space<vmem>>, %arg7: memref<8x128xf32, #tpu.memory_space<vmem>>, %arg8: memref<8x8x384xf32, #tpu.memory_space<vmem>>, %arg9: memref<8x128xf32, #tpu.memory_space<vmem>>) attributes {dimension_semantics = [#tpu.dimension_semantics<parallel>, #tpu.dimension_semantics<arbitrary>], iteration_bounds = array<i64: 1, 1>, scalar_prefetch = 0 : i64, scratch_operands = 2 : i64, tpu.core_type = #tpu.core_type<tc>, window_params = [{transform_indices = @transform_0, window_bounds = array<i64: 8, 8, 32>}, {pipeline_mode = #tpu.pipeline_mode<synchronous>, transform_indices = @transform_1, window_bounds = array<i64: 32, 384>}, {pipeline_mode = #tpu.pipeline_mode<synchronous>, transform_indices = @transform_2, window_bounds = array<i64: 128, 384>}, {pipeline_mode = #tpu.pipeline_mode<synchronous>, transform_indices = @transform_3, window_bounds = array<i64: 1, 384>}, {pipeline_mode = #tpu.pipeline_mode<synchronous>, transform_indices = @transform_4, window_bounds = array<i64: 1, 128>}, {transform_indices = @transform_5, window_bounds = array<i64: 8, 128>}]} {
    %c0_i32 = arith.constant 0 : i32
    %0 = arith.cmpi eq, %arg1, %c0_i32 : i32
    %1 = arith.extui %0 : i1 to i32
    %c0_i32_0 = arith.constant 0 : i32
    %2 = arith.cmpi ne, %1, %c0_i32_0 : i32
    scf.if %2 {
      %cst_61 = arith.constant 0.000000e+00 : f32
      %221 = vector.broadcast %cst_61 : f32 to vector<8x128xf32>
      %c0_62 = arith.constant 0 : index
      %c0_63 = arith.constant 0 : index
      %222 = vector.load %arg9[%c0_62, %c0_63] : memref<8x128xf32, #tpu.memory_space<vmem>>, vector<8x128xf32>
      tpu.vector_store %arg9[%c0_62, %c0_63], %221 {strides = array<i32>} : memref<8x128xf32, #tpu.memory_space<vmem>>, vector<8x128xf32>,
    } else {
    }
    %c0 = arith.constant 0 : index
    %c0_1 = arith.constant 0 : index
    %3 = vector.load %arg3[%c0, %c0_1] : memref<32x384xf32, #tpu.memory_space<vmem>>, vector<32x384xf32>
    %c0_2 = arith.constant 0 : index
    %c0_3 = arith.constant 0 : index
    %4 = vector.load %arg5[%c0_2, %c0_3] : memref<1x384xf32, #tpu.memory_space<vmem>>, vector<1x384xf32>
    %c0_4 = arith.constant 0 : index
    %c0_5 = arith.constant 0 : index
    %c0_6 = arith.constant 0 : index
    %5 = vector.load %arg2[%c0_4, %c0_5, %c0_6] : memref<8x8x32xf32, #tpu.memory_space<vmem>>, vector<8x8x32xf32>
    %6 = vector.shape_cast %5 : vector<8x8x32xf32> to vector<64x32xf32>
    %cst = arith.constant dense<0.000000e+00> : vector<64x384xf32>
    %7 = tpu.matmul %6, %3, %cst {dimension_numbers = #tpu.dot_dimension_numbers<[1], [0], [0], [1], [0, 0, 1, 1], [], []>} : vector<64x32xf32>, vector<32x384xf32>, vector<64x384xf32> -> vector<64x384xf32>
    %8 = vector.broadcast %4 : vector<1x384xf32> to vector<64x384xf32>
    %9 = arith.addf %7, %8 : vector<64x384xf32>
    %10 = vector.shape_cast %9 : vector<64x384xf32> to vector<8x8x384xf32>
    %c0_7 = arith.constant 0 : index
    %c0_8 = arith.constant 0 : index
    %c0_9 = arith.constant 0 : index
    %11 = vector.load %arg8[%c0_7, %c0_8, %c0_9] : memref<8x8x384xf32, #tpu.memory_space<vmem>>, vector<8x8x384xf32>
    tpu.vector_store %arg8[%c0_7, %c0_8, %c0_9], %10 {strides = array<i32>} : memref<8x8x384xf32, #tpu.memory_space<vmem>>, vector<8x8x384xf32>,
    %c0_10 = arith.constant 0 : index
    %c0_11 = arith.constant 0 : index
    %12 = vector.load %arg4[%c0_10, %c0_11] : memref<128x384xf32, #tpu.memory_space<vmem>>, vector<128x384xf32>
    %c0_12 = arith.constant 0 : index
    %c0_13 = arith.constant 0 : index
    %13 = vector.load %arg6[%c0_12, %c0_13] : memref<1x128xf32, #tpu.memory_space<vmem>>, vector<1x128xf32>
    %14 = vector.shape_cast %13 : vector<1x128xf32> to vector<1x128xf32>
    %15 = vector.broadcast %14 : vector<1x128xf32> to vector<8x128xf32>
    %c0_14 = arith.constant 0 : index
    %c0_15 = arith.constant 0 : index
    %16 = vector.load %arg9[%c0_14, %c0_15] : memref<8x128xf32, #tpu.memory_space<vmem>>, vector<8x128xf32>
    %c0_i32_16 = arith.constant 0 : i32
    %17 = arith.index_cast %c0_i32_16 : i32 to index
    %c0_17 = arith.constant 0 : index
    %c0_18 = arith.constant 0 : index
    %18 = vector.load %arg8[%17, %c0_17, %c0_18] : memref<8x8x384xf32, #tpu.memory_space<vmem>>, vector<1x8x384xf32>
    %19 = vector.shape_cast %18 : vector<1x8x384xf32> to vector<8x384xf32>
    %cst_19 = arith.constant dense<0.000000e+00> : vector<8x384xf32>
    %20 = tpu.matmul %16, %12, %cst_19 {dimension_numbers = #tpu.dot_dimension_numbers<[1], [0], [0], [1], [0, 0, 1, 1], [], []>} : vector<8x128xf32>, vector<128x384xf32>, vector<8x384xf32> -> vector<8x384xf32>
    %21 = vector.extract_strided_slice %19 {offsets = [0, 0], sizes = [8, 256], strides = [1, 1]} : vector<8x384xf32> to vector<8x256xf32>
    %22 = vector.extract_strided_slice %20 {offsets = [0, 0], sizes = [8, 256], strides = [1, 1]} : vector<8x384xf32> to vector<8x256xf32>
    %23 = arith.addf %21, %22 : vector<8x256xf32>
    %24 = arith.negf %23 : vector<8x256xf32>
    %25 = math.exp %24 : vector<8x256xf32>
    %cst_20 = arith.constant 1.000000e+00 : f32
    %26 = vector.broadcast %cst_20 : f32 to vector<8x256xf32>
    %27 = arith.addf %26, %25 : vector<8x256xf32>
    %28 = arith.divf %26, %27 : vector<8x256xf32>
    %29 = vector.extract_strided_slice %28 {offsets = [0, 0], sizes = [8, 128], strides = [1, 1]} : vector<8x256xf32> to vector<8x128xf32>
    %30 = vector.extract_strided_slice %28 {offsets = [0, 128], sizes = [8, 128], strides = [1, 1]} : vector<8x256xf32> to vector<8x128xf32>
    %31 = vector.extract_strided_slice %19 {offsets = [0, 256], sizes = [8, 128], strides = [1, 1]} : vector<8x384xf32> to vector<8x128xf32>
    %32 = vector.extract_strided_slice %20 {offsets = [0, 256], sizes = [8, 128], strides = [1, 1]} : vector<8x384xf32> to vector<8x128xf32>
    %33 = arith.addf %32, %15 : vector<8x128xf32>
    %34 = arith.mulf %29, %33 : vector<8x128xf32>
    %35 = arith.addf %31, %34 : vector<8x128xf32>
    %36 = math.tanh %35 : vector<8x128xf32>
    %cst_21 = arith.constant 1.000000e+00 : f32
    %37 = vector.broadcast %cst_21 : f32 to vector<8x128xf32>
    %38 = arith.subf %37, %30 : vector<8x128xf32>
    %39 = arith.mulf %38, %36 : vector<8x128xf32>
    %40 = arith.mulf %30, %16 : vector<8x128xf32>
    %41 = arith.addf %39, %40 : vector<8x128xf32>
    %c1_i32 = arith.constant 1 : i32
    %42 = arith.index_cast %c1_i32 : i32 to index
    %c0_22 = arith.constant 0 : index
    %c0_23 = arith.constant 0 : index
    %43 = vector.load %arg8[%42, %c0_22, %c0_23] : memref<8x8x384xf32, #tpu.memory_space<vmem>>, vector<1x8x384xf32>
    %44 = vector.shape_cast %43 : vector<1x8x384xf32> to vector<8x384xf32>
    %cst_24 = arith.constant dense<0.000000e+00> : vector<8x384xf32>
    %45 = tpu.matmul %41, %12, %cst_24 {dimension_numbers = #tpu.dot_dimension_numbers<[1], [0], [0], [1], [0, 0, 1, 1], [], []>} : vector<8x128xf32>, vector<128x384xf32>, vector<8x384xf32> -> vector<8x384xf32>
    %46 = vector.extract_strided_slice %44 {offsets = [0, 0], sizes = [8, 256], strides = [1, 1]} : vector<8x384xf32> to vector<8x256xf32>
    %47 = vector.extract_strided_slice %45 {offsets = [0, 0], sizes = [8, 256], strides = [1, 1]} : vector<8x384xf32> to vector<8x256xf32>
    %48 = arith.addf %46, %47 : vector<8x256xf32>
    %49 = arith.negf %48 : vector<8x256xf32>
    %50 = math.exp %49 : vector<8x256xf32>
    %cst_25 = arith.constant 1.000000e+00 : f32
    %51 = vector.broadcast %cst_25 : f32 to vector<8x256xf32>
    %52 = arith.addf %51, %50 : vector<8x256xf32>
    %53 = arith.divf %51, %52 : vector<8x256xf32>
    %54 = vector.extract_strided_slice %53 {offsets = [0, 0], sizes = [8, 128], strides = [1, 1]} : vector<8x256xf32> to vector<8x128xf32>
    %55 = vector.extract_strided_slice %53 {offsets = [0, 128], sizes = [8, 128], strides = [1, 1]} : vector<8x256xf32> to vector<8x128xf32>
    %56 = vector.extract_strided_slice %44 {offsets = [0, 256], sizes = [8, 128], strides = [1, 1]} : vector<8x384xf32> to vector<8x128xf32>
    %57 = vector.extract_strided_slice %45 {offsets = [0, 256], sizes = [8, 128], strides = [1, 1]} : vector<8x384xf32> to vector<8x128xf32>
    %58 = arith.addf %57, %15 : vector<8x128xf32>
    %59 = arith.mulf %54, %58 : vector<8x128xf32>
    %60 = arith.addf %56, %59 : vector<8x128xf32>
    %61 = math.tanh %60 : vector<8x128xf32>
    %cst_26 = arith.constant 1.000000e+00 : f32
    %62 = vector.broadcast %cst_26 : f32 to vector<8x128xf32>
    %63 = arith.subf %62, %55 : vector<8x128xf32>
    %64 = arith.mulf %63, %61 : vector<8x128xf32>
    %65 = arith.mulf %55, %41 : vector<8x128xf32>
    %66 = arith.addf %64, %65 : vector<8x128xf32>
    %c2_i32 = arith.constant 2 : i32
    %67 = arith.index_cast %c2_i32 : i32 to index
    %c0_27 = arith.constant 0 : index
    %c0_28 = arith.constant 0 : index
    %68 = vector.load %arg8[%67, %c0_27, %c0_28] : memref<8x8x384xf32, #tpu.memory_space<vmem>>, vector<1x8x384xf32>
    %69 = vector.shape_cast %68 : vector<1x8x384xf32> to vector<8x384xf32>
    %cst_29 = arith.constant dense<0.000000e+00> : vector<8x384xf32>
    %70 = tpu.matmul %66, %12, %cst_29 {dimension_numbers = #tpu.dot_dimension_numbers<[1], [0], [0], [1], [0, 0, 1, 1], [], []>} : vector<8x128xf32>, vector<128x384xf32>, vector<8x384xf32> -> vector<8x384xf32>
    %71 = vector.extract_strided_slice %69 {offsets = [0, 0], sizes = [8, 256], strides = [1, 1]} : vector<8x384xf32> to vector<8x256xf32>
    %72 = vector.extract_strided_slice %70 {offsets = [0, 0], sizes = [8, 256], strides = [1, 1]} : vector<8x384xf32> to vector<8x256xf32>
    %73 = arith.addf %71, %72 : vector<8x256xf32>
    %74 = arith.negf %73 : vector<8x256xf32>
    %75 = math.exp %74 : vector<8x256xf32>
    %cst_30 = arith.constant 1.000000e+00 : f32
    %76 = vector.broadcast %cst_30 : f32 to vector<8x256xf32>
    %77 = arith.addf %76, %75 : vector<8x256xf32>
    %78 = arith.divf %76, %77 : vector<8x256xf32>
    %79 = vector.extract_strided_slice %78 {offsets = [0, 0], sizes = [8, 128], strides = [1, 1]} : vector<8x256xf32> to vector<8x128xf32>
    %80 = vector.extract_strided_slice %78 {offsets = [0, 128], sizes = [8, 128], strides = [1, 1]} : vector<8x256xf32> to vector<8x128xf32>
    %81 = vector.extract_strided_slice %69 {offsets = [0, 256], sizes = [8, 128], strides = [1, 1]} : vector<8x384xf32> to vector<8x128xf32>
    %82 = vector.extract_strided_slice %70 {offsets = [0, 256], sizes = [8, 128], strides = [1, 1]} : vector<8x384xf32> to vector<8x128xf32>
    %83 = arith.addf %82, %15 : vector<8x128xf32>
    %84 = arith.mulf %79, %83 : vector<8x128xf32>
    %85 = arith.addf %81, %84 : vector<8x128xf32>
    %86 = math.tanh %85 : vector<8x128xf32>
    %cst_31 = arith.constant 1.000000e+00 : f32
    %87 = vector.broadcast %cst_31 : f32 to vector<8x128xf32>
    %88 = arith.subf %87, %80 : vector<8x128xf32>
    %89 = arith.mulf %88, %86 : vector<8x128xf32>
    %90 = arith.mulf %80, %66 : vector<8x128xf32>
    %91 = arith.addf %89, %90 : vector<8x128xf32>
    %c3_i32 = arith.constant 3 : i32
    %92 = arith.index_cast %c3_i32 : i32 to index
    %c0_32 = arith.constant 0 : index
    %c0_33 = arith.constant 0 : index
    %93 = vector.load %arg8[%92, %c0_32, %c0_33] : memref<8x8x384xf32, #tpu.memory_space<vmem>>, vector<1x8x384xf32>
    %94 = vector.shape_cast %93 : vector<1x8x384xf32> to vector<8x384xf32>
    %cst_34 = arith.constant dense<0.000000e+00> : vector<8x384xf32>
    %95 = tpu.matmul %91, %12, %cst_34 {dimension_numbers = #tpu.dot_dimension_numbers<[1], [0], [0], [1], [0, 0, 1, 1], [], []>} : vector<8x128xf32>, vector<128x384xf32>, vector<8x384xf32> -> vector<8x384xf32>
    %96 = vector.extract_strided_slice %94 {offsets = [0, 0], sizes = [8, 256], strides = [1, 1]} : vector<8x384xf32> to vector<8x256xf32>
    %97 = vector.extract_strided_slice %95 {offsets = [0, 0], sizes = [8, 256], strides = [1, 1]} : vector<8x384xf32> to vector<8x256xf32>
    %98 = arith.addf %96, %97 : vector<8x256xf32>
    %99 = arith.negf %98 : vector<8x256xf32>
    %100 = math.exp %99 : vector<8x256xf32>
    %cst_35 = arith.constant 1.000000e+00 : f32
    %101 = vector.broadcast %cst_35 : f32 to vector<8x256xf32>
    %102 = arith.addf %101, %100 : vector<8x256xf32>
    %103 = arith.divf %101, %102 : vector<8x256xf32>
    %104 = vector.extract_strided_slice %103 {offsets = [0, 0], sizes = [8, 128], strides = [1, 1]} : vector<8x256xf32> to vector<8x128xf32>
    %105 = vector.extract_strided_slice %103 {offsets = [0, 128], sizes = [8, 128], strides = [1, 1]} : vector<8x256xf32> to vector<8x128xf32>
    %106 = vector.extract_strided_slice %94 {offsets = [0, 256], sizes = [8, 128], strides = [1, 1]} : vector<8x384xf32> to vector<8x128xf32>
    %107 = vector.extract_strided_slice %95 {offsets = [0, 256], sizes = [8, 128], strides = [1, 1]} : vector<8x384xf32> to vector<8x128xf32>
    %108 = arith.addf %107, %15 : vector<8x128xf32>
    %109 = arith.mulf %104, %108 : vector<8x128xf32>
    %110 = arith.addf %106, %109 : vector<8x128xf32>
    %111 = math.tanh %110 : vector<8x128xf32>
    %cst_36 = arith.constant 1.000000e+00 : f32
    %112 = vector.broadcast %cst_36 : f32 to vector<8x128xf32>
    %113 = arith.subf %112, %105 : vector<8x128xf32>
    %114 = arith.mulf %113, %111 : vector<8x128xf32>
    %115 = arith.mulf %105, %91 : vector<8x128xf32>
    %116 = arith.addf %114, %115 : vector<8x128xf32>
    %c4_i32 = arith.constant 4 : i32
    %117 = arith.index_cast %c4_i32 : i32 to index
    %c0_37 = arith.constant 0 : index
    %c0_38 = arith.constant 0 : index
    %118 = vector.load %arg8[%117, %c0_37, %c0_38] : memref<8x8x384xf32, #tpu.memory_space<vmem>>, vector<1x8x384xf32>
    %119 = vector.shape_cast %118 : vector<1x8x384xf32> to vector<8x384xf32>
    %cst_39 = arith.constant dense<0.000000e+00> : vector<8x384xf32>
    %120 = tpu.matmul %116, %12, %cst_39 {dimension_numbers = #tpu.dot_dimension_numbers<[1], [0], [0], [1], [0, 0, 1, 1], [], []>} : vector<8x128xf32>, vector<128x384xf32>, vector<8x384xf32> -> vector<8x384xf32>
    %121 = vector.extract_strided_slice %119 {offsets = [0, 0], sizes = [8, 256], strides = [1, 1]} : vector<8x384xf32> to vector<8x256xf32>
    %122 = vector.extract_strided_slice %120 {offsets = [0, 0], sizes = [8, 256], strides = [1, 1]} : vector<8x384xf32> to vector<8x256xf32>
    %123 = arith.addf %121, %122 : vector<8x256xf32>
    %124 = arith.negf %123 : vector<8x256xf32>
    %125 = math.exp %124 : vector<8x256xf32>
    %cst_40 = arith.constant 1.000000e+00 : f32
    %126 = vector.broadcast %cst_40 : f32 to vector<8x256xf32>
    %127 = arith.addf %126, %125 : vector<8x256xf32>
    %128 = arith.divf %126, %127 : vector<8x256xf32>
    %129 = vector.extract_strided_slice %128 {offsets = [0, 0], sizes = [8, 128], strides = [1, 1]} : vector<8x256xf32> to vector<8x128xf32>
    %130 = vector.extract_strided_slice %128 {offsets = [0, 128], sizes = [8, 128], strides = [1, 1]} : vector<8x256xf32> to vector<8x128xf32>
    %131 = vector.extract_strided_slice %119 {offsets = [0, 256], sizes = [8, 128], strides = [1, 1]} : vector<8x384xf32> to vector<8x128xf32>
    %132 = vector.extract_strided_slice %120 {offsets = [0, 256], sizes = [8, 128], strides = [1, 1]} : vector<8x384xf32> to vector<8x128xf32>
    %133 = arith.addf %132, %15 : vector<8x128xf32>
    %134 = arith.mulf %129, %133 : vector<8x128xf32>
    %135 = arith.addf %131, %134 : vector<8x128xf32>
    %136 = math.tanh %135 : vector<8x128xf32>
    %cst_41 = arith.constant 1.000000e+00 : f32
    %137 = vector.broadcast %cst_41 : f32 to vector<8x128xf32>
    %138 = arith.subf %137, %130 : vector<8x128xf32>
    %139 = arith.mulf %138, %136 : vector<8x128xf32>
    %140 = arith.mulf %130, %116 : vector<8x128xf32>
    %141 = arith.addf %139, %140 : vector<8x128xf32>
    %c5_i32 = arith.constant 5 : i32
    %142 = arith.index_cast %c5_i32 : i32 to index
    %c0_42 = arith.constant 0 : index
    %c0_43 = arith.constant 0 : index
    %143 = vector.load %arg8[%142, %c0_42, %c0_43] : memref<8x8x384xf32, #tpu.memory_space<vmem>>, vector<1x8x384xf32>
    %144 = vector.shape_cast %143 : vector<1x8x384xf32> to vector<8x384xf32>
    %cst_44 = arith.constant dense<0.000000e+00> : vector<8x384xf32>
    %145 = tpu.matmul %141, %12, %cst_44 {dimension_numbers = #tpu.dot_dimension_numbers<[1], [0], [0], [1], [0, 0, 1, 1], [], []>} : vector<8x128xf32>, vector<128x384xf32>, vector<8x384xf32> -> vector<8x384xf32>
    %146 = vector.extract_strided_slice %144 {offsets = [0, 0], sizes = [8, 256], strides = [1, 1]} : vector<8x384xf32> to vector<8x256xf32>
    %147 = vector.extract_strided_slice %145 {offsets = [0, 0], sizes = [8, 256], strides = [1, 1]} : vector<8x384xf32> to vector<8x256xf32>
    %148 = arith.addf %146, %147 : vector<8x256xf32>
    %149 = arith.negf %148 : vector<8x256xf32>
    %150 = math.exp %149 : vector<8x256xf32>
    %cst_45 = arith.constant 1.000000e+00 : f32
    %151 = vector.broadcast %cst_45 : f32 to vector<8x256xf32>
    %152 = arith.addf %151, %150 : vector<8x256xf32>
    %153 = arith.divf %151, %152 : vector<8x256xf32>
    %154 = vector.extract_strided_slice %153 {offsets = [0, 0], sizes = [8, 128], strides = [1, 1]} : vector<8x256xf32> to vector<8x128xf32>
    %155 = vector.extract_strided_slice %153 {offsets = [0, 128], sizes = [8, 128], strides = [1, 1]} : vector<8x256xf32> to vector<8x128xf32>
    %156 = vector.extract_strided_slice %144 {offsets = [0, 256], sizes = [8, 128], strides = [1, 1]} : vector<8x384xf32> to vector<8x128xf32>
    %157 = vector.extract_strided_slice %145 {offsets = [0, 256], sizes = [8, 128], strides = [1, 1]} : vector<8x384xf32> to vector<8x128xf32>
    %158 = arith.addf %157, %15 : vector<8x128xf32>
    %159 = arith.mulf %154, %158 : vector<8x128xf32>
    %160 = arith.addf %156, %159 : vector<8x128xf32>
    %161 = math.tanh %160 : vector<8x128xf32>
    %cst_46 = arith.constant 1.000000e+00 : f32
    %162 = vector.broadcast %cst_46 : f32 to vector<8x128xf32>
    %163 = arith.subf %162, %155 : vector<8x128xf32>
    %164 = arith.mulf %163, %161 : vector<8x128xf32>
    %165 = arith.mulf %155, %141 : vector<8x128xf32>
    %166 = arith.addf %164, %165 : vector<8x128xf32>
    %c6_i32 = arith.constant 6 : i32
    %167 = arith.index_cast %c6_i32 : i32 to index
    %c0_47 = arith.constant 0 : index
    %c0_48 = arith.constant 0 : index
    %168 = vector.load %arg8[%167, %c0_47, %c0_48] : memref<8x8x384xf32, #tpu.memory_space<vmem>>, vector<1x8x384xf32>
    %169 = vector.shape_cast %168 : vector<1x8x384xf32> to vector<8x384xf32>
    %cst_49 = arith.constant dense<0.000000e+00> : vector<8x384xf32>
    %170 = tpu.matmul %166, %12, %cst_49 {dimension_numbers = #tpu.dot_dimension_numbers<[1], [0], [0], [1], [0, 0, 1, 1], [], []>} : vector<8x128xf32>, vector<128x384xf32>, vector<8x384xf32> -> vector<8x384xf32>
    %171 = vector.extract_strided_slice %169 {offsets = [0, 0], sizes = [8, 256], strides = [1, 1]} : vector<8x384xf32> to vector<8x256xf32>
    %172 = vector.extract_strided_slice %170 {offsets = [0, 0], sizes = [8, 256], strides = [1, 1]} : vector<8x384xf32> to vector<8x256xf32>
    %173 = arith.addf %171, %172 : vector<8x256xf32>
    %174 = arith.negf %173 : vector<8x256xf32>
    %175 = math.exp %174 : vector<8x256xf32>
    %cst_50 = arith.constant 1.000000e+00 : f32
    %176 = vector.broadcast %cst_50 : f32 to vector<8x256xf32>
    %177 = arith.addf %176, %175 : vector<8x256xf32>
    %178 = arith.divf %176, %177 : vector<8x256xf32>
    %179 = vector.extract_strided_slice %178 {offsets = [0, 0], sizes = [8, 128], strides = [1, 1]} : vector<8x256xf32> to vector<8x128xf32>
    %180 = vector.extract_strided_slice %178 {offsets = [0, 128], sizes = [8, 128], strides = [1, 1]} : vector<8x256xf32> to vector<8x128xf32>
    %181 = vector.extract_strided_slice %169 {offsets = [0, 256], sizes = [8, 128], strides = [1, 1]} : vector<8x384xf32> to vector<8x128xf32>
    %182 = vector.extract_strided_slice %170 {offsets = [0, 256], sizes = [8, 128], strides = [1, 1]} : vector<8x384xf32> to vector<8x128xf32>
    %183 = arith.addf %182, %15 : vector<8x128xf32>
    %184 = arith.mulf %179, %183 : vector<8x128xf32>
    %185 = arith.addf %181, %184 : vector<8x128xf32>
    %186 = math.tanh %185 : vector<8x128xf32>
    %cst_51 = arith.constant 1.000000e+00 : f32
    %187 = vector.broadcast %cst_51 : f32 to vector<8x128xf32>
    %188 = arith.subf %187, %180 : vector<8x128xf32>
    %189 = arith.mulf %188, %186 : vector<8x128xf32>
    %190 = arith.mulf %180, %166 : vector<8x128xf32>
    %191 = arith.addf %189, %190 : vector<8x128xf32>
    %c7_i32 = arith.constant 7 : i32
    %192 = arith.index_cast %c7_i32 : i32 to index
    %c0_52 = arith.constant 0 : index
    %c0_53 = arith.constant 0 : index
    %193 = vector.load %arg8[%192, %c0_52, %c0_53] : memref<8x8x384xf32, #tpu.memory_space<vmem>>, vector<1x8x384xf32>
    %194 = vector.shape_cast %193 : vector<1x8x384xf32> to vector<8x384xf32>
    %cst_54 = arith.constant dense<0.000000e+00> : vector<8x384xf32>
    %195 = tpu.matmul %191, %12, %cst_54 {dimension_numbers = #tpu.dot_dimension_numbers<[1], [0], [0], [1], [0, 0, 1, 1], [], []>} : vector<8x128xf32>, vector<128x384xf32>, vector<8x384xf32> -> vector<8x384xf32>
    %196 = vector.extract_strided_slice %194 {offsets = [0, 0], sizes = [8, 256], strides = [1, 1]} : vector<8x384xf32> to vector<8x256xf32>
    %197 = vector.extract_strided_slice %195 {offsets = [0, 0], sizes = [8, 256], strides = [1, 1]} : vector<8x384xf32> to vector<8x256xf32>
    %198 = arith.addf %196, %197 : vector<8x256xf32>
    %199 = arith.negf %198 : vector<8x256xf32>
    %200 = math.exp %199 : vector<8x256xf32>
    %cst_55 = arith.constant 1.000000e+00 : f32
    %201 = vector.broadcast %cst_55 : f32 to vector<8x256xf32>
    %202 = arith.addf %201, %200 : vector<8x256xf32>
    %203 = arith.divf %201, %202 : vector<8x256xf32>
    %204 = vector.extract_strided_slice %203 {offsets = [0, 0], sizes = [8, 128], strides = [1, 1]} : vector<8x256xf32> to vector<8x128xf32>
    %205 = vector.extract_strided_slice %203 {offsets = [0, 128], sizes = [8, 128], strides = [1, 1]} : vector<8x256xf32> to vector<8x128xf32>
    %206 = vector.extract_strided_slice %194 {offsets = [0, 256], sizes = [8, 128], strides = [1, 1]} : vector<8x384xf32> to vector<8x128xf32>
    %207 = vector.extract_strided_slice %195 {offsets = [0, 256], sizes = [8, 128], strides = [1, 1]} : vector<8x384xf32> to vector<8x128xf32>
    %208 = arith.addf %207, %15 : vector<8x128xf32>
    %209 = arith.mulf %204, %208 : vector<8x128xf32>
    %210 = arith.addf %206, %209 : vector<8x128xf32>
    %211 = math.tanh %210 : vector<8x128xf32>
    %cst_56 = arith.constant 1.000000e+00 : f32
    %212 = vector.broadcast %cst_56 : f32 to vector<8x128xf32>
    %213 = arith.subf %212, %205 : vector<8x128xf32>
    %214 = arith.mulf %213, %211 : vector<8x128xf32>
    %215 = arith.mulf %205, %191 : vector<8x128xf32>
    %216 = arith.addf %214, %215 : vector<8x128xf32>
    %c8_i32 = arith.constant 8 : i32
    %c0_57 = arith.constant 0 : index
    %c0_58 = arith.constant 0 : index
    %217 = vector.load %arg9[%c0_57, %c0_58] : memref<8x128xf32, #tpu.memory_space<vmem>>, vector<8x128xf32>
    tpu.vector_store %arg9[%c0_57, %c0_58], %216 {strides = array<i32>} : memref<8x128xf32, #tpu.memory_space<vmem>>, vector<8x128xf32>,
    %c0_i32_59 = arith.constant 0 : i32
    %218 = arith.cmpi eq, %arg1, %c0_i32_59 : i32
    %219 = arith.extui %218 : i1 to i32
    %c0_i32_60 = arith.constant 0 : i32
    %220 = arith.cmpi ne, %219, %c0_i32_60 : i32
    scf.if %220 {
      %c0_61 = arith.constant 0 : index
      %c0_62 = arith.constant 0 : index
      %221 = vector.load %arg9[%c0_61, %c0_62] : memref<8x128xf32, #tpu.memory_space<vmem>>, vector<8x128xf32>
      %c0_63 = arith.constant 0 : index
      %c0_64 = arith.constant 0 : index
      %222 = vector.load %arg7[%c0_63, %c0_64] : memref<8x128xf32, #tpu.memory_space<vmem>>, vector<8x128xf32>
      tpu.vector_store %arg7[%c0_63, %c0_64], %221 {strides = array<i32>} : memref<8x128xf32, #tpu.memory_space<vmem>>, vector<8x128xf32>,
    } else {
    }
    return
  }
  func.func @transform_0(%arg0: i32, %arg1: i32) -> (i32, i32, i32) {
    %c0_i32 = arith.constant 0 : i32
    %c0_i32_0 = arith.constant 0 : i32
    return %arg1, %arg0, %c0_i32 : i32, i32, i32
  }
  func.func @transform_1(%arg0: i32, %arg1: i32) -> (i32, i32) {
    %c0_i32 = arith.constant 0 : i32
    %c0_i32_0 = arith.constant 0 : i32
    %c0_i32_1 = arith.constant 0 : i32
    return %c0_i32, %c0_i32_0 : i32, i32
  }
  func.func @transform_2(%arg0: i32, %arg1: i32) -> (i32, i32) {
    %c0_i32 = arith.constant 0 : i32
    %c0_i32_0 = arith.constant 0 : i32
    %c0_i32_1 = arith.constant 0 : i32
    return %c0_i32, %c0_i32_0 : i32, i32
  }
  func.func @transform_3(%arg0: i32, %arg1: i32) -> (i32, i32) {
    %c0_i32 = arith.constant 0 : i32
    %c0_i32_0 = arith.constant 0 : i32
    %c0_i32_1 = arith.constant 0 : i32
    return %c0_i32, %c0_i32_0 : i32, i32
  }
  func.func @transform_4(%arg0: i32, %arg1: i32) -> (i32, i32) {
    %c0_i32 = arith.constant 0 : i32
    %c0_i32_0 = arith.constant 0 : i32
    %c0_i32_1 = arith.constant 0 : i32
    return %c0_i32, %c0_i32_0 : i32, i32
  }
  func.func @transform_5(%arg0: i32, %arg1: i32) -> (i32, i32) {
    %c0_i32 = arith.constant 0 : i32
    %c0_i32_0 = arith.constant 0 : i32
    return %arg0, %c0_i32 : i32, i32
  }
}

module attributes {stable_mosaic.version = 11 : i64} {
  func.func @_gru_kernel(%arg0: i32, %arg1: i32, %arg2: memref<8x8x32xf32, #tpu.memory_space<vmem>>, %arg3: memref<32x384xf32, #tpu.memory_space<vmem>>, %arg4: memref<128x384xf32, #tpu.memory_space<vmem>>, %arg5: memref<1x384xf32, #tpu.memory_space<vmem>>, %arg6: memref<1x128xf32, #tpu.memory_space<vmem>>, %arg7: memref<8x128xf32, #tpu.memory_space<vmem>>, %arg8: memref<8x8x384xf32, #tpu.memory_space<vmem>>, %arg9: memref<8x128xf32, #tpu.memory_space<vmem>>) attributes {dimension_semantics = [#tpu.dimension_semantics<parallel>, #tpu.dimension_semantics<arbitrary>], iteration_bounds = array<i64: 1, 1>, scalar_prefetch = 0 : i64, scratch_operands = 2 : i64, tpu.core_type = #tpu.core_type<tc>, window_params = [{transform_indices = @transform_0, window_bounds = array<i64: 8, 8, 32>}, {pipeline_mode = #tpu.pipeline_mode<synchronous>, transform_indices = @transform_1, window_bounds = array<i64: 32, 384>}, {pipeline_mode = #tpu.pipeline_mode<synchronous>, transform_indices = @transform_2, window_bounds = array<i64: 128, 384>}, {pipeline_mode = #tpu.pipeline_mode<synchronous>, transform_indices = @transform_3, window_bounds = array<i64: 1, 384>}, {pipeline_mode = #tpu.pipeline_mode<synchronous>, transform_indices = @transform_4, window_bounds = array<i64: 1, 128>}, {transform_indices = @transform_5, window_bounds = array<i64: 8, 128>}]} {
    %c0_i32 = arith.constant 0 : i32
    %0 = arith.cmpi eq, %arg1, %c0_i32 : i32
    %1 = arith.extui %0 : i1 to i32
    %c0_i32_0 = arith.constant 0 : i32
    %2 = arith.cmpi ne, %1, %c0_i32_0 : i32
    scf.if %2 {
      %cst_61 = arith.constant 0.000000e+00 : f32
      %221 = vector.broadcast %cst_61 : f32 to vector<8x128xf32>
      %c0_62 = arith.constant 0 : index
      %c0_63 = arith.constant 0 : index
      %222 = vector.load %arg9[%c0_62, %c0_63] : memref<8x128xf32, #tpu.memory_space<vmem>>, vector<8x128xf32>
      tpu.vector_store %arg9[%c0_62, %c0_63], %221 {strides = array<i32>} : memref<8x128xf32, #tpu.memory_space<vmem>>, vector<8x128xf32>,
    } else {
    }
    %c0 = arith.constant 0 : index
    %c0_1 = arith.constant 0 : index
    %3 = vector.load %arg3[%c0, %c0_1] : memref<32x384xf32, #tpu.memory_space<vmem>>, vector<32x384xf32>
    %c0_2 = arith.constant 0 : index
    %c0_3 = arith.constant 0 : index
    %4 = vector.load %arg5[%c0_2, %c0_3] : memref<1x384xf32, #tpu.memory_space<vmem>>, vector<1x384xf32>
    %c0_4 = arith.constant 0 : index
    %c0_5 = arith.constant 0 : index
    %c0_6 = arith.constant 0 : index
    %5 = vector.load %arg2[%c0_4, %c0_5, %c0_6] : memref<8x8x32xf32, #tpu.memory_space<vmem>>, vector<8x8x32xf32>
    %6 = vector.shape_cast %5 : vector<8x8x32xf32> to vector<64x32xf32>
    %cst = arith.constant dense<0.000000e+00> : vector<64x384xf32>
    %7 = tpu.matmul %6, %3, %cst {dimension_numbers = #tpu.dot_dimension_numbers<[1], [0], [0], [1], [0, 0, 1, 1], [], []>} : vector<64x32xf32>, vector<32x384xf32>, vector<64x384xf32> -> vector<64x384xf32>
    %8 = vector.broadcast %4 : vector<1x384xf32> to vector<64x384xf32>
    %9 = arith.addf %7, %8 : vector<64x384xf32>
    %10 = vector.shape_cast %9 : vector<64x384xf32> to vector<8x8x384xf32>
    %c0_7 = arith.constant 0 : index
    %c0_8 = arith.constant 0 : index
    %c0_9 = arith.constant 0 : index
    %11 = vector.load %arg8[%c0_7, %c0_8, %c0_9] : memref<8x8x384xf32, #tpu.memory_space<vmem>>, vector<8x8x384xf32>
    tpu.vector_store %arg8[%c0_7, %c0_8, %c0_9], %10 {strides = array<i32>} : memref<8x8x384xf32, #tpu.memory_space<vmem>>, vector<8x8x384xf32>,
    %c0_10 = arith.constant 0 : index
    %c0_11 = arith.constant 0 : index
    %12 = vector.load %arg4[%c0_10, %c0_11] : memref<128x384xf32, #tpu.memory_space<vmem>>, vector<128x384xf32>
    %c0_12 = arith.constant 0 : index
    %c0_13 = arith.constant 0 : index
    %13 = vector.load %arg6[%c0_12, %c0_13] : memref<1x128xf32, #tpu.memory_space<vmem>>, vector<1x128xf32>
    %14 = vector.shape_cast %13 : vector<1x128xf32> to vector<1x128xf32>
    %15 = vector.broadcast %14 : vector<1x128xf32> to vector<8x128xf32>
    %c0_14 = arith.constant 0 : index
    %c0_15 = arith.constant 0 : index
    %16 = vector.load %arg9[%c0_14, %c0_15] : memref<8x128xf32, #tpu.memory_space<vmem>>, vector<8x128xf32>
    %c0_i32_16 = arith.constant 0 : i32
    %17 = arith.index_cast %c0_i32_16 : i32 to index
    %c0_17 = arith.constant 0 : index
    %c0_18 = arith.constant 0 : index
    %18 = vector.load %arg8[%17, %c0_17, %c0_18] : memref<8x8x384xf32, #tpu.memory_space<vmem>>, vector<1x8x384xf32>
    %19 = vector.shape_cast %18 : vector<1x8x384xf32> to vector<8x384xf32>
    %cst_19 = arith.constant dense<0.000000e+00> : vector<8x384xf32>
    %20 = tpu.matmul %16, %12, %cst_19 {dimension_numbers = #tpu.dot_dimension_numbers<[1], [0], [0], [1], [0, 0, 1, 1], [], []>} : vector<8x128xf32>, vector<128x384xf32>, vector<8x384xf32> -> vector<8x384xf32>
    %21 = vector.extract_strided_slice %19 {offsets = [0, 0], sizes = [8, 256], strides = [1, 1]} : vector<8x384xf32> to vector<8x256xf32>
    %22 = vector.extract_strided_slice %20 {offsets = [0, 0], sizes = [8, 256], strides = [1, 1]} : vector<8x384xf32> to vector<8x256xf32>
    %23 = arith.addf %21, %22 : vector<8x256xf32>
    %24 = arith.negf %23 : vector<8x256xf32>
    %25 = math.exp %24 : vector<8x256xf32>
    %cst_20 = arith.constant 1.000000e+00 : f32
    %26 = vector.broadcast %cst_20 : f32 to vector<8x256xf32>
    %27 = arith.addf %26, %25 : vector<8x256xf32>
    %28 = arith.divf %26, %27 : vector<8x256xf32>
    %29 = vector.extract_strided_slice %28 {offsets = [0, 0], sizes = [8, 128], strides = [1, 1]} : vector<8x256xf32> to vector<8x128xf32>
    %30 = vector.extract_strided_slice %28 {offsets = [0, 128], sizes = [8, 128], strides = [1, 1]} : vector<8x256xf32> to vector<8x128xf32>
    %31 = vector.extract_strided_slice %19 {offsets = [0, 256], sizes = [8, 128], strides = [1, 1]} : vector<8x384xf32> to vector<8x128xf32>
    %32 = vector.extract_strided_slice %20 {offsets = [0, 256], sizes = [8, 128], strides = [1, 1]} : vector<8x384xf32> to vector<8x128xf32>
    %33 = arith.addf %32, %15 : vector<8x128xf32>
    %34 = arith.mulf %29, %33 : vector<8x128xf32>
    %35 = arith.addf %31, %34 : vector<8x128xf32>
    %36 = math.tanh %35 : vector<8x128xf32>
    %cst_21 = arith.constant 1.000000e+00 : f32
    %37 = vector.broadcast %cst_21 : f32 to vector<8x128xf32>
    %38 = arith.subf %37, %30 : vector<8x128xf32>
    %39 = arith.mulf %38, %36 : vector<8x128xf32>
    %40 = arith.mulf %30, %16 : vector<8x128xf32>
    %41 = arith.addf %39, %40 : vector<8x128xf32>
    %c1_i32 = arith.constant 1 : i32
    %42 = arith.index_cast %c1_i32 : i32 to index
    %c0_22 = arith.constant 0 : index
    %c0_23 = arith.constant 0 : index
    %43 = vector.load %arg8[%42, %c0_22, %c0_23] : memref<8x8x384xf32, #tpu.memory_space<vmem>>, vector<1x8x384xf32>
    %44 = vector.shape_cast %43 : vector<1x8x384xf32> to vector<8x384xf32>
    %cst_24 = arith.constant dense<0.000000e+00> : vector<8x384xf32>
    %45 = tpu.matmul %41, %12, %cst_24 {dimension_numbers = #tpu.dot_dimension_numbers<[1], [0], [0], [1], [0, 0, 1, 1], [], []>} : vector<8x128xf32>, vector<128x384xf32>, vector<8x384xf32> -> vector<8x384xf32>
    %46 = vector.extract_strided_slice %44 {offsets = [0, 0], sizes = [8, 256], strides = [1, 1]} : vector<8x384xf32> to vector<8x256xf32>
    %47 = vector.extract_strided_slice %45 {offsets = [0, 0], sizes = [8, 256], strides = [1, 1]} : vector<8x384xf32> to vector<8x256xf32>
    %48 = arith.addf %46, %47 : vector<8x256xf32>
    %49 = arith.negf %48 : vector<8x256xf32>
    %50 = math.exp %49 : vector<8x256xf32>
    %cst_25 = arith.constant 1.000000e+00 : f32
    %51 = vector.broadcast %cst_25 : f32 to vector<8x256xf32>
    %52 = arith.addf %51, %50 : vector<8x256xf32>
    %53 = arith.divf %51, %52 : vector<8x256xf32>
    %54 = vector.extract_strided_slice %53 {offsets = [0, 0], sizes = [8, 128], strides = [1, 1]} : vector<8x256xf32> to vector<8x128xf32>
    %55 = vector.extract_strided_slice %53 {offsets = [0, 128], sizes = [8, 128], strides = [1, 1]} : vector<8x256xf32> to vector<8x128xf32>
    %56 = vector.extract_strided_slice %44 {offsets = [0, 256], sizes = [8, 128], strides = [1, 1]} : vector<8x384xf32> to vector<8x128xf32>
    %57 = vector.extract_strided_slice %45 {offsets = [0, 256], sizes = [8, 128], strides = [1, 1]} : vector<8x384xf32> to vector<8x128xf32>
    %58 = arith.addf %57, %15 : vector<8x128xf32>
    %59 = arith.mulf %54, %58 : vector<8x128xf32>
    %60 = arith.addf %56, %59 : vector<8x128xf32>
    %61 = math.tanh %60 : vector<8x128xf32>
    %cst_26 = arith.constant 1.000000e+00 : f32
    %62 = vector.broadcast %cst_26 : f32 to vector<8x128xf32>
    %63 = arith.subf %62, %55 : vector<8x128xf32>
    %64 = arith.mulf %63, %61 : vector<8x128xf32>
    %65 = arith.mulf %55, %41 : vector<8x128xf32>
    %66 = arith.addf %64, %65 : vector<8x128xf32>
    %c2_i32 = arith.constant 2 : i32
    %67 = arith.index_cast %c2_i32 : i32 to index
    %c0_27 = arith.constant 0 : index
    %c0_28 = arith.constant 0 : index
    %68 = vector.load %arg8[%67, %c0_27, %c0_28] : memref<8x8x384xf32, #tpu.memory_space<vmem>>, vector<1x8x384xf32>
    %69 = vector.shape_cast %68 : vector<1x8x384xf32> to vector<8x384xf32>
    %cst_29 = arith.constant dense<0.000000e+00> : vector<8x384xf32>
    %70 = tpu.matmul %66, %12, %cst_29 {dimension_numbers = #tpu.dot_dimension_numbers<[1], [0], [0], [1], [0, 0, 1, 1], [], []>} : vector<8x128xf32>, vector<128x384xf32>, vector<8x384xf32> -> vector<8x384xf32>
    %71 = vector.extract_strided_slice %69 {offsets = [0, 0], sizes = [8, 256], strides = [1, 1]} : vector<8x384xf32> to vector<8x256xf32>
    %72 = vector.extract_strided_slice %70 {offsets = [0, 0], sizes = [8, 256], strides = [1, 1]} : vector<8x384xf32> to vector<8x256xf32>
    %73 = arith.addf %71, %72 : vector<8x256xf32>
    %74 = arith.negf %73 : vector<8x256xf32>
    %75 = math.exp %74 : vector<8x256xf32>
    %cst_30 = arith.constant 1.000000e+00 : f32
    %76 = vector.broadcast %cst_30 : f32 to vector<8x256xf32>
    %77 = arith.addf %76, %75 : vector<8x256xf32>
    %78 = arith.divf %76, %77 : vector<8x256xf32>
    %79 = vector.extract_strided_slice %78 {offsets = [0, 0], sizes = [8, 128], strides = [1, 1]} : vector<8x256xf32> to vector<8x128xf32>
    %80 = vector.extract_strided_slice %78 {offsets = [0, 128], sizes = [8, 128], strides = [1, 1]} : vector<8x256xf32> to vector<8x128xf32>
    %81 = vector.extract_strided_slice %69 {offsets = [0, 256], sizes = [8, 128], strides = [1, 1]} : vector<8x384xf32> to vector<8x128xf32>
    %82 = vector.extract_strided_slice %70 {offsets = [0, 256], sizes = [8, 128], strides = [1, 1]} : vector<8x384xf32> to vector<8x128xf32>
    %83 = arith.addf %82, %15 : vector<8x128xf32>
    %84 = arith.mulf %79, %83 : vector<8x128xf32>
    %85 = arith.addf %81, %84 : vector<8x128xf32>
    %86 = math.tanh %85 : vector<8x128xf32>
    %cst_31 = arith.constant 1.000000e+00 : f32
    %87 = vector.broadcast %cst_31 : f32 to vector<8x128xf32>
    %88 = arith.subf %87, %80 : vector<8x128xf32>
    %89 = arith.mulf %88, %86 : vector<8x128xf32>
    %90 = arith.mulf %80, %66 : vector<8x128xf32>
    %91 = arith.addf %89, %90 : vector<8x128xf32>
    %c3_i32 = arith.constant 3 : i32
    %92 = arith.index_cast %c3_i32 : i32 to index
    %c0_32 = arith.constant 0 : index
    %c0_33 = arith.constant 0 : index
    %93 = vector.load %arg8[%92, %c0_32, %c0_33] : memref<8x8x384xf32, #tpu.memory_space<vmem>>, vector<1x8x384xf32>
    %94 = vector.shape_cast %93 : vector<1x8x384xf32> to vector<8x384xf32>
    %cst_34 = arith.constant dense<0.000000e+00> : vector<8x384xf32>
    %95 = tpu.matmul %91, %12, %cst_34 {dimension_numbers = #tpu.dot_dimension_numbers<[1], [0], [0], [1], [0, 0, 1, 1], [], []>} : vector<8x128xf32>, vector<128x384xf32>, vector<8x384xf32> -> vector<8x384xf32>
    %96 = vector.extract_strided_slice %94 {offsets = [0, 0], sizes = [8, 256], strides = [1, 1]} : vector<8x384xf32> to vector<8x256xf32>
    %97 = vector.extract_strided_slice %95 {offsets = [0, 0], sizes = [8, 256], strides = [1, 1]} : vector<8x384xf32> to vector<8x256xf32>
    %98 = arith.addf %96, %97 : vector<8x256xf32>
    %99 = arith.negf %98 : vector<8x256xf32>
    %100 = math.exp %99 : vector<8x256xf32>
    %cst_35 = arith.constant 1.000000e+00 : f32
    %101 = vector.broadcast %cst_35 : f32 to vector<8x256xf32>
    %102 = arith.addf %101, %100 : vector<8x256xf32>
    %103 = arith.divf %101, %102 : vector<8x256xf32>
    %104 = vector.extract_strided_slice %103 {offsets = [0, 0], sizes = [8, 128], strides = [1, 1]} : vector<8x256xf32> to vector<8x128xf32>
    %105 = vector.extract_strided_slice %103 {offsets = [0, 128], sizes = [8, 128], strides = [1, 1]} : vector<8x256xf32> to vector<8x128xf32>
    %106 = vector.extract_strided_slice %94 {offsets = [0, 256], sizes = [8, 128], strides = [1, 1]} : vector<8x384xf32> to vector<8x128xf32>
    %107 = vector.extract_strided_slice %95 {offsets = [0, 256], sizes = [8, 128], strides = [1, 1]} : vector<8x384xf32> to vector<8x128xf32>
    %108 = arith.addf %107, %15 : vector<8x128xf32>
    %109 = arith.mulf %104, %108 : vector<8x128xf32>
    %110 = arith.addf %106, %109 : vector<8x128xf32>
    %111 = math.tanh %110 : vector<8x128xf32>
    %cst_36 = arith.constant 1.000000e+00 : f32
    %112 = vector.broadcast %cst_36 : f32 to vector<8x128xf32>
    %113 = arith.subf %112, %105 : vector<8x128xf32>
    %114 = arith.mulf %113, %111 : vector<8x128xf32>
    %115 = arith.mulf %105, %91 : vector<8x128xf32>
    %116 = arith.addf %114, %115 : vector<8x128xf32>
    %c4_i32 = arith.constant 4 : i32
    %117 = arith.index_cast %c4_i32 : i32 to index
    %c0_37 = arith.constant 0 : index
    %c0_38 = arith.constant 0 : index
    %118 = vector.load %arg8[%117, %c0_37, %c0_38] : memref<8x8x384xf32, #tpu.memory_space<vmem>>, vector<1x8x384xf32>
    %119 = vector.shape_cast %118 : vector<1x8x384xf32> to vector<8x384xf32>
    %cst_39 = arith.constant dense<0.000000e+00> : vector<8x384xf32>
    %120 = tpu.matmul %116, %12, %cst_39 {dimension_numbers = #tpu.dot_dimension_numbers<[1], [0], [0], [1], [0, 0, 1, 1], [], []>} : vector<8x128xf32>, vector<128x384xf32>, vector<8x384xf32> -> vector<8x384xf32>
    %121 = vector.extract_strided_slice %119 {offsets = [0, 0], sizes = [8, 256], strides = [1, 1]} : vector<8x384xf32> to vector<8x256xf32>
    %122 = vector.extract_strided_slice %120 {offsets = [0, 0], sizes = [8, 256], strides = [1, 1]} : vector<8x384xf32> to vector<8x256xf32>
    %123 = arith.addf %121, %122 : vector<8x256xf32>
    %124 = arith.negf %123 : vector<8x256xf32>
    %125 = math.exp %124 : vector<8x256xf32>
    %cst_40 = arith.constant 1.000000e+00 : f32
    %126 = vector.broadcast %cst_40 : f32 to vector<8x256xf32>
    %127 = arith.addf %126, %125 : vector<8x256xf32>
    %128 = arith.divf %126, %127 : vector<8x256xf32>
    %129 = vector.extract_strided_slice %128 {offsets = [0, 0], sizes = [8, 128], strides = [1, 1]} : vector<8x256xf32> to vector<8x128xf32>
    %130 = vector.extract_strided_slice %128 {offsets = [0, 128], sizes = [8, 128], strides = [1, 1]} : vector<8x256xf32> to vector<8x128xf32>
    %131 = vector.extract_strided_slice %119 {offsets = [0, 256], sizes = [8, 128], strides = [1, 1]} : vector<8x384xf32> to vector<8x128xf32>
    %132 = vector.extract_strided_slice %120 {offsets = [0, 256], sizes = [8, 128], strides = [1, 1]} : vector<8x384xf32> to vector<8x128xf32>
    %133 = arith.addf %132, %15 : vector<8x128xf32>
    %134 = arith.mulf %129, %133 : vector<8x128xf32>
    %135 = arith.addf %131, %134 : vector<8x128xf32>
    %136 = math.tanh %135 : vector<8x128xf32>
    %cst_41 = arith.constant 1.000000e+00 : f32
    %137 = vector.broadcast %cst_41 : f32 to vector<8x128xf32>
    %138 = arith.subf %137, %130 : vector<8x128xf32>
    %139 = arith.mulf %138, %136 : vector<8x128xf32>
    %140 = arith.mulf %130, %116 : vector<8x128xf32>
    %141 = arith.addf %139, %140 : vector<8x128xf32>
    %c5_i32 = arith.constant 5 : i32
    %142 = arith.index_cast %c5_i32 : i32 to index
    %c0_42 = arith.constant 0 : index
    %c0_43 = arith.constant 0 : index
    %143 = vector.load %arg8[%142, %c0_42, %c0_43] : memref<8x8x384xf32, #tpu.memory_space<vmem>>, vector<1x8x384xf32>
    %144 = vector.shape_cast %143 : vector<1x8x384xf32> to vector<8x384xf32>
    %cst_44 = arith.constant dense<0.000000e+00> : vector<8x384xf32>
    %145 = tpu.matmul %141, %12, %cst_44 {dimension_numbers = #tpu.dot_dimension_numbers<[1], [0], [0], [1], [0, 0, 1, 1], [], []>} : vector<8x128xf32>, vector<128x384xf32>, vector<8x384xf32> -> vector<8x384xf32>
    %146 = vector.extract_strided_slice %144 {offsets = [0, 0], sizes = [8, 256], strides = [1, 1]} : vector<8x384xf32> to vector<8x256xf32>
    %147 = vector.extract_strided_slice %145 {offsets = [0, 0], sizes = [8, 256], strides = [1, 1]} : vector<8x384xf32> to vector<8x256xf32>
    %148 = arith.addf %146, %147 : vector<8x256xf32>
    %149 = arith.negf %148 : vector<8x256xf32>
    %150 = math.exp %149 : vector<8x256xf32>
    %cst_45 = arith.constant 1.000000e+00 : f32
    %151 = vector.broadcast %cst_45 : f32 to vector<8x256xf32>
    %152 = arith.addf %151, %150 : vector<8x256xf32>
    %153 = arith.divf %151, %152 : vector<8x256xf32>
    %154 = vector.extract_strided_slice %153 {offsets = [0, 0], sizes = [8, 128], strides = [1, 1]} : vector<8x256xf32> to vector<8x128xf32>
    %155 = vector.extract_strided_slice %153 {offsets = [0, 128], sizes = [8, 128], strides = [1, 1]} : vector<8x256xf32> to vector<8x128xf32>
    %156 = vector.extract_strided_slice %144 {offsets = [0, 256], sizes = [8, 128], strides = [1, 1]} : vector<8x384xf32> to vector<8x128xf32>
    %157 = vector.extract_strided_slice %145 {offsets = [0, 256], sizes = [8, 128], strides = [1, 1]} : vector<8x384xf32> to vector<8x128xf32>
    %158 = arith.addf %157, %15 : vector<8x128xf32>
    %159 = arith.mulf %154, %158 : vector<8x128xf32>
    %160 = arith.addf %156, %159 : vector<8x128xf32>
    %161 = math.tanh %160 : vector<8x128xf32>
    %cst_46 = arith.constant 1.000000e+00 : f32
    %162 = vector.broadcast %cst_46 : f32 to vector<8x128xf32>
    %163 = arith.subf %162, %155 : vector<8x128xf32>
    %164 = arith.mulf %163, %161 : vector<8x128xf32>
    %165 = arith.mulf %155, %141 : vector<8x128xf32>
    %166 = arith.addf %164, %165 : vector<8x128xf32>
    %c6_i32 = arith.constant 6 : i32
    %167 = arith.index_cast %c6_i32 : i32 to index
    %c0_47 = arith.constant 0 : index
    %c0_48 = arith.constant 0 : index
    %168 = vector.load %arg8[%167, %c0_47, %c0_48] : memref<8x8x384xf32, #tpu.memory_space<vmem>>, vector<1x8x384xf32>
    %169 = vector.shape_cast %168 : vector<1x8x384xf32> to vector<8x384xf32>
    %cst_49 = arith.constant dense<0.000000e+00> : vector<8x384xf32>
    %170 = tpu.matmul %166, %12, %cst_49 {dimension_numbers = #tpu.dot_dimension_numbers<[1], [0], [0], [1], [0, 0, 1, 1], [], []>} : vector<8x128xf32>, vector<128x384xf32>, vector<8x384xf32> -> vector<8x384xf32>
    %171 = vector.extract_strided_slice %169 {offsets = [0, 0], sizes = [8, 256], strides = [1, 1]} : vector<8x384xf32> to vector<8x256xf32>
    %172 = vector.extract_strided_slice %170 {offsets = [0, 0], sizes = [8, 256], strides = [1, 1]} : vector<8x384xf32> to vector<8x256xf32>
    %173 = arith.addf %171, %172 : vector<8x256xf32>
    %174 = arith.negf %173 : vector<8x256xf32>
    %175 = math.exp %174 : vector<8x256xf32>
    %cst_50 = arith.constant 1.000000e+00 : f32
    %176 = vector.broadcast %cst_50 : f32 to vector<8x256xf32>
    %177 = arith.addf %176, %175 : vector<8x256xf32>
    %178 = arith.divf %176, %177 : vector<8x256xf32>
    %179 = vector.extract_strided_slice %178 {offsets = [0, 0], sizes = [8, 128], strides = [1, 1]} : vector<8x256xf32> to vector<8x128xf32>
    %180 = vector.extract_strided_slice %178 {offsets = [0, 128], sizes = [8, 128], strides = [1, 1]} : vector<8x256xf32> to vector<8x128xf32>
    %181 = vector.extract_strided_slice %169 {offsets = [0, 256], sizes = [8, 128], strides = [1, 1]} : vector<8x384xf32> to vector<8x128xf32>
    %182 = vector.extract_strided_slice %170 {offsets = [0, 256], sizes = [8, 128], strides = [1, 1]} : vector<8x384xf32> to vector<8x128xf32>
    %183 = arith.addf %182, %15 : vector<8x128xf32>
    %184 = arith.mulf %179, %183 : vector<8x128xf32>
    %185 = arith.addf %181, %184 : vector<8x128xf32>
    %186 = math.tanh %185 : vector<8x128xf32>
    %cst_51 = arith.constant 1.000000e+00 : f32
    %187 = vector.broadcast %cst_51 : f32 to vector<8x128xf32>
    %188 = arith.subf %187, %180 : vector<8x128xf32>
    %189 = arith.mulf %188, %186 : vector<8x128xf32>
    %190 = arith.mulf %180, %166 : vector<8x128xf32>
    %191 = arith.addf %189, %190 : vector<8x128xf32>
    %c7_i32 = arith.constant 7 : i32
    %192 = arith.index_cast %c7_i32 : i32 to index
    %c0_52 = arith.constant 0 : index
    %c0_53 = arith.constant 0 : index
    %193 = vector.load %arg8[%192, %c0_52, %c0_53] : memref<8x8x384xf32, #tpu.memory_space<vmem>>, vector<1x8x384xf32>
    %194 = vector.shape_cast %193 : vector<1x8x384xf32> to vector<8x384xf32>
    %cst_54 = arith.constant dense<0.000000e+00> : vector<8x384xf32>
    %195 = tpu.matmul %191, %12, %cst_54 {dimension_numbers = #tpu.dot_dimension_numbers<[1], [0], [0], [1], [0, 0, 1, 1], [], []>} : vector<8x128xf32>, vector<128x384xf32>, vector<8x384xf32> -> vector<8x384xf32>
    %196 = vector.extract_strided_slice %194 {offsets = [0, 0], sizes = [8, 256], strides = [1, 1]} : vector<8x384xf32> to vector<8x256xf32>
    %197 = vector.extract_strided_slice %195 {offsets = [0, 0], sizes = [8, 256], strides = [1, 1]} : vector<8x384xf32> to vector<8x256xf32>
    %198 = arith.addf %196, %197 : vector<8x256xf32>
    %199 = arith.negf %198 : vector<8x256xf32>
    %200 = math.exp %199 : vector<8x256xf32>
    %cst_55 = arith.constant 1.000000e+00 : f32
    %201 = vector.broadcast %cst_55 : f32 to vector<8x256xf32>
    %202 = arith.addf %201, %200 : vector<8x256xf32>
    %203 = arith.divf %201, %202 : vector<8x256xf32>
    %204 = vector.extract_strided_slice %203 {offsets = [0, 0], sizes = [8, 128], strides = [1, 1]} : vector<8x256xf32> to vector<8x128xf32>
    %205 = vector.extract_strided_slice %203 {offsets = [0, 128], sizes = [8, 128], strides = [1, 1]} : vector<8x256xf32> to vector<8x128xf32>
    %206 = vector.extract_strided_slice %194 {offsets = [0, 256], sizes = [8, 128], strides = [1, 1]} : vector<8x384xf32> to vector<8x128xf32>
    %207 = vector.extract_strided_slice %195 {offsets = [0, 256], sizes = [8, 128], strides = [1, 1]} : vector<8x384xf32> to vector<8x128xf32>
    %208 = arith.addf %207, %15 : vector<8x128xf32>
    %209 = arith.mulf %204, %208 : vector<8x128xf32>
    %210 = arith.addf %206, %209 : vector<8x128xf32>
    %211 = math.tanh %210 : vector<8x128xf32>
    %cst_56 = arith.constant 1.000000e+00 : f32
    %212 = vector.broadcast %cst_56 : f32 to vector<8x128xf32>
    %213 = arith.subf %212, %205 : vector<8x128xf32>
    %214 = arith.mulf %213, %211 : vector<8x128xf32>
    %215 = arith.mulf %205, %191 : vector<8x128xf32>
    %216 = arith.addf %214, %215 : vector<8x128xf32>
    %c8_i32 = arith.constant 8 : i32
    %c0_57 = arith.constant 0 : index
    %c0_58 = arith.constant 0 : index
    %217 = vector.load %arg9[%c0_57, %c0_58] : memref<8x128xf32, #tpu.memory_space<vmem>>, vector<8x128xf32>
    tpu.vector_store %arg9[%c0_57, %c0_58], %216 {strides = array<i32>} : memref<8x128xf32, #tpu.memory_space<vmem>>, vector<8x128xf32>,
    %c0_i32_59 = arith.constant 0 : i32
    %218 = arith.cmpi eq, %arg1, %c0_i32_59 : i32
    %219 = arith.extui %218 : i1 to i32
    %c0_i32_60 = arith.constant 0 : i32
    %220 = arith.cmpi ne, %219, %c0_i32_60 : i32
    scf.if %220 {
      %c0_61 = arith.constant 0 : index
      %c0_62 = arith.constant 0 : index
      %221 = vector.load %arg9[%c0_61, %c0_62] : memref<8x128xf32, #tpu.memory_space<vmem>>, vector<8x128xf32>
      %c0_63 = arith.constant 0 : index
      %c0_64 = arith.constant 0 : index
      %222 = vector.load %arg7[%c0_63, %c0_64] : memref<8x128xf32, #tpu.memory_space<vmem>>, vector<8x128xf32>
      tpu.vector_store %arg7[%c0_63, %c0_64], %221 {strides = array<i32>} : memref<8x128xf32, #tpu.memory_space<vmem>>, vector<8x128xf32>,
    } else {
    }
    return
  }
  func.func @transform_0(%arg0: i32, %arg1: i32) -> (i32, i32, i32) {
    %c0_i32 = arith.constant 0 : i32
    %c0_i32_0 = arith.constant 0 : i32
    return %arg1, %arg0, %c0_i32 : i32, i32, i32
  }
  func.func @transform_1(%arg0: i32, %arg1: i32) -> (i32, i32) {
    %c0_i32 = arith.constant 0 : i32
    %c0_i32_0 = arith.constant 0 : i32
    %c0_i32_1 = arith.constant 0 : i32
    return %c0_i32, %c0_i32_0 : i32, i32
  }
  func.func @transform_2(%arg0: i32, %arg1: i32) -> (i32, i32) {
    %c0_i32 = arith.constant 0 : i32
    %c0_i32_0 = arith.constant 0 : i32
    %c0_i32_1 = arith.constant 0 : i32
    return %c0_i32, %c0_i32_0 : i32, i32
  }
  func.func @transform_3(%arg0: i32, %arg1: i32) -> (i32, i32) {
    %c0_i32 = arith.constant 0 : i32
    %c0_i32_0 = arith.constant 0 : i32
    %c0_i32_1 = arith.constant 0 : i32
    return %c0_i32, %c0_i32_0 : i32, i32
  }
  func.func @transform_4(%arg0: i32, %arg1: i32) -> (i32, i32) {
    %c0_i32 = arith.constant 0 : i32
    %c0_i32_0 = arith.constant 0 : i32
    %c0_i32_1 = arith.constant 0 : i32
    return %c0_i32, %c0_i32_0 : i32, i32
  }
  func.func @transform_5(%arg0: i32, %arg1: i32) -> (i32, i32) {
    %c0_i32 = arith.constant 0 : i32
    %c0_i32_0 = arith.constant 0 : i32
    return %arg0, %c0_i32 : i32, i32
  }
}

</mosaic_0001>

<llo_original>
// kernel: tpu_custom_call.1
$region0: #{tpu_custom_call.1}
  #allocation0 [shape = 'u32[]', space=smem, size = 0x4, offset = 0x4, fixed_abs, tag = 'smem constant byte address 0x4 - core index']
  #allocation1 [shape = 'u32[72,128]{1,0:T(1,128)}', space=vmem, size = 0x9000, scoped, tag = 'internal scratch']
  #allocation2 [shape = 'f32[8,8,384]{2,1,0:T(8,128)}', space=vmem, size = 0x18000, scoped, tag = 'scratch operand']
  #allocation3 [shape = 'f32[8,128]{1,0:T(8,128)}', space=vmem, size = 0x1000, scoped, tag = 'scratch operand']
  %s0 = inlined_call_operand.hbm [shape: f32[8,8,32], index: 0, kind: input, shape index: {}]
  %s1 = inlined_call_operand.hbm [shape: f32[32,384], index: 1, kind: input, shape index: {}]
  %s2 = inlined_call_operand.hbm [shape: f32[128,384], index: 2, kind: input, shape index: {}]
  %s3 = inlined_call_operand.hbm [shape: f32[1,384], index: 3, kind: input, shape index: {}]
  %s4 = inlined_call_operand.vmem [shape: f32[1,128], index: 4, kind: input, shape index: {}]
  %s5 = inlined_call_operand.hbm [shape: f32[8,128], index: 5, kind: output, shape index: {}]
  %s6 = sld [smem:[#allocation0]]
  $region54: #{tpu_custom_call.1} parent=0
    _
  %s8 = ssub.s32 1, %s6
  %s9 = scalar_select 0, %s8, %s6
  $region1: #{tpu_custom_call.1} parent=0
    #allocation4 [shape = 'u8[32768]{0}', space=vmem, size = 0x8000, scoped, tag = 'input window, operand 0, single buffered']
    #allocation5 [shape = 's32[1]{0}', space=sflag, size = 0x4, scoped, tag = 'scoped memory for tpu_custom_call.1']
    #allocation6 [shape = 's32[1]{0}', space=sflag, size = 0x4, scoped, tag = 'scoped memory for tpu_custom_call.1']
    #allocation7 [shape = 'u8[49152]{0}', space=vmem, size = 0xc000, scoped, tag = 'input window, operand 1, single buffered']
    #allocation8 [shape = 's32[1]{0}', space=sflag, size = 0x4, scoped, tag = 'scoped memory for tpu_custom_call.1']
    #allocation9 [shape = 'u8[196608]{0}', space=vmem, size = 0x30000, scoped, tag = 'input window, operand 2, single buffered']
    #allocation10 [shape = 'u8[1536]{0}', space=vmem, size = 0x800, scoped, tag = 'input window, operand 3, single buffered']
    #allocation11 [shape = 's32[1]{0}', space=sflag, size = 0x4, scoped, tag = 'scoped memory for tpu_custom_call.1']
    #allocation12 [shape = 'u8[4096]{0}', space=vmem, size = 0x1000, scoped, tag = 'output window, operand 0, single buffered']
    %10 = vsyncpa [#allocation5], 0
    %11 = vsyncpa [#allocation8], 0
    %12 = vsyncpa [#allocation11], 0
    %13 = vsyncpa [#allocation6], 0
    // Predicated region
    $region2: #{tpu_custom_call.1} parent=1 // pred_check
      _
    $region3: #{tpu_custom_call.1} parent=1 // pred_check_branch
      %15 = sbr.rel (0) target = $region5
    $region4: #{tpu_custom_call.1} parent=1 // pred_region
      %17 = vsyncadd [#allocation5], 0
      %s18 = sshll.u32 %s0, 4
      %s19 = int_to_ptr.hbm [resolvable:$true] %s18
      %s20 = sshll.u32 [#allocation4], 4
      %s21 = int_to_ptr.vmem [resolvable:$true] %s20
      %26 = dma.hbm_to_vmem [thread:$0]  %s19, 1024, %s21, [#allocation5], 128, 128, 8
    $region5: #{tpu_custom_call.1} parent=1 // pred_fallthru
      _
    // Predicated region
    $region6: #{tpu_custom_call.1} parent=1 // pred_check
      _
    $region7: #{tpu_custom_call.1} parent=1 // pred_check_branch
      %28 = sbr.rel (0) target = $region9
    $region8: #{tpu_custom_call.1} parent=1 // pred_region
      %30 = vsyncadd [#allocation8], 0
      %s31 = sshll.u32 %s1, 4
      %s32 = int_to_ptr.hbm [resolvable:$true] %s31
      %s33 = sshll.u32 [#allocation7], 4
      %s34 = int_to_ptr.vmem [resolvable:$true] %s33
      %39 = dma.hbm_to_vmem [thread:$0]  %s32, 1536, %s34, [#allocation8], 384, 384, 24
    $region9: #{tpu_custom_call.1} parent=1 // pred_fallthru
      _
    // Predicated region
    $region10: #{tpu_custom_call.1} parent=1 // pred_check
      _
    $region11: #{tpu_custom_call.1} parent=1 // pred_check_branch
      %41 = sbr.rel (0) target = $region13
    $region12: #{tpu_custom_call.1} parent=1 // pred_region
      %43 = vsyncadd [#allocation8], 0
      %s44 = sshll.u32 %s2, 4
      %s45 = int_to_ptr.hbm [resolvable:$true] %s44
      %s46 = sshll.u32 [#allocation9], 4
      %s47 = int_to_ptr.vmem [resolvable:$true] %s46
      %52 = dma.hbm_to_vmem [thread:$0]  %s45, 6144, %s47, [#allocation8], 384, 384, 24
    $region13: #{tpu_custom_call.1} parent=1 // pred_fallthru
      _
    // Predicated region
    $region14: #{tpu_custom_call.1} parent=1 // pred_check
      _
    $region15: #{tpu_custom_call.1} parent=1 // pred_check_branch
      %54 = sbr.rel (0) target = $region17
    $region16: #{tpu_custom_call.1} parent=1 // pred_region
      %56 = vsyncadd [#allocation11], 0
      %s58 = sshll.u32 %s3, 4
      %s59 = int_to_ptr.hbm [resolvable:$true] %s58
      %s60 = sshll.u32 [#allocation10], 4
      %s61 = int_to_ptr.vmem [resolvable:$true] %s60
      %63 = dma.hbm_to_vmem [thread:$0]  %s59, 48, %s61, [#allocation11]
    $region17: #{tpu_custom_call.1} parent=1 // pred_fallthru
      _
    // Predicated region
    $region18: #{tpu_custom_call.1} parent=1 // pred_check
      _
    $region19: #{tpu_custom_call.1} parent=1 // pred_check_branch
      %65 = sbr.rel (0) target = $region21
    $region20: #{tpu_custom_call.1} parent=1 // pred_region
      _
    $region21: #{tpu_custom_call.1} parent=1 // pred_fallthru
      _
    // Predicated region
    $region22: #{tpu_custom_call.1} parent=1 // pred_check
      _
    $region23: #{tpu_custom_call.1} parent=1 // pred_check_branch
      %67 = sbr.rel (0) target = $region25
    $region24: #{tpu_custom_call.1} parent=1 // pred_region
      %69 = dma.done [#allocation5], 1024
    $region25: #{tpu_custom_call.1} parent=1 // pred_fallthru
      _
    // Predicated region
    $region26: #{tpu_custom_call.1} parent=1 // pred_check
      _
    $region27: #{tpu_custom_call.1} parent=1 // pred_check_branch
      %71 = sbr.rel (0) target = $region29
    $region28: #{tpu_custom_call.1} parent=1 // pred_region
      %73 = dma.done [#allocation8], 1536
    $region29: #{tpu_custom_call.1} parent=1 // pred_fallthru
      _
    // Predicated region
    $region30: #{tpu_custom_call.1} parent=1 // pred_check
      _
    $region31: #{tpu_custom_call.1} parent=1 // pred_check_branch
      %75 = sbr.rel (0) target = $region33
    $region32: #{tpu_custom_call.1} parent=1 // pred_region
      %77 = dma.done [#allocation8], 6144
    $region33: #{tpu_custom_call.1} parent=1 // pred_fallthru
      _
    // Predicated region
    $region34: #{tpu_custom_call.1} parent=1 // pred_check
      _
    $region35: #{tpu_custom_call.1} parent=1 // pred_check_branch
      %79 = sbr.rel (0) target = $region37
    $region36: #{tpu_custom_call.1} parent=1 // pred_region
      %81 = dma.done [#allocation11], 48
    $region37: #{tpu_custom_call.1} parent=1 // pred_fallthru
      _
    %p82 = scmp.eq.s32.totalorder 0, 0
    // Predicated region
    $region38: #{tpu_custom_call.1} parent=1 // pred_check
      %p83 = pneg %p82
    $region39: #{tpu_custom_call.1} parent=1 // pred_check_branch
      %85 = sbr.rel (%p83) target = $region41
    $region40: #{tpu_custom_call.1} parent=1 // pred_region
      %86 = vst [vmem:[#allocation3] sm:$0xff] 0.0
    $region41: #{tpu_custom_call.1} parent=1 // pred_fallthru
      _
    %v87 = vld [vmem:[#allocation7] sm:$0xff]
    %v88 = vld [vmem:[#allocation7 + $0x8] sm:$0xff]
    %v89 = vld [vmem:[#allocation7 + $0x10] sm:$0xff]
    %v90 = vld [vmem:[#allocation7 + $0x18] sm:$0xff]
    %v91 = vld [vmem:[#allocation7 + $0x20] sm:$0xff]
    %v92 = vld [vmem:[#allocation7 + $0x28] sm:$0xff]
    %v93 = vld [vmem:[#allocation7 + $0x30] sm:$0xff]
    %v94 = vld [vmem:[#allocation7 + $0x38] sm:$0xff]
    %v95 = vld [vmem:[#allocation7 + $0x40] sm:$0xff]
    %v96 = vld [vmem:[#allocation7 + $0x48] sm:$0xff]
    %v97 = vld [vmem:[#allocation7 + $0x50] sm:$0xff]
    %v98 = vld [vmem:[#allocation7 + $0x58] sm:$0xff]
    %v99 = vld [vmem:[#allocation10] sm:$0x7]
    %v100 = vld [vmem:[#allocation4] sm:$0xff]
    %v101 = vld [vmem:[#allocation4 + $0x8] sm:$0xff]
    %v102 = vld [vmem:[#allocation4 + $0x10] sm:$0xff]
    %v103 = vld [vmem:[#allocation4 + $0x18] sm:$0xff]
    %v104 = vld [vmem:[#allocation4 + $0x20] sm:$0xff]
    %v105 = vld [vmem:[#allocation4 + $0x28] sm:$0xff]
    %v106 = vld [vmem:[#allocation4 + $0x30] sm:$0xff]
    %v107 = vld [vmem:[#allocation4 + $0x38] sm:$0xff]
    %v109 = vperm.slane %v99, 0
    %v110 = vperm.slane %v99, 1
    %v111 = vperm.slane %v99, 2
    %vm115 = vcmask 261120
    %v117 = vsel %vm115, %v100, 0
    %v120 = vsel %vm115, %v101, 0
    %v123 = vsel %vm115, %v102, 0
    %v126 = vsel %vm115, %v103, 0
    %v129 = vsel %vm115, %v104, 0
    %v132 = vsel %vm115, %v105, 0
    %v135 = vsel %vm115, %v106, 0
    %v138 = vsel %vm115, %v107, 0
    %140 = vmatpush.msra.mxu0 0.0
    %141 = vmatpush.msra.mxu0 0.0
    %142 = vmatpush.msra.mxu0 0.0
    %143 = vmatpush.msra.mxu0 0.0
    %144 = vmatpush.msra.mxu0 0.0
    %145 = vmatpush.msra.mxu0 0.0
    %146 = vmatpush.msra.mxu0 0.0
    %147 = vmatpush.msra.mxu0 0.0
    %148 = vmatpush.msra.mxu0 0.0
    %149 = vmatpush.msra.mxu0 0.0
    %150 = vmatpush.msra.mxu0 0.0
    %151 = vmatpush.msra.mxu0 0.0
    %152 = vmatpush.msra.mxu0 %v96
    %153 = vmatpush.msra.mxu0 %v93
    %154 = vmatpush.msra.mxu0 %v90
    %155 = vmatpush.msra.mxu0 %v87
    %156 = vmatmul.f32.gmra.mxu0 %v117
    %v157 = vpop.f32.mrf.mxu0
    %v158 = vadd.f32 %v109, %v157
    %159 = vmatmul.f32.gmra.mxu0 %v120
    %v160 = vpop.f32.mrf.mxu0
    %v161 = vadd.f32 %v109, %v160
    %162 = vmatmul.f32.gmra.mxu0 %v123
    %v163 = vpop.f32.mrf.mxu0
    %v164 = vadd.f32 %v109, %v163
    %165 = vmatmul.f32.gmra.mxu0 %v126
    %v166 = vpop.f32.mrf.mxu0
    %v167 = vadd.f32 %v109, %v166
    %168 = vmatmul.f32.gmra.mxu0 %v129
    %v169 = vpop.f32.mrf.mxu0
    %v170 = vadd.f32 %v109, %v169
    %171 = vmatmul.f32.gmra.mxu0 %v132
    %v172 = vpop.f32.mrf.mxu0
    %v173 = vadd.f32 %v109, %v172
    %174 = vmatmul.f32.gmra.mxu0 %v135
    %v175 = vpop.f32.mrf.mxu0
    %v176 = vadd.f32 %v109, %v175
    %177 = vmatmul.f32.gmra.mxu0 %v138
    %v178 = vpop.f32.mrf.mxu0
    %v179 = vadd.f32 %v109, %v178
    %180 = vdwg.mxu0
    %181 = vmatpush.msra.mxu0 0.0
    %182 = vmatpush.msra.mxu0 0.0
    %183 = vmatpush.msra.mxu0 0.0
    %184 = vmatpush.msra.mxu0 0.0
    %185 = vmatpush.msra.mxu0 0.0
    %186 = vmatpush.msra.mxu0 0.0
    %187 = vmatpush.msra.mxu0 0.0
    %188 = vmatpush.msra.mxu0 0.0
    %189 = vmatpush.msra.mxu0 0.0
    %190 = vmatpush.msra.mxu0 0.0
    %191 = vmatpush.msra.mxu0 0.0
    %192 = vmatpush.msra.mxu0 0.0
    %193 = vmatpush.msra.mxu0 %v97
    %194 = vmatpush.msra.mxu0 %v94
    %195 = vmatpush.msra.mxu0 %v91
    %196 = vmatpush.msra.mxu0 %v88
    %197 = vmatmul.f32.gmra.mxu0 %v117
    %v198 = vpop.f32.mrf.mxu0
    %v199 = vadd.f32 %v110, %v198
    %200 = vmatmul.f32.gmra.mxu0 %v120
    %v201 = vpop.f32.mrf.mxu0
    %v202 = vadd.f32 %v110, %v201
    %203 = vmatmul.f32.gmra.mxu0 %v123
    %v204 = vpop.f32.mrf.mxu0
    %v205 = vadd.f32 %v110, %v204
    %206 = vmatmul.f32.gmra.mxu0 %v126
    %v207 = vpop.f32.mrf.mxu0
    %v208 = vadd.f32 %v110, %v207
    %209 = vmatmul.f32.gmra.mxu0 %v129
    %v210 = vpop.f32.mrf.mxu0
    %v211 = vadd.f32 %v110, %v210
    %212 = vmatmul.f32.gmra.mxu0 %v132
    %v213 = vpop.f32.mrf.mxu0
    %v214 = vadd.f32 %v110, %v213
    %215 = vmatmul.f32.gmra.mxu0 %v135
    %v216 = vpop.f32.mrf.mxu0
    %v217 = vadd.f32 %v110, %v216
    %218 = vmatmul.f32.gmra.mxu0 %v138
    %v219 = vpop.f32.mrf.mxu0
    %v220 = vadd.f32 %v110, %v219
    %221 = vdwg.mxu0
    %222 = vmatpush.msra.mxu0 0.0
    %223 = vmatpush.msra.mxu0 0.0
    %224 = vmatpush.msra.mxu0 0.0
    %225 = vmatpush.msra.mxu0 0.0
    %226 = vmatpush.msra.mxu0 0.0
    %227 = vmatpush.msra.mxu0 0.0
    %228 = vmatpush.msra.mxu0 0.0
    %229 = vmatpush.msra.mxu0 0.0
    %230 = vmatpush.msra.mxu0 0.0
    %231 = vmatpush.msra.mxu0 0.0
    %232 = vmatpush.msra.mxu0 0.0
    %233 = vmatpush.msra.mxu0 0.0
    %234 = vmatpush.msra.mxu0 %v98
    %235 = vmatpush.msra.mxu0 %v95
    %236 = vmatpush.msra.mxu0 %v92
    %237 = vmatpush.msra.mxu0 %v89
    %238 = vmatmul.f32.gmra.mxu0 %v117
    %v239 = vpop.f32.mrf.mxu0
    %v240 = vadd.f32 %v111, %v239
    %241 = vmatmul.f32.gmra.mxu0 %v120
    %v242 = vpop.f32.mrf.mxu0
    %v243 = vadd.f32 %v111, %v242
    %244 = vmatmul.f32.gmra.mxu0 %v123
    %v245 = vpop.f32.mrf.mxu0
    %v246 = vadd.f32 %v111, %v245
    %247 = vmatmul.f32.gmra.mxu0 %v126
    %v248 = vpop.f32.mrf.mxu0
    %v249 = vadd.f32 %v111, %v248
    %250 = vmatmul.f32.gmra.mxu0 %v129
    %v251 = vpop.f32.mrf.mxu0
    %v252 = vadd.f32 %v111, %v251
    %253 = vmatmul.f32.gmra.mxu0 %v132
    %v254 = vpop.f32.mrf.mxu0
    %v255 = vadd.f32 %v111, %v254
    %256 = vmatmul.f32.gmra.mxu0 %v135
    %v257 = vpop.f32.mrf.mxu0
    %v258 = vadd.f32 %v111, %v257
    %259 = vmatmul.f32.gmra.mxu0 %v138
    %v260 = vpop.f32.mrf.mxu0
    %v261 = vadd.f32 %v111, %v260
    %262 = vdwg.mxu0
    %263 = vst [vmem:[#allocation2] sm:$0xff] %v158
    %264 = vst [vmem:[#allocation2 + $0x8] sm:$0xff] %v199
    %265 = vst [vmem:[#allocation2 + $0x10] sm:$0xff] %v240
    %266 = vst [vmem:[#allocation2 + $0x18] sm:$0xff] %v161
    %267 = vst [vmem:[#allocation2 + $0x20] sm:$0xff] %v202
    %268 = vst [vmem:[#allocation2 + $0x28] sm:$0xff] %v243
    %269 = vst [vmem:[#allocation2 + $0x30] sm:$0xff] %v164
    %270 = vst [vmem:[#allocation2 + $0x38] sm:$0xff] %v205
    %271 = vst [vmem:[#allocation2 + $0x40] sm:$0xff] %v246
    %272 = vst [vmem:[#allocation2 + $0x48] sm:$0xff] %v167
    %273 = vst [vmem:[#allocation2 + $0x50] sm:$0xff] %v208
    %274 = vst [vmem:[#allocation2 + $0x58] sm:$0xff] %v249
    %275 = vst [vmem:[#allocation2 + $0x60] sm:$0xff] %v170
    %276 = vst [vmem:[#allocation2 + $0x68] sm:$0xff] %v211
    %277 = vst [vmem:[#allocation2 + $0x70] sm:$0xff] %v252
    %278 = vst [vmem:[#allocation2 + $0x78] sm:$0xff] %v173
    %279 = vst [vmem:[#allocation2 + $0x80] sm:$0xff] %v214
    %280 = vst [vmem:[#allocation2 + $0x88] sm:$0xff] %v255
    %281 = vst [vmem:[#allocation2 + $0x90] sm:$0xff] %v176
    %282 = vst [vmem:[#allocation2 + $0x98] sm:$0xff] %v217
    %283 = vst [vmem:[#allocation2 + $0xa0] sm:$0xff] %v258
    %284 = vst [vmem:[#allocation2 + $0xa8] sm:$0xff] %v179
    %285 = vst [vmem:[#allocation2 + $0xb0] sm:$0xff] %v220
    %286 = vst [vmem:[#allocation2 + $0xb8] sm:$0xff] %v261
    %v287 = vld [vmem:[#allocation9] sm:$0xff]
    %v288 = vld [vmem:[#allocation9 + $0x8] sm:$0xff]
    %v289 = vld [vmem:[#allocation9 + $0x10] sm:$0xff]
    %v290 = vld [vmem:[#allocation9 + $0x18] sm:$0xff]
    %v291 = vld [vmem:[#allocation9 + $0x20] sm:$0xff]
    %v292 = vld [vmem:[#allocation9 + $0x28] sm:$0xff]
    %v293 = vld [vmem:[#allocation9 + $0x30] sm:$0xff]
    %v294 = vld [vmem:[#allocation9 + $0x38] sm:$0xff]
    %v295 = vld [vmem:[#allocation9 + $0x40] sm:$0xff]
    %v296 = vld [vmem:[#allocation9 + $0x48] sm:$0xff]
    %v297 = vld [vmem:[#allocation9 + $0x50] sm:$0xff]
    %v298 = vld [vmem:[#allocation9 + $0x58] sm:$0xff]
    %v299 = vld [vmem:[#allocation9 + $0x60] sm:$0xff]
    %v300 = vld [vmem:[#allocation9 + $0x68] sm:$0xff]
    %v301 = vld [vmem:[#allocation9 + $0x70] sm:$0xff]
    %v302 = vld [vmem:[#allocation9 + $0x78] sm:$0xff]
    %v303 = vld [vmem:[#allocation9 + $0x80] sm:$0xff]
    %v304 = vld [vmem:[#allocation9 + $0x88] sm:$0xff]
    %v305 = vld [vmem:[#allocation9 + $0x90] sm:$0xff]
    %v306 = vld [vmem:[#allocation9 + $0x98] sm:$0xff]
    %v307 = vld [vmem:[#allocation9 + $0xa0] sm:$0xff]
    %v308 = vld [vmem:[#allocation9 + $0xa8] sm:$0xff]
    %v309 = vld [vmem:[#allocation9 + $0xb0] sm:$0xff]
    %v310 = vld [vmem:[#allocation9 + $0xb8] sm:$0xff]
    %v311 = vld [vmem:[#allocation9 + $0xc0] sm:$0xff]
    %v312 = vld [vmem:[#allocation9 + $0xc8] sm:$0xff]
    %v313 = vld [vmem:[#allocation9 + $0xd0] sm:$0xff]
    %v314 = vld [vmem:[#allocation9 + $0xd8] sm:$0xff]
    %v315 = vld [vmem:[#allocation9 + $0xe0] sm:$0xff]
    %v316 = vld [vmem:[#allocation9 + $0xe8] sm:$0xff]
    %v317 = vld [vmem:[#allocation9 + $0xf0] sm:$0xff]
    %v318 = vld [vmem:[#allocation9 + $0xf8] sm:$0xff]
    %v319 = vld [vmem:[#allocation9 + $0x100] sm:$0xff]
    %v320 = vld [vmem:[#allocation9 + $0x108] sm:$0xff]
    %v321 = vld [vmem:[#allocation9 + $0x110] sm:$0xff]
    %v322 = vld [vmem:[#allocation9 + $0x118] sm:$0xff]
    %v323 = vld [vmem:[#allocation9 + $0x120] sm:$0xff]
    %v324 = vld [vmem:[#allocation9 + $0x128] sm:$0xff]
    %v325 = vld [vmem:[#allocation9 + $0x130] sm:$0xff]
    %v326 = vld [vmem:[#allocation9 + $0x138] sm:$0xff]
    %v327 = vld [vmem:[#allocation9 + $0x140] sm:$0xff]
    %v328 = vld [vmem:[#allocation9 + $0x148] sm:$0xff]
    %v329 = vld [vmem:[#allocation9 + $0x150] sm:$0xff]
    %v330 = vld [vmem:[#allocation9 + $0x158] sm:$0xff]
    %v331 = vld [vmem:[#allocation9 + $0x160] sm:$0xff]
    %v332 = vld [vmem:[#allocation9 + $0x168] sm:$0xff]
    %v333 = vld [vmem:[#allocation9 + $0x170] sm:$0xff]
    %v334 = vld [vmem:[#allocation9 + $0x178] sm:$0xff]
    %v335 = vld [vmem:[%s4] sm:$0x1]
    %v337 = vperm.slane %v335, 0
    %v339 = vld [vmem:[#allocation3] sm:$0xff]
    %v340 = vld [vmem:[#allocation2] sm:$0xff]
    %v341 = vld [vmem:[#allocation2 + $0x8] sm:$0xff]
    %v342 = vld [vmem:[#allocation2 + $0x10] sm:$0xff]
    %343 = vmatpush.msra.mxu0 %v332
    %344 = vmatpush.msra.mxu0 %v329
    %345 = vmatpush.msra.mxu0 %v326
    %346 = vmatpush.msra.mxu0 %v323
    %347 = vmatpush.msra.mxu0 %v320
    %348 = vmatpush.msra.mxu0 %v317
    %349 = vmatpush.msra.mxu0 %v314
    %350 = vmatpush.msra.mxu0 %v311
    %351 = vmatpush.msra.mxu0 %v308
    %352 = vmatpush.msra.mxu0 %v305
    %353 = vmatpush.msra.mxu0 %v302
    %354 = vmatpush.msra.mxu0 %v299
    %355 = vmatpush.msra.mxu0 %v296
    %356 = vmatpush.msra.mxu0 %v293
    %357 = vmatpush.msra.mxu0 %v290
    %358 = vmatpush.msra.mxu0 %v287
    %359 = vmatmul.f32.gmra.mxu0 %v339
    %v360 = vpop.f32.mrf.mxu0
    %v361 = vadd.f32 0.0, %v360
    %362 = vdwg.mxu0
    %363 = vmatpush.msra.mxu0 %v333
    %364 = vmatpush.msra.mxu0 %v330
    %365 = vmatpush.msra.mxu0 %v327
    %366 = vmatpush.msra.mxu0 %v324
    %367 = vmatpush.msra.mxu0 %v321
    %368 = vmatpush.msra.mxu0 %v318
    %369 = vmatpush.msra.mxu0 %v315
    %370 = vmatpush.msra.mxu0 %v312
    %371 = vmatpush.msra.mxu0 %v309
    %372 = vmatpush.msra.mxu0 %v306
    %373 = vmatpush.msra.mxu0 %v303
    %374 = vmatpush.msra.mxu0 %v300
    %375 = vmatpush.msra.mxu0 %v297
    %376 = vmatpush.msra.mxu0 %v294
    %377 = vmatpush.msra.mxu0 %v291
    %378 = vmatpush.msra.mxu0 %v288
    %379 = vmatmul.f32.gmra.mxu0 %v339
    %v380 = vpop.f32.mrf.mxu0
    %v381 = vadd.f32 0.0, %v380
    %382 = vdwg.mxu0
    %383 = vmatpush.msra.mxu0 %v334
    %384 = vmatpush.msra.mxu0 %v331
    %385 = vmatpush.msra.mxu0 %v328
    %386 = vmatpush.msra.mxu0 %v325
    %387 = vmatpush.msra.mxu0 %v322
    %388 = vmatpush.msra.mxu0 %v319
    %389 = vmatpush.msra.mxu0 %v316
    %390 = vmatpush.msra.mxu0 %v313
    %391 = vmatpush.msra.mxu0 %v310
    %392 = vmatpush.msra.mxu0 %v307
    %393 = vmatpush.msra.mxu0 %v304
    %394 = vmatpush.msra.mxu0 %v301
    %395 = vmatpush.msra.mxu0 %v298
    %396 = vmatpush.msra.mxu0 %v295
    %397 = vmatpush.msra.mxu0 %v292
    %398 = vmatpush.msra.mxu0 %v289
    %399 = vmatmul.f32.gmra.mxu0 %v339
    %v400 = vpop.f32.mrf.mxu0
    %v401 = vadd.f32 0.0, %v400
    %402 = vdwg.mxu0
    %v403 = vadd.f32 %v340, %v361
    %v404 = vadd.f32 %v341, %v381
    %v405 = vxor.u32 %v403, 2147483648
    %v406 = vxor.u32 %v404, 2147483648
    %v407 = vmul.f32 %v405, 1.442695
    %v408 = vpow.pop %v407
    %v409 = vmul.f32 %v406, 1.442695
    %v410 = vpow.pop %v409
    %v411 = vadd.f32 %v408, 1.0
    %v412 = vadd.f32 %v410, 1.0
    %v413 = vrcp.pop %v411
    %v414 = vmul.f32 %v411, %v413
    %v415 = vsub.f32 1.0, %v414
    %v416 = vmul.f32 %v413, %v415
    %v417 = vadd.f32 %v413, %v416
    %vm418 = vweird.f32 %v411
    %vm419 = vweird.f32 %v413
    %vm420 = vmor %vm418, %vm419
    %v421 = vsel %vm420, %v413, %v417
    %v422 = vand.u32 2147483647, %v411
    %vm423 = vcmp.eq.f32.partialorder %v422, 8.507059e+37
    %v424 = vand.u32 %v411, 2147483648
    %v425 = vor.u32 1.1754944e-38, %v424
    %v426 = vsel %vm423, %v425, %v421
    %v427 = vmul.f32 1.0, %v426
    %v428 = vrcp.pop %v412
    %v429 = vmul.f32 %v412, %v428
    %v430 = vsub.f32 1.0, %v429
    %v431 = vmul.f32 %v428, %v430
    %v432 = vadd.f32 %v428, %v431
    %vm433 = vweird.f32 %v412
    %vm434 = vweird.f32 %v428
    %vm435 = vmor %vm433, %vm434
    %v436 = vsel %vm435, %v428, %v432
    %v437 = vand.u32 2147483647, %v412
    %vm438 = vcmp.eq.f32.partialorder %v437, 8.507059e+37
    %v439 = vand.u32 %v412, 2147483648
    %v440 = vor.u32 1.1754944e-38, %v439
    %v441 = vsel %vm438, %v440, %v436
    %v442 = vmul.f32 1.0, %v441
    %v443 = vadd.f32 %v401, %v337
    %v444 = vmul.f32 %v427, %v443
    %v445 = vadd.f32 %v342, %v444
    %v446 = vtanh.pop %v445
    %v447 = vsub.f32 1.0, %v442
    %v448 = vmul.f32 %v447, %v446
    %v449 = vmul.f32 %v442, %v339
    %v450 = vadd.f32 %v448, %v449
    %s451 = scalar_lea.vmem [#allocation2], 24
    %v452 = vld [vmem:[%s451] sm:$0xff]
    %v453 = vld [vmem:[%s451 + $0x8] sm:$0xff]
    %v454 = vld [vmem:[%s451 + $0x10] sm:$0xff]
    %455 = vmatpush.msra.mxu0 %v332
    %456 = vmatpush.msra.mxu0 %v329
    %457 = vmatpush.msra.mxu0 %v326
    %458 = vmatpush.msra.mxu0 %v323
    %459 = vmatpush.msra.mxu0 %v320
    %460 = vmatpush.msra.mxu0 %v317
    %461 = vmatpush.msra.mxu0 %v314
    %462 = vmatpush.msra.mxu0 %v311
    %463 = vmatpush.msra.mxu0 %v308
    %464 = vmatpush.msra.mxu0 %v305
    %465 = vmatpush.msra.mxu0 %v302
    %466 = vmatpush.msra.mxu0 %v299
    %467 = vmatpush.msra.mxu0 %v296
    %468 = vmatpush.msra.mxu0 %v293
    %469 = vmatpush.msra.mxu0 %v290
    %470 = vmatpush.msra.mxu0 %v287
    %471 = vmatmul.f32.gmra.mxu0 %v450
    %v472 = vpop.f32.mrf.mxu0
    %v473 = vadd.f32 0.0, %v472
    %474 = vdwg.mxu0
    %475 = vmatpush.msra.mxu0 %v333
    %476 = vmatpush.msra.mxu0 %v330
    %477 = vmatpush.msra.mxu0 %v327
    %478 = vmatpush.msra.mxu0 %v324
    %479 = vmatpush.msra.mxu0 %v321
    %480 = vmatpush.msra.mxu0 %v318
    %481 = vmatpush.msra.mxu0 %v315
    %482 = vmatpush.msra.mxu0 %v312
    %483 = vmatpush.msra.mxu0 %v309
    %484 = vmatpush.msra.mxu0 %v306
    %485 = vmatpush.msra.mxu0 %v303
    %486 = vmatpush.msra.mxu0 %v300
    %487 = vmatpush.msra.mxu0 %v297
    %488 = vmatpush.msra.mxu0 %v294
    %489 = vmatpush.msra.mxu0 %v291
    %490 = vmatpush.msra.mxu0 %v288
    %491 = vmatmul.f32.gmra.mxu0 %v450
    %v492 = vpop.f32.mrf.mxu0
    %v493 = vadd.f32 0.0, %v492
    %494 = vdwg.mxu0
    %495 = vmatpush.msra.mxu0 %v334
    %496 = vmatpush.msra.mxu0 %v331
    %497 = vmatpush.msra.mxu0 %v328
    %498 = vmatpush.msra.mxu0 %v325
    %499 = vmatpush.msra.mxu0 %v322
    %500 = vmatpush.msra.mxu0 %v319
    %501 = vmatpush.msra.mxu0 %v316
    %502 = vmatpush.msra.mxu0 %v313
    %503 = vmatpush.msra.mxu0 %v310
    %504 = vmatpush.msra.mxu0 %v307
    %505 = vmatpush.msra.mxu0 %v304
    %506 = vmatpush.msra.mxu0 %v301
    %507 = vmatpush.msra.mxu0 %v298
    %508 = vmatpush.msra.mxu0 %v295
    %509 = vmatpush.msra.mxu0 %v292
    %510 = vmatpush.msra.mxu0 %v289
    %511 = vmatmul.f32.gmra.mxu0 %v450
    %v512 = vpop.f32.mrf.mxu0
    %v513 = vadd.f32 0.0, %v512
    %514 = vdwg.mxu0
    %v515 = vadd.f32 %v452, %v473
    %v516 = vadd.f32 %v453, %v493
    %v517 = vxor.u32 %v515, 2147483648
    %v518 = vxor.u32 %v516, 2147483648
    %v519 = vmul.f32 %v517, 1.442695
    %v520 = vpow.pop %v519
    %v521 = vmul.f32 %v518, 1.442695
    %v522 = vpow.pop %v521
    %v523 = vadd.f32 %v520, 1.0
    %v524 = vadd.f32 %v522, 1.0
    %v525 = vrcp.pop %v523
    %v526 = vmul.f32 %v523, %v525
    %v527 = vsub.f32 1.0, %v526
    %v528 = vmul.f32 %v525, %v527
    %v529 = vadd.f32 %v525, %v528
    %vm530 = vweird.f32 %v523
    %vm531 = vweird.f32 %v525
    %vm532 = vmor %vm530, %vm531
    %v533 = vsel %vm532, %v525, %v529
    %v534 = vand.u32 2147483647, %v523
    %vm535 = vcmp.eq.f32.partialorder %v534, 8.507059e+37
    %v536 = vand.u32 %v523, 2147483648
    %v537 = vor.u32 1.1754944e-38, %v536
    %v538 = vsel %vm535, %v537, %v533
    %v539 = vmul.f32 1.0, %v538
    %v540 = vrcp.pop %v524
    %v541 = vmul.f32 %v524, %v540
    %v542 = vsub.f32 1.0, %v541
    %v543 = vmul.f32 %v540, %v542
    %v544 = vadd.f32 %v540, %v543
    %vm545 = vweird.f32 %v524
    %vm546 = vweird.f32 %v540
    %vm547 = vmor %vm545, %vm546
    %v548 = vsel %vm547, %v540, %v544
    %v549 = vand.u32 2147483647, %v524
    %vm550 = vcmp.eq.f32.partialorder %v549, 8.507059e+37
    %v551 = vand.u32 %v524, 2147483648
    %v552 = vor.u32 1.1754944e-38, %v551
    %v553 = vsel %vm550, %v552, %v548
    %v554 = vmul.f32 1.0, %v553
    %v555 = vadd.f32 %v513, %v337
    %v556 = vmul.f32 %v539, %v555
    %v557 = vadd.f32 %v454, %v556
    %v558 = vtanh.pop %v557
    %v559 = vsub.f32 1.0, %v554
    %v560 = vmul.f32 %v559, %v558
    %v561 = vmul.f32 %v554, %v450
    %v562 = vadd.f32 %v560, %v561
    %s563 = scalar_lea.vmem [#allocation2], 48
    %v564 = vld [vmem:[%s563] sm:$0xff]
    %v565 = vld [vmem:[%s563 + $0x8] sm:$0xff]
    %v566 = vld [vmem:[%s563 + $0x10] sm:$0xff]
    %567 = vmatpush.msra.mxu0 %v332
    %568 = vmatpush.msra.mxu0 %v329
    %569 = vmatpush.msra.mxu0 %v326
    %570 = vmatpush.msra.mxu0 %v323
    %571 = vmatpush.msra.mxu0 %v320
    %572 = vmatpush.msra.mxu0 %v317
    %573 = vmatpush.msra.mxu0 %v314
    %574 = vmatpush.msra.mxu0 %v311
    %575 = vmatpush.msra.mxu0 %v308
    %576 = vmatpush.msra.mxu0 %v305
    %577 = vmatpush.msra.mxu0 %v302
    %578 = vmatpush.msra.mxu0 %v299
    %579 = vmatpush.msra.mxu0 %v296
    %580 = vmatpush.msra.mxu0 %v293
    %581 = vmatpush.msra.mxu0 %v290
    %582 = vmatpush.msra.mxu0 %v287
    %583 = vmatmul.f32.gmra.mxu0 %v562
    %v584 = vpop.f32.mrf.mxu0
    %v585 = vadd.f32 0.0, %v584
    %586 = vdwg.mxu0
    %587 = vmatpush.msra.mxu0 %v333
    %588 = vmatpush.msra.mxu0 %v330
    %589 = vmatpush.msra.mxu0 %v327
    %590 = vmatpush.msra.mxu0 %v324
    %591 = vmatpush.msra.mxu0 %v321
    %592 = vmatpush.msra.mxu0 %v318
    %593 = vmatpush.msra.mxu0 %v315
    %594 = vmatpush.msra.mxu0 %v312
    %595 = vmatpush.msra.mxu0 %v309
    %596 = vmatpush.msra.mxu0 %v306
    %597 = vmatpush.msra.mxu0 %v303
    %598 = vmatpush.msra.mxu0 %v300
    %599 = vmatpush.msra.mxu0 %v297
    %600 = vmatpush.msra.mxu0 %v294
    %601 = vmatpush.msra.mxu0 %v291
    %602 = vmatpush.msra.mxu0 %v288
    %603 = vmatmul.f32.gmra.mxu0 %v562
    %v604 = vpop.f32.mrf.mxu0
    %v605 = vadd.f32 0.0, %v604
    %606 = vdwg.mxu0
    %607 = vmatpush.msra.mxu0 %v334
    %608 = vmatpush.msra.mxu0 %v331
    %609 = vmatpush.msra.mxu0 %v328
    %610 = vmatpush.msra.mxu0 %v325
    %611 = vmatpush.msra.mxu0 %v322
    %612 = vmatpush.msra.mxu0 %v319
    %613 = vmatpush.msra.mxu0 %v316
    %614 = vmatpush.msra.mxu0 %v313
    %615 = vmatpush.msra.mxu0 %v310
    %616 = vmatpush.msra.mxu0 %v307
    %617 = vmatpush.msra.mxu0 %v304
    %618 = vmatpush.msra.mxu0 %v301
    %619 = vmatpush.msra.mxu0 %v298
    %620 = vmatpush.msra.mxu0 %v295
    %621 = vmatpush.msra.mxu0 %v292
    %622 = vmatpush.msra.mxu0 %v289
    %623 = vmatmul.f32.gmra.mxu0 %v562
    %v624 = vpop.f32.mrf.mxu0
    %v625 = vadd.f32 0.0, %v624
    %626 = vdwg.mxu0
    %v627 = vadd.f32 %v564, %v585
    %v628 = vadd.f32 %v565, %v605
    %v629 = vxor.u32 %v627, 2147483648
    %v630 = vxor.u32 %v628, 2147483648
    %v631 = vmul.f32 %v629, 1.442695
    %v632 = vpow.pop %v631
    %v633 = vmul.f32 %v630, 1.442695
    %v634 = vpow.pop %v633
    %v635 = vadd.f32 %v632, 1.0
    %v636 = vadd.f32 %v634, 1.0
    %v637 = vrcp.pop %v635
    %v638 = vmul.f32 %v635, %v637
    %v639 = vsub.f32 1.0, %v638
    %v640 = vmul.f32 %v637, %v639
    %v641 = vadd.f32 %v637, %v640
    %vm642 = vweird.f32 %v635
    %vm643 = vweird.f32 %v637
    %vm644 = vmor %vm642, %vm643
    %v645 = vsel %vm644, %v637, %v641
    %v646 = vand.u32 2147483647, %v635
    %vm647 = vcmp.eq.f32.partialorder %v646, 8.507059e+37
    %v648 = vand.u32 %v635, 2147483648
    %v649 = vor.u32 1.1754944e-38, %v648
    %v650 = vsel %vm647, %v649, %v645
    %v651 = vmul.f32 1.0, %v650
    %v652 = vrcp.pop %v636
    %v653 = vmul.f32 %v636, %v652
    %v654 = vsub.f32 1.0, %v653
    %v655 = vmul.f32 %v652, %v654
    %v656 = vadd.f32 %v652, %v655
    %vm657 = vweird.f32 %v636
    %vm658 = vweird.f32 %v652
    %vm659 = vmor %vm657, %vm658
    %v660 = vsel %vm659, %v652, %v656
    %v661 = vand.u32 2147483647, %v636
    %vm662 = vcmp.eq.f32.partialorder %v661, 8.507059e+37
    %v663 = vand.u32 %v636, 2147483648
    %v664 = vor.u32 1.1754944e-38, %v663
    %v665 = vsel %vm662, %v664, %v660
    %v666 = vmul.f32 1.0, %v665
    %v667 = vadd.f32 %v625, %v337
    %v668 = vmul.f32 %v651, %v667
    %v669 = vadd.f32 %v566, %v668
    %v670 = vtanh.pop %v669
    %v671 = vsub.f32 1.0, %v666
    %v672 = vmul.f32 %v671, %v670
    %v673 = vmul.f32 %v666, %v562
    %v674 = vadd.f32 %v672, %v673
    %s675 = scalar_lea.vmem [#allocation2], 72
    %v676 = vld [vmem:[%s675] sm:$0xff]
    %v677 = vld [vmem:[%s675 + $0x8] sm:$0xff]
    %v678 = vld [vmem:[%s675 + $0x10] sm:$0xff]
    %679 = vmatpush.msra.mxu0 %v332
    %680 = vmatpush.msra.mxu0 %v329
    %681 = vmatpush.msra.mxu0 %v326
    %682 = vmatpush.msra.mxu0 %v323
    %683 = vmatpush.msra.mxu0 %v320
    %684 = vmatpush.msra.mxu0 %v317
    %685 = vmatpush.msra.mxu0 %v314
    %686 = vmatpush.msra.mxu0 %v311
    %687 = vmatpush.msra.mxu0 %v308
    %688 = vmatpush.msra.mxu0 %v305
    %689 = vmatpush.msra.mxu0 %v302
    %690 = vmatpush.msra.mxu0 %v299
    %691 = vmatpush.msra.mxu0 %v296
    %692 = vmatpush.msra.mxu0 %v293
    %693 = vmatpush.msra.mxu0 %v290
    %694 = vmatpush.msra.mxu0 %v287
    %695 = vmatmul.f32.gmra.mxu0 %v674
    %v696 = vpop.f32.mrf.mxu0
    %v697 = vadd.f32 0.0, %v696
    %698 = vdwg.mxu0
    %699 = vmatpush.msra.mxu0 %v333
    %700 = vmatpush.msra.mxu0 %v330
    %701 = vmatpush.msra.mxu0 %v327
    %702 = vmatpush.msra.mxu0 %v324
    %703 = vmatpush.msra.mxu0 %v321
    %704 = vmatpush.msra.mxu0 %v318
    %705 = vmatpush.msra.mxu0 %v315
    %706 = vmatpush.msra.mxu0 %v312
    %707 = vmatpush.msra.mxu0 %v309
    %708 = vmatpush.msra.mxu0 %v306
    %709 = vmatpush.msra.mxu0 %v303
    %710 = vmatpush.msra.mxu0 %v300
    %711 = vmatpush.msra.mxu0 %v297
    %712 = vmatpush.msra.mxu0 %v294
    %713 = vmatpush.msra.mxu0 %v291
    %714 = vmatpush.msra.mxu0 %v288
    %715 = vmatmul.f32.gmra.mxu0 %v674
    %v716 = vpop.f32.mrf.mxu0
    %v717 = vadd.f32 0.0, %v716
    %718 = vdwg.mxu0
    %719 = vmatpush.msra.mxu0 %v334
    %720 = vmatpush.msra.mxu0 %v331
    %721 = vmatpush.msra.mxu0 %v328
    %722 = vmatpush.msra.mxu0 %v325
    %723 = vmatpush.msra.mxu0 %v322
    %724 = vmatpush.msra.mxu0 %v319
    %725 = vmatpush.msra.mxu0 %v316
    %726 = vmatpush.msra.mxu0 %v313
    %727 = vmatpush.msra.mxu0 %v310
    %728 = vmatpush.msra.mxu0 %v307
    %729 = vmatpush.msra.mxu0 %v304
    %730 = vmatpush.msra.mxu0 %v301
    %731 = vmatpush.msra.mxu0 %v298
    %732 = vmatpush.msra.mxu0 %v295
    %733 = vmatpush.msra.mxu0 %v292
    %734 = vmatpush.msra.mxu0 %v289
    %735 = vmatmul.f32.gmra.mxu0 %v674
    %v736 = vpop.f32.mrf.mxu0
    %v737 = vadd.f32 0.0, %v736
    %738 = vdwg.mxu0
    %v739 = vadd.f32 %v676, %v697
    %v740 = vadd.f32 %v677, %v717
    %v741 = vxor.u32 %v739, 2147483648
    %v742 = vxor.u32 %v740, 2147483648
    %v743 = vmul.f32 %v741, 1.442695
    %v744 = vpow.pop %v743
    %v745 = vmul.f32 %v742, 1.442695
    %v746 = vpow.pop %v745
    %v747 = vadd.f32 %v744, 1.0
    %v748 = vadd.f32 %v746, 1.0
    %v749 = vrcp.pop %v747
    %v750 = vmul.f32 %v747, %v749
    %v751 = vsub.f32 1.0, %v750
    %v752 = vmul.f32 %v749, %v751
    %v753 = vadd.f32 %v749, %v752
    %vm754 = vweird.f32 %v747
    %vm755 = vweird.f32 %v749
    %vm756 = vmor %vm754, %vm755
    %v757 = vsel %vm756, %v749, %v753
    %v758 = vand.u32 2147483647, %v747
    %vm759 = vcmp.eq.f32.partialorder %v758, 8.507059e+37
    %v760 = vand.u32 %v747, 2147483648
    %v761 = vor.u32 1.1754944e-38, %v760
    %v762 = vsel %vm759, %v761, %v757
    %v763 = vmul.f32 1.0, %v762
    %v764 = vrcp.pop %v748
    %v765 = vmul.f32 %v748, %v764
    %v766 = vsub.f32 1.0, %v765
    %v767 = vmul.f32 %v764, %v766
    %v768 = vadd.f32 %v764, %v767
    %vm769 = vweird.f32 %v748
    %vm770 = vweird.f32 %v764
    %vm771 = vmor %vm769, %vm770
    %v772 = vsel %vm771, %v764, %v768
    %v773 = vand.u32 2147483647, %v748
    %vm774 = vcmp.eq.f32.partialorder %v773, 8.507059e+37
    %v775 = vand.u32 %v748, 2147483648
    %v776 = vor.u32 1.1754944e-38, %v775
    %v777 = vsel %vm774, %v776, %v772
    %v778 = vmul.f32 1.0, %v777
    %v779 = vadd.f32 %v737, %v337
    %v780 = vmul.f32 %v763, %v779
    %v781 = vadd.f32 %v678, %v780
    %v782 = vtanh.pop %v781
    %v783 = vsub.f32 1.0, %v778
    %v784 = vmul.f32 %v783, %v782
    %v785 = vmul.f32 %v778, %v674
    %v786 = vadd.f32 %v784, %v785
    %s787 = scalar_lea.vmem [#allocation2], 96
    %v788 = vld [vmem:[%s787] sm:$0xff]
    %v789 = vld [vmem:[%s787 + $0x8] sm:$0xff]
    %v790 = vld [vmem:[%s787 + $0x10] sm:$0xff]
    %791 = vmatpush.msra.mxu0 %v332
    %792 = vmatpush.msra.mxu0 %v329
    %793 = vmatpush.msra.mxu0 %v326
    %794 = vmatpush.msra.mxu0 %v323
    %795 = vmatpush.msra.mxu0 %v320
    %796 = vmatpush.msra.mxu0 %v317
    %797 = vmatpush.msra.mxu0 %v314
    %798 = vmatpush.msra.mxu0 %v311
    %799 = vmatpush.msra.mxu0 %v308
    %800 = vmatpush.msra.mxu0 %v305
    %801 = vmatpush.msra.mxu0 %v302
    %802 = vmatpush.msra.mxu0 %v299
    %803 = vmatpush.msra.mxu0 %v296
    %804 = vmatpush.msra.mxu0 %v293
    %805 = vmatpush.msra.mxu0 %v290
    %806 = vmatpush.msra.mxu0 %v287
    %807 = vmatmul.f32.gmra.mxu0 %v786
    %v808 = vpop.f32.mrf.mxu0
    %v809 = vadd.f32 0.0, %v808
    %810 = vdwg.mxu0
    %811 = vmatpush.msra.mxu0 %v333
    %812 = vmatpush.msra.mxu0 %v330
    %813 = vmatpush.msra.mxu0 %v327
    %814 = vmatpush.msra.mxu0 %v324
    %815 = vmatpush.msra.mxu0 %v321
    %816 = vmatpush.msra.mxu0 %v318
    %817 = vmatpush.msra.mxu0 %v315
    %818 = vmatpush.msra.mxu0 %v312
    %819 = vmatpush.msra.mxu0 %v309
    %820 = vmatpush.msra.mxu0 %v306
    %821 = vmatpush.msra.mxu0 %v303
    %822 = vmatpush.msra.mxu0 %v300
    %823 = vmatpush.msra.mxu0 %v297
    %824 = vmatpush.msra.mxu0 %v294
    %825 = vmatpush.msra.mxu0 %v291
    %826 = vmatpush.msra.mxu0 %v288
    %827 = vmatmul.f32.gmra.mxu0 %v786
    %v828 = vpop.f32.mrf.mxu0
    %v829 = vadd.f32 0.0, %v828
    %830 = vdwg.mxu0
    %831 = vmatpush.msra.mxu0 %v334
    %832 = vmatpush.msra.mxu0 %v331
    %833 = vmatpush.msra.mxu0 %v328
    %834 = vmatpush.msra.mxu0 %v325
    %835 = vmatpush.msra.mxu0 %v322
    %836 = vmatpush.msra.mxu0 %v319
    %837 = vmatpush.msra.mxu0 %v316
    %838 = vmatpush.msra.mxu0 %v313
    %839 = vmatpush.msra.mxu0 %v310
    %840 = vmatpush.msra.mxu0 %v307
    %841 = vmatpush.msra.mxu0 %v304
    %842 = vmatpush.msra.mxu0 %v301
    %843 = vmatpush.msra.mxu0 %v298
    %844 = vmatpush.msra.mxu0 %v295
    %845 = vmatpush.msra.mxu0 %v292
    %846 = vmatpush.msra.mxu0 %v289
    %847 = vmatmul.f32.gmra.mxu0 %v786
    %v848 = vpop.f32.mrf.mxu0
    %v849 = vadd.f32 0.0, %v848
    %850 = vdwg.mxu0
    %v851 = vadd.f32 %v788, %v809
    %v852 = vadd.f32 %v789, %v829
    %v853 = vxor.u32 %v851, 2147483648
    %v854 = vxor.u32 %v852, 2147483648
    %v855 = vmul.f32 %v853, 1.442695
    %v856 = vpow.pop %v855
    %v857 = vmul.f32 %v854, 1.442695
    %v858 = vpow.pop %v857
    %v859 = vadd.f32 %v856, 1.0
    %v860 = vadd.f32 %v858, 1.0
    %v861 = vrcp.pop %v859
    %v862 = vmul.f32 %v859, %v861
    %v863 = vsub.f32 1.0, %v862
    %v864 = vmul.f32 %v861, %v863
    %v865 = vadd.f32 %v861, %v864
    %vm866 = vweird.f32 %v859
    %vm867 = vweird.f32 %v861
    %vm868 = vmor %vm866, %vm867
    %v869 = vsel %vm868, %v861, %v865
    %v870 = vand.u32 2147483647, %v859
    %vm871 = vcmp.eq.f32.partialorder %v870, 8.507059e+37
    %v872 = vand.u32 %v859, 2147483648
    %v873 = vor.u32 1.1754944e-38, %v872
    %v874 = vsel %vm871, %v873, %v869
    %v875 = vmul.f32 1.0, %v874
    %v876 = vrcp.pop %v860
    %v877 = vmul.f32 %v860, %v876
    %v878 = vsub.f32 1.0, %v877
    %v879 = vmul.f32 %v876, %v878
    %v880 = vadd.f32 %v876, %v879
    %vm881 = vweird.f32 %v860
    %vm882 = vweird.f32 %v876
    %vm883 = vmor %vm881, %vm882
    %v884 = vsel %vm883, %v876, %v880
    %v885 = vand.u32 2147483647, %v860
    %vm886 = vcmp.eq.f32.partialorder %v885, 8.507059e+37
    %v887 = vand.u32 %v860, 2147483648
    %v888 = vor.u32 1.1754944e-38, %v887
    %v889 = vsel %vm886, %v888, %v884
    %v890 = vmul.f32 1.0, %v889
    %v891 = vadd.f32 %v849, %v337
    %v892 = vmul.f32 %v875, %v891
    %v893 = vadd.f32 %v790, %v892
    %v894 = vtanh.pop %v893
    %v895 = vsub.f32 1.0, %v890
    %v896 = vmul.f32 %v895, %v894
    %v897 = vmul.f32 %v890, %v786
    %v898 = vadd.f32 %v896, %v897
    %s899 = scalar_lea.vmem [#allocation2], 120
    %v900 = vld [vmem:[%s899] sm:$0xff]
    %v901 = vld [vmem:[%s899 + $0x8] sm:$0xff]
    %v902 = vld [vmem:[%s899 + $0x10] sm:$0xff]
    %903 = vmatpush.msra.mxu0 %v332
    %904 = vmatpush.msra.mxu0 %v329
    %905 = vmatpush.msra.mxu0 %v326
    %906 = vmatpush.msra.mxu0 %v323
    %907 = vmatpush.msra.mxu0 %v320
    %908 = vmatpush.msra.mxu0 %v317
    %909 = vmatpush.msra.mxu0 %v314
    %910 = vmatpush.msra.mxu0 %v311
    %911 = vmatpush.msra.mxu0 %v308
    %912 = vmatpush.msra.mxu0 %v305
    %913 = vmatpush.msra.mxu0 %v302
    %914 = vmatpush.msra.mxu0 %v299
    %915 = vmatpush.msra.mxu0 %v296
    %916 = vmatpush.msra.mxu0 %v293
    %917 = vmatpush.msra.mxu0 %v290
    %918 = vmatpush.msra.mxu0 %v287
    %919 = vmatmul.f32.gmra.mxu0 %v898
    %v920 = vpop.f32.mrf.mxu0
    %v921 = vadd.f32 0.0, %v920
    %922 = vdwg.mxu0
    %923 = vmatpush.msra.mxu0 %v333
    %924 = vmatpush.msra.mxu0 %v330
    %925 = vmatpush.msra.mxu0 %v327
    %926 = vmatpush.msra.mxu0 %v324
    %927 = vmatpush.msra.mxu0 %v321
    %928 = vmatpush.msra.mxu0 %v318
    %929 = vmatpush.msra.mxu0 %v315
    %930 = vmatpush.msra.mxu0 %v312
    %931 = vmatpush.msra.mxu0 %v309
    %932 = vmatpush.msra.mxu0 %v306
    %933 = vmatpush.msra.mxu0 %v303
    %934 = vmatpush.msra.mxu0 %v300
    %935 = vmatpush.msra.mxu0 %v297
    %936 = vmatpush.msra.mxu0 %v294
    %937 = vmatpush.msra.mxu0 %v291
    %938 = vmatpush.msra.mxu0 %v288
    %939 = vmatmul.f32.gmra.mxu0 %v898
    %v940 = vpop.f32.mrf.mxu0
    %v941 = vadd.f32 0.0, %v940
    %942 = vdwg.mxu0
    %943 = vmatpush.msra.mxu0 %v334
    %944 = vmatpush.msra.mxu0 %v331
    %945 = vmatpush.msra.mxu0 %v328
    %946 = vmatpush.msra.mxu0 %v325
    %947 = vmatpush.msra.mxu0 %v322
    %948 = vmatpush.msra.mxu0 %v319
    %949 = vmatpush.msra.mxu0 %v316
    %950 = vmatpush.msra.mxu0 %v313
    %951 = vmatpush.msra.mxu0 %v310
    %952 = vmatpush.msra.mxu0 %v307
    %953 = vmatpush.msra.mxu0 %v304
    %954 = vmatpush.msra.mxu0 %v301
    %955 = vmatpush.msra.mxu0 %v298
    %956 = vmatpush.msra.mxu0 %v295
    %957 = vmatpush.msra.mxu0 %v292
    %958 = vmatpush.msra.mxu0 %v289
    %959 = vmatmul.f32.gmra.mxu0 %v898
    %v960 = vpop.f32.mrf.mxu0
    %v961 = vadd.f32 0.0, %v960
    %962 = vdwg.mxu0
    %v963 = vadd.f32 %v900, %v921
    %v964 = vadd.f32 %v901, %v941
    %v965 = vxor.u32 %v963, 2147483648
    %v966 = vxor.u32 %v964, 2147483648
    %v967 = vmul.f32 %v965, 1.442695
    %v968 = vpow.pop %v967
    %v969 = vmul.f32 %v966, 1.442695
    %v970 = vpow.pop %v969
    %v971 = vadd.f32 %v968, 1.0
    %v972 = vadd.f32 %v970, 1.0
    %v973 = vrcp.pop %v971
    %v974 = vmul.f32 %v971, %v973
    %v975 = vsub.f32 1.0, %v974
    %v976 = vmul.f32 %v973, %v975
    %v977 = vadd.f32 %v973, %v976
    %vm978 = vweird.f32 %v971
    %vm979 = vweird.f32 %v973
    %vm980 = vmor %vm978, %vm979
    %v981 = vsel %vm980, %v973, %v977
    %v982 = vand.u32 2147483647, %v971
    %vm983 = vcmp.eq.f32.partialorder %v982, 8.507059e+37
    %v984 = vand.u32 %v971, 2147483648
    %v985 = vor.u32 1.1754944e-38, %v984
    %v986 = vsel %vm983, %v985, %v981
    %v987 = vmul.f32 1.0, %v986
    %v988 = vrcp.pop %v972
    %v989 = vmul.f32 %v972, %v988
    %v990 = vsub.f32 1.0, %v989
    %v991 = vmul.f32 %v988, %v990
    %v992 = vadd.f32 %v988, %v991
    %vm993 = vweird.f32 %v972
    %vm994 = vweird.f32 %v988
    %vm995 = vmor %vm993, %vm994
    %v996 = vsel %vm995, %v988, %v992
    %v997 = vand.u32 2147483647, %v972
    %vm998 = vcmp.eq.f32.partialorder %v997, 8.507059e+37
    %v999 = vand.u32 %v972, 2147483648
    %v1000 = vor.u32 1.1754944e-38, %v999
    %v1001 = vsel %vm998, %v1000, %v996
    %v1002 = vmul.f32 1.0, %v1001
    %v1003 = vadd.f32 %v961, %v337
    %v1004 = vmul.f32 %v987, %v1003
    %v1005 = vadd.f32 %v902, %v1004
    %v1006 = vtanh.pop %v1005
    %v1007 = vsub.f32 1.0, %v1002
    %v1008 = vmul.f32 %v1007, %v1006
    %v1009 = vmul.f32 %v1002, %v898
    %v1010 = vadd.f32 %v1008, %v1009
    %s1011 = scalar_lea.vmem [#allocation2], 144
    %v1012 = vld [vmem:[%s1011] sm:$0xff]
    %v1013 = vld [vmem:[%s1011 + $0x8] sm:$0xff]
    %v1014 = vld [vmem:[%s1011 + $0x10] sm:$0xff]
    %1015 = vmatpush.msra.mxu0 %v332
    %1016 = vmatpush.msra.mxu0 %v329
    %1017 = vmatpush.msra.mxu0 %v326
    %1018 = vmatpush.msra.mxu0 %v323
    %1019 = vmatpush.msra.mxu0 %v320
    %1020 = vmatpush.msra.mxu0 %v317
    %1021 = vmatpush.msra.mxu0 %v314
    %1022 = vmatpush.msra.mxu0 %v311
    %1023 = vmatpush.msra.mxu0 %v308
    %1024 = vmatpush.msra.mxu0 %v305
    %1025 = vmatpush.msra.mxu0 %v302
    %1026 = vmatpush.msra.mxu0 %v299
    %1027 = vmatpush.msra.mxu0 %v296
    %1028 = vmatpush.msra.mxu0 %v293
    %1029 = vmatpush.msra.mxu0 %v290
    %1030 = vmatpush.msra.mxu0 %v287
    %1031 = vmatmul.f32.gmra.mxu0 %v1010
    %v1032 = vpop.f32.mrf.mxu0
    %v1033 = vadd.f32 0.0, %v1032
    %1034 = vdwg.mxu0
    %1035 = vmatpush.msra.mxu0 %v333
    %1036 = vmatpush.msra.mxu0 %v330
    %1037 = vmatpush.msra.mxu0 %v327
    %1038 = vmatpush.msra.mxu0 %v324
    %1039 = vmatpush.msra.mxu0 %v321
    %1040 = vmatpush.msra.mxu0 %v318
    %1041 = vmatpush.msra.mxu0 %v315
    %1042 = vmatpush.msra.mxu0 %v312
    %1043 = vmatpush.msra.mxu0 %v309
    %1044 = vmatpush.msra.mxu0 %v306
    %1045 = vmatpush.msra.mxu0 %v303
    %1046 = vmatpush.msra.mxu0 %v300
    %1047 = vmatpush.msra.mxu0 %v297
    %1048 = vmatpush.msra.mxu0 %v294
    %1049 = vmatpush.msra.mxu0 %v291
    %1050 = vmatpush.msra.mxu0 %v288
    %1051 = vmatmul.f32.gmra.mxu0 %v1010
    %v1052 = vpop.f32.mrf.mxu0
    %v1053 = vadd.f32 0.0, %v1052
    %1054 = vdwg.mxu0
    %1055 = vmatpush.msra.mxu0 %v334
    %1056 = vmatpush.msra.mxu0 %v331
    %1057 = vmatpush.msra.mxu0 %v328
    %1058 = vmatpush.msra.mxu0 %v325
    %1059 = vmatpush.msra.mxu0 %v322
    %1060 = vmatpush.msra.mxu0 %v319
    %1061 = vmatpush.msra.mxu0 %v316
    %1062 = vmatpush.msra.mxu0 %v313
    %1063 = vmatpush.msra.mxu0 %v310
    %1064 = vmatpush.msra.mxu0 %v307
    %1065 = vmatpush.msra.mxu0 %v304
    %1066 = vmatpush.msra.mxu0 %v301
    %1067 = vmatpush.msra.mxu0 %v298
    %1068 = vmatpush.msra.mxu0 %v295
    %1069 = vmatpush.msra.mxu0 %v292
    %1070 = vmatpush.msra.mxu0 %v289
    %1071 = vmatmul.f32.gmra.mxu0 %v1010
    %v1072 = vpop.f32.mrf.mxu0
    %v1073 = vadd.f32 0.0, %v1072
    %1074 = vdwg.mxu0
    %v1075 = vadd.f32 %v1012, %v1033
    %v1076 = vadd.f32 %v1013, %v1053
    %v1077 = vxor.u32 %v1075, 2147483648
    %v1078 = vxor.u32 %v1076, 2147483648
    %v1079 = vmul.f32 %v1077, 1.442695
    %v1080 = vpow.pop %v1079
    %v1081 = vmul.f32 %v1078, 1.442695
    %v1082 = vpow.pop %v1081
    %v1083 = vadd.f32 %v1080, 1.0
    %v1084 = vadd.f32 %v1082, 1.0
    %v1085 = vrcp.pop %v1083
    %v1086 = vmul.f32 %v1083, %v1085
    %v1087 = vsub.f32 1.0, %v1086
    %v1088 = vmul.f32 %v1085, %v1087
    %v1089 = vadd.f32 %v1085, %v1088
    %vm1090 = vweird.f32 %v1083
    %vm1091 = vweird.f32 %v1085
    %vm1092 = vmor %vm1090, %vm1091
    %v1093 = vsel %vm1092, %v1085, %v1089
    %v1094 = vand.u32 2147483647, %v1083
    %vm1095 = vcmp.eq.f32.partialorder %v1094, 8.507059e+37
    %v1096 = vand.u32 %v1083, 2147483648
    %v1097 = vor.u32 1.1754944e-38, %v1096
    %v1098 = vsel %vm1095, %v1097, %v1093
    %v1099 = vmul.f32 1.0, %v1098
    %v1100 = vrcp.pop %v1084
    %v1101 = vmul.f32 %v1084, %v1100
    %v1102 = vsub.f32 1.0, %v1101
    %v1103 = vmul.f32 %v1100, %v1102
    %v1104 = vadd.f32 %v1100, %v1103
    %vm1105 = vweird.f32 %v1084
    %vm1106 = vweird.f32 %v1100
    %vm1107 = vmor %vm1105, %vm1106
    %v1108 = vsel %vm1107, %v1100, %v1104
    %v1109 = vand.u32 2147483647, %v1084
    %vm1110 = vcmp.eq.f32.partialorder %v1109, 8.507059e+37
    %v1111 = vand.u32 %v1084, 2147483648
    %v1112 = vor.u32 1.1754944e-38, %v1111
    %v1113 = vsel %vm1110, %v1112, %v1108
    %v1114 = vmul.f32 1.0, %v1113
    %v1115 = vadd.f32 %v1073, %v337
    %v1116 = vmul.f32 %v1099, %v1115
    %v1117 = vadd.f32 %v1014, %v1116
    %v1118 = vtanh.pop %v1117
    %v1119 = vsub.f32 1.0, %v1114
    %v1120 = vmul.f32 %v1119, %v1118
    %v1121 = vmul.f32 %v1114, %v1010
    %v1122 = vadd.f32 %v1120, %v1121
    %s1123 = scalar_lea.vmem [#allocation2], 168
    %v1124 = vld [vmem:[%s1123] sm:$0xff]
    %v1125 = vld [vmem:[%s1123 + $0x8] sm:$0xff]
    %v1126 = vld [vmem:[%s1123 + $0x10] sm:$0xff]
    %1127 = vmatpush.msra.mxu0 %v332
    %1128 = vmatpush.msra.mxu0 %v329
    %1129 = vmatpush.msra.mxu0 %v326
    %1130 = vmatpush.msra.mxu0 %v323
    %1131 = vmatpush.msra.mxu0 %v320
    %1132 = vmatpush.msra.mxu0 %v317
    %1133 = vmatpush.msra.mxu0 %v314
    %1134 = vmatpush.msra.mxu0 %v311
    %1135 = vmatpush.msra.mxu0 %v308
    %1136 = vmatpush.msra.mxu0 %v305
    %1137 = vmatpush.msra.mxu0 %v302
    %1138 = vmatpush.msra.mxu0 %v299
    %1139 = vmatpush.msra.mxu0 %v296
    %1140 = vmatpush.msra.mxu0 %v293
    %1141 = vmatpush.msra.mxu0 %v290
    %1142 = vmatpush.msra.mxu0 %v287
    %1143 = vmatmul.f32.gmra.mxu0 %v1122
    %v1144 = vpop.f32.mrf.mxu0
    %v1145 = vadd.f32 0.0, %v1144
    %1146 = vdwg.mxu0
    %1147 = vmatpush.msra.mxu0 %v333
    %1148 = vmatpush.msra.mxu0 %v330
    %1149 = vmatpush.msra.mxu0 %v327
    %1150 = vmatpush.msra.mxu0 %v324
    %1151 = vmatpush.msra.mxu0 %v321
    %1152 = vmatpush.msra.mxu0 %v318
    %1153 = vmatpush.msra.mxu0 %v315
    %1154 = vmatpush.msra.mxu0 %v312
    %1155 = vmatpush.msra.mxu0 %v309
    %1156 = vmatpush.msra.mxu0 %v306
    %1157 = vmatpush.msra.mxu0 %v303
    %1158 = vmatpush.msra.mxu0 %v300
    %1159 = vmatpush.msra.mxu0 %v297
    %1160 = vmatpush.msra.mxu0 %v294
    %1161 = vmatpush.msra.mxu0 %v291
    %1162 = vmatpush.msra.mxu0 %v288
    %1163 = vmatmul.f32.gmra.mxu0 %v1122
    %v1164 = vpop.f32.mrf.mxu0
    %v1165 = vadd.f32 0.0, %v1164
    %1166 = vdwg.mxu0
    %1167 = vmatpush.msra.mxu0 %v334
    %1168 = vmatpush.msra.mxu0 %v331
    %1169 = vmatpush.msra.mxu0 %v328
    %1170 = vmatpush.msra.mxu0 %v325
    %1171 = vmatpush.msra.mxu0 %v322
    %1172 = vmatpush.msra.mxu0 %v319
    %1173 = vmatpush.msra.mxu0 %v316
    %1174 = vmatpush.msra.mxu0 %v313
    %1175 = vmatpush.msra.mxu0 %v310
    %1176 = vmatpush.msra.mxu0 %v307
    %1177 = vmatpush.msra.mxu0 %v304
    %1178 = vmatpush.msra.mxu0 %v301
    %1179 = vmatpush.msra.mxu0 %v298
    %1180 = vmatpush.msra.mxu0 %v295
    %1181 = vmatpush.msra.mxu0 %v292
    %1182 = vmatpush.msra.mxu0 %v289
    %1183 = vmatmul.f32.gmra.mxu0 %v1122
    %v1184 = vpop.f32.mrf.mxu0
    %v1185 = vadd.f32 0.0, %v1184
    %1186 = vdwg.mxu0
    %v1187 = vadd.f32 %v1124, %v1145
    %v1188 = vadd.f32 %v1125, %v1165
    %v1189 = vxor.u32 %v1187, 2147483648
    %v1190 = vxor.u32 %v1188, 2147483648
    %v1191 = vmul.f32 %v1189, 1.442695
    %v1192 = vpow.pop %v1191
    %v1193 = vmul.f32 %v1190, 1.442695
    %v1194 = vpow.pop %v1193
    %v1195 = vadd.f32 %v1192, 1.0
    %v1196 = vadd.f32 %v1194, 1.0
    %v1197 = vrcp.pop %v1195
    %v1198 = vmul.f32 %v1195, %v1197
    %v1199 = vsub.f32 1.0, %v1198
    %v1200 = vmul.f32 %v1197, %v1199
    %v1201 = vadd.f32 %v1197, %v1200
    %vm1202 = vweird.f32 %v1195
    %vm1203 = vweird.f32 %v1197
    %vm1204 = vmor %vm1202, %vm1203
    %v1205 = vsel %vm1204, %v1197, %v1201
    %v1206 = vand.u32 2147483647, %v1195
    %vm1207 = vcmp.eq.f32.partialorder %v1206, 8.507059e+37
    %v1208 = vand.u32 %v1195, 2147483648
    %v1209 = vor.u32 1.1754944e-38, %v1208
    %v1210 = vsel %vm1207, %v1209, %v1205
    %v1211 = vmul.f32 1.0, %v1210
    %v1212 = vrcp.pop %v1196
    %v1213 = vmul.f32 %v1196, %v1212
    %v1214 = vsub.f32 1.0, %v1213
    %v1215 = vmul.f32 %v1212, %v1214
    %v1216 = vadd.f32 %v1212, %v1215
    %vm1217 = vweird.f32 %v1196
    %vm1218 = vweird.f32 %v1212
    %vm1219 = vmor %vm1217, %vm1218
    %v1220 = vsel %vm1219, %v1212, %v1216
    %v1221 = vand.u32 2147483647, %v1196
    %vm1222 = vcmp.eq.f32.partialorder %v1221, 8.507059e+37
    %v1223 = vand.u32 %v1196, 2147483648
    %v1224 = vor.u32 1.1754944e-38, %v1223
    %v1225 = vsel %vm1222, %v1224, %v1220
    %v1226 = vmul.f32 1.0, %v1225
    %v1227 = vadd.f32 %v1185, %v337
    %v1228 = vmul.f32 %v1211, %v1227
    %v1229 = vadd.f32 %v1126, %v1228
    %v1230 = vtanh.pop %v1229
    %v1231 = vsub.f32 1.0, %v1226
    %v1232 = vmul.f32 %v1231, %v1230
    %v1233 = vmul.f32 %v1226, %v1122
    %v1234 = vadd.f32 %v1232, %v1233
    %1235 = vst [vmem:[#allocation3] sm:$0xff] %v1234
    // Predicated region
    $region42: #{tpu_custom_call.1} parent=1 // pred_check
      %p1236 = pneg %p82
    $region43: #{tpu_custom_call.1} parent=1 // pred_check_branch
      %1238 = sbr.rel (%p1236) target = $region45
    $region44: #{tpu_custom_call.1} parent=1 // pred_region
      %v1239 = vld [vmem:[#allocation3] sm:$0xff]
      %1240 = vst [vmem:[#allocation12] sm:$0xff] %v1239
    $region45: #{tpu_custom_call.1} parent=1 // pred_fallthru
      _
    // Predicated region
    $region46: #{tpu_custom_call.1} parent=1 // pred_check
      _
    $region47: #{tpu_custom_call.1} parent=1 // pred_check_branch
      %1242 = sbr.rel (0) target = $region49
    $region48: #{tpu_custom_call.1} parent=1 // pred_region
      %1244 = vsyncadd [#allocation6], 0
      %s1246 = sshll.u32 [#allocation12], 4
      %s1247 = int_to_ptr.vmem [resolvable:$true] %s1246
      %s1248 = sshll.u32 %s5, 4
      %s1249 = int_to_ptr.hbm [resolvable:$true] %s1248
      %1251 = dma.vmem_to_hbm [thread:$0]  %s1247, 128, %s1249, [#allocation6]
    $region49: #{tpu_custom_call.1} parent=1 // pred_fallthru
      _
    // Predicated region
    $region50: #{tpu_custom_call.1} parent=1 // pred_check
      _
    $region51: #{tpu_custom_call.1} parent=1 // pred_check_branch
      %1253 = sbr.rel (0) target = $region53
    $region52: #{tpu_custom_call.1} parent=1 // pred_region
      %1255 = dma.done [#allocation6], 128
    $region53: #{tpu_custom_call.1} parent=1 // pred_fallthru
      _
    %1256 = vsyncpa [#allocation5], 1
    %1257 = vsyncpa [#allocation8], 1
    %1258 = vsyncpa [#allocation11], 1
    %1259 = vsyncpa [#allocation6], 1

// kernel: tpu_custom_call.1
$region0: #{tpu_custom_call.1}
  #allocation0 [shape = 'u32[]', space=smem, size = 0x4, offset = 0x4, fixed_abs, tag = 'smem constant byte address 0x4 - core index']
  #allocation1 [shape = 'u32[72,128]{1,0:T(1,128)}', space=vmem, size = 0x9000, scoped, tag = 'internal scratch']
  #allocation2 [shape = 'f32[8,8,384]{2,1,0:T(8,128)}', space=vmem, size = 0x18000, scoped, tag = 'scratch operand']
  #allocation3 [shape = 'f32[8,128]{1,0:T(8,128)}', space=vmem, size = 0x1000, scoped, tag = 'scratch operand']
  %s0 = inlined_call_operand.hbm [shape: f32[8,8,32], index: 0, kind: input, shape index: {}]
  %s1 = inlined_call_operand.hbm [shape: f32[32,384], index: 1, kind: input, shape index: {}]
  %s2 = inlined_call_operand.hbm [shape: f32[128,384], index: 2, kind: input, shape index: {}]
  %s3 = inlined_call_operand.hbm [shape: f32[1,384], index: 3, kind: input, shape index: {}]
  %s4 = inlined_call_operand.vmem [shape: f32[1,128], index: 4, kind: input, shape index: {}]
  %s5 = inlined_call_operand.hbm [shape: f32[8,128], index: 5, kind: output, shape index: {}]
  %s6 = sld [smem:[#allocation0]]
  $region54: #{tpu_custom_call.1} parent=0
    _
  %s8 = ssub.s32 1, %s6
  %s9 = scalar_select 0, %s8, %s6
  $region1: #{tpu_custom_call.1} parent=0
    #allocation4 [shape = 'u8[32768]{0}', space=vmem, size = 0x8000, scoped, tag = 'input window, operand 0, single buffered']
    #allocation5 [shape = 's32[1]{0}', space=sflag, size = 0x4, scoped, tag = 'scoped memory for tpu_custom_call.1']
    #allocation6 [shape = 's32[1]{0}', space=sflag, size = 0x4, scoped, tag = 'scoped memory for tpu_custom_call.1']
    #allocation7 [shape = 'u8[49152]{0}', space=vmem, size = 0xc000, scoped, tag = 'input window, operand 1, single buffered']
    #allocation8 [shape = 's32[1]{0}', space=sflag, size = 0x4, scoped, tag = 'scoped memory for tpu_custom_call.1']
    #allocation9 [shape = 'u8[196608]{0}', space=vmem, size = 0x30000, scoped, tag = 'input window, operand 2, single buffered']
    #allocation10 [shape = 'u8[1536]{0}', space=vmem, size = 0x800, scoped, tag = 'input window, operand 3, single buffered']
    #allocation11 [shape = 's32[1]{0}', space=sflag, size = 0x4, scoped, tag = 'scoped memory for tpu_custom_call.1']
    #allocation12 [shape = 'u8[4096]{0}', space=vmem, size = 0x1000, scoped, tag = 'output window, operand 0, single buffered']
    %10 = vsyncpa [#allocation5], 0
    %11 = vsyncpa [#allocation8], 0
    %12 = vsyncpa [#allocation11], 0
    %13 = vsyncpa [#allocation6], 0
    // Predicated region
    $region2: #{tpu_custom_call.1} parent=1 // pred_check
      _
    $region3: #{tpu_custom_call.1} parent=1 // pred_check_branch
      %15 = sbr.rel (0) target = $region5
    $region4: #{tpu_custom_call.1} parent=1 // pred_region
      %17 = vsyncadd [#allocation5], 0
      %s18 = sshll.u32 %s0, 4
      %s19 = int_to_ptr.hbm [resolvable:$true] %s18
      %s20 = sshll.u32 [#allocation4], 4
      %s21 = int_to_ptr.vmem [resolvable:$true] %s20
      %26 = dma.hbm_to_vmem [thread:$0]  %s19, 1024, %s21, [#allocation5], 128, 128, 8
    $region5: #{tpu_custom_call.1} parent=1 // pred_fallthru
      _
    // Predicated region
    $region6: #{tpu_custom_call.1} parent=1 // pred_check
      _
    $region7: #{tpu_custom_call.1} parent=1 // pred_check_branch
      %28 = sbr.rel (0) target = $region9
    $region8: #{tpu_custom_call.1} parent=1 // pred_region
      %30 = vsyncadd [#allocation8], 0
      %s31 = sshll.u32 %s1, 4
      %s32 = int_to_ptr.hbm [resolvable:$true] %s31
      %s33 = sshll.u32 [#allocation7], 4
      %s34 = int_to_ptr.vmem [resolvable:$true] %s33
      %39 = dma.hbm_to_vmem [thread:$0]  %s32, 1536, %s34, [#allocation8], 384, 384, 24
    $region9: #{tpu_custom_call.1} parent=1 // pred_fallthru
      _
    // Predicated region
    $region10: #{tpu_custom_call.1} parent=1 // pred_check
      _
    $region11: #{tpu_custom_call.1} parent=1 // pred_check_branch
      %41 = sbr.rel (0) target = $region13
    $region12: #{tpu_custom_call.1} parent=1 // pred_region
      %43 = vsyncadd [#allocation8], 0
      %s44 = sshll.u32 %s2, 4
      %s45 = int_to_ptr.hbm [resolvable:$true] %s44
      %s46 = sshll.u32 [#allocation9], 4
      %s47 = int_to_ptr.vmem [resolvable:$true] %s46
      %52 = dma.hbm_to_vmem [thread:$0]  %s45, 6144, %s47, [#allocation8], 384, 384, 24
    $region13: #{tpu_custom_call.1} parent=1 // pred_fallthru
      _
    // Predicated region
    $region14: #{tpu_custom_call.1} parent=1 // pred_check
      _
    $region15: #{tpu_custom_call.1} parent=1 // pred_check_branch
      %54 = sbr.rel (0) target = $region17
    $region16: #{tpu_custom_call.1} parent=1 // pred_region
      %56 = vsyncadd [#allocation11], 0
      %s58 = sshll.u32 %s3, 4
      %s59 = int_to_ptr.hbm [resolvable:$true] %s58
      %s60 = sshll.u32 [#allocation10], 4
      %s61 = int_to_ptr.vmem [resolvable:$true] %s60
      %63 = dma.hbm_to_vmem [thread:$0]  %s59, 48, %s61, [#allocation11]
    $region17: #{tpu_custom_call.1} parent=1 // pred_fallthru
      _
    // Predicated region
    $region18: #{tpu_custom_call.1} parent=1 // pred_check
      _
    $region19: #{tpu_custom_call.1} parent=1 // pred_check_branch
      %65 = sbr.rel (0) target = $region21
    $region20: #{tpu_custom_call.1} parent=1 // pred_region
      _
    $region21: #{tpu_custom_call.1} parent=1 // pred_fallthru
      _
    // Predicated region
    $region22: #{tpu_custom_call.1} parent=1 // pred_check
      _
    $region23: #{tpu_custom_call.1} parent=1 // pred_check_branch
      %67 = sbr.rel (0) target = $region25
    $region24: #{tpu_custom_call.1} parent=1 // pred_region
      %69 = dma.done [#allocation5], 1024
    $region25: #{tpu_custom_call.1} parent=1 // pred_fallthru
      _
    // Predicated region
    $region26: #{tpu_custom_call.1} parent=1 // pred_check
      _
    $region27: #{tpu_custom_call.1} parent=1 // pred_check_branch
      %71 = sbr.rel (0) target = $region29
    $region28: #{tpu_custom_call.1} parent=1 // pred_region
      %73 = dma.done [#allocation8], 1536
    $region29: #{tpu_custom_call.1} parent=1 // pred_fallthru
      _
    // Predicated region
    $region30: #{tpu_custom_call.1} parent=1 // pred_check
      _
    $region31: #{tpu_custom_call.1} parent=1 // pred_check_branch
      %75 = sbr.rel (0) target = $region33
    $region32: #{tpu_custom_call.1} parent=1 // pred_region
      %77 = dma.done [#allocation8], 6144
    $region33: #{tpu_custom_call.1} parent=1 // pred_fallthru
      _
    // Predicated region
    $region34: #{tpu_custom_call.1} parent=1 // pred_check
      _
    $region35: #{tpu_custom_call.1} parent=1 // pred_check_branch
      %79 = sbr.rel (0) target = $region37
    $region36: #{tpu_custom_call.1} parent=1 // pred_region
      %81 = dma.done [#allocation11], 48
    $region37: #{tpu_custom_call.1} parent=1 // pred_fallthru
      _
    %p82 = scmp.eq.s32.totalorder 0, 0
    // Predicated region
    $region38: #{tpu_custom_call.1} parent=1 // pred_check
      %p83 = pneg %p82
    $region39: #{tpu_custom_call.1} parent=1 // pred_check_branch
      %85 = sbr.rel (%p83) target = $region41
    $region40: #{tpu_custom_call.1} parent=1 // pred_region
      %86 = vst [vmem:[#allocation3] sm:$0xff] 0.0
    $region41: #{tpu_custom_call.1} parent=1 // pred_fallthru
      _
    %v87 = vld [vmem:[#allocation7] sm:$0xff]
    %v88 = vld [vmem:[#allocation7 + $0x8] sm:$0xff]
    %v89 = vld [vmem:[#allocation7 + $0x10] sm:$0xff]
    %v90 = vld [vmem:[#allocation7 + $0x18] sm:$0xff]
    %v91 = vld [vmem:[#allocation7 + $0x20] sm:$0xff]
    %v92 = vld [vmem:[#allocation7 + $0x28] sm:$0xff]
    %v93 = vld [vmem:[#allocation7 + $0x30] sm:$0xff]
    %v94 = vld [vmem:[#allocation7 + $0x38] sm:$0xff]
    %v95 = vld [vmem:[#allocation7 + $0x40] sm:$0xff]
    %v96 = vld [vmem:[#allocation7 + $0x48] sm:$0xff]
    %v97 = vld [vmem:[#allocation7 + $0x50] sm:$0xff]
    %v98 = vld [vmem:[#allocation7 + $0x58] sm:$0xff]
    %v99 = vld [vmem:[#allocation10] sm:$0x7]
    %v100 = vld [vmem:[#allocation4] sm:$0xff]
    %v101 = vld [vmem:[#allocation4 + $0x8] sm:$0xff]
    %v102 = vld [vmem:[#allocation4 + $0x10] sm:$0xff]
    %v103 = vld [vmem:[#allocation4 + $0x18] sm:$0xff]
    %v104 = vld [vmem:[#allocation4 + $0x20] sm:$0xff]
    %v105 = vld [vmem:[#allocation4 + $0x28] sm:$0xff]
    %v106 = vld [vmem:[#allocation4 + $0x30] sm:$0xff]
    %v107 = vld [vmem:[#allocation4 + $0x38] sm:$0xff]
    %v109 = vperm.slane %v99, 0
    %v110 = vperm.slane %v99, 1
    %v111 = vperm.slane %v99, 2
    %vm115 = vcmask 261120
    %v117 = vsel %vm115, %v100, 0
    %v120 = vsel %vm115, %v101, 0
    %v123 = vsel %vm115, %v102, 0
    %v126 = vsel %vm115, %v103, 0
    %v129 = vsel %vm115, %v104, 0
    %v132 = vsel %vm115, %v105, 0
    %v135 = vsel %vm115, %v106, 0
    %v138 = vsel %vm115, %v107, 0
    %140 = vmatpush.msra.mxu0 0.0
    %141 = vmatpush.msra.mxu0 0.0
    %142 = vmatpush.msra.mxu0 0.0
    %143 = vmatpush.msra.mxu0 0.0
    %144 = vmatpush.msra.mxu0 0.0
    %145 = vmatpush.msra.mxu0 0.0
    %146 = vmatpush.msra.mxu0 0.0
    %147 = vmatpush.msra.mxu0 0.0
    %148 = vmatpush.msra.mxu0 0.0
    %149 = vmatpush.msra.mxu0 0.0
    %150 = vmatpush.msra.mxu0 0.0
    %151 = vmatpush.msra.mxu0 0.0
    %152 = vmatpush.msra.mxu0 %v96
    %153 = vmatpush.msra.mxu0 %v93
    %154 = vmatpush.msra.mxu0 %v90
    %155 = vmatpush.msra.mxu0 %v87
    %156 = vmatmul.f32.gmra.mxu0 %v117
    %v157 = vpop.f32.mrf.mxu0
    %v158 = vadd.f32 %v109, %v157
    %159 = vmatmul.f32.gmra.mxu0 %v120
    %v160 = vpop.f32.mrf.mxu0
    %v161 = vadd.f32 %v109, %v160
    %162 = vmatmul.f32.gmra.mxu0 %v123
    %v163 = vpop.f32.mrf.mxu0
    %v164 = vadd.f32 %v109, %v163
    %165 = vmatmul.f32.gmra.mxu0 %v126
    %v166 = vpop.f32.mrf.mxu0
    %v167 = vadd.f32 %v109, %v166
    %168 = vmatmul.f32.gmra.mxu0 %v129
    %v169 = vpop.f32.mrf.mxu0
    %v170 = vadd.f32 %v109, %v169
    %171 = vmatmul.f32.gmra.mxu0 %v132
    %v172 = vpop.f32.mrf.mxu0
    %v173 = vadd.f32 %v109, %v172
    %174 = vmatmul.f32.gmra.mxu0 %v135
    %v175 = vpop.f32.mrf.mxu0
    %v176 = vadd.f32 %v109, %v175
    %177 = vmatmul.f32.gmra.mxu0 %v138
    %v178 = vpop.f32.mrf.mxu0
    %v179 = vadd.f32 %v109, %v178
    %180 = vdwg.mxu0
    %181 = vmatpush.msra.mxu0 0.0
    %182 = vmatpush.msra.mxu0 0.0
    %183 = vmatpush.msra.mxu0 0.0
    %184 = vmatpush.msra.mxu0 0.0
    %185 = vmatpush.msra.mxu0 0.0
    %186 = vmatpush.msra.mxu0 0.0
    %187 = vmatpush.msra.mxu0 0.0
    %188 = vmatpush.msra.mxu0 0.0
    %189 = vmatpush.msra.mxu0 0.0
    %190 = vmatpush.msra.mxu0 0.0
    %191 = vmatpush.msra.mxu0 0.0
    %192 = vmatpush.msra.mxu0 0.0
    %193 = vmatpush.msra.mxu0 %v97
    %194 = vmatpush.msra.mxu0 %v94
    %195 = vmatpush.msra.mxu0 %v91
    %196 = vmatpush.msra.mxu0 %v88
    %197 = vmatmul.f32.gmra.mxu0 %v117
    %v198 = vpop.f32.mrf.mxu0
    %v199 = vadd.f32 %v110, %v198
    %200 = vmatmul.f32.gmra.mxu0 %v120
    %v201 = vpop.f32.mrf.mxu0
    %v202 = vadd.f32 %v110, %v201
    %203 = vmatmul.f32.gmra.mxu0 %v123
    %v204 = vpop.f32.mrf.mxu0
    %v205 = vadd.f32 %v110, %v204
    %206 = vmatmul.f32.gmra.mxu0 %v126
    %v207 = vpop.f32.mrf.mxu0
    %v208 = vadd.f32 %v110, %v207
    %209 = vmatmul.f32.gmra.mxu0 %v129
    %v210 = vpop.f32.mrf.mxu0
    %v211 = vadd.f32 %v110, %v210
    %212 = vmatmul.f32.gmra.mxu0 %v132
    %v213 = vpop.f32.mrf.mxu0
    %v214 = vadd.f32 %v110, %v213
    %215 = vmatmul.f32.gmra.mxu0 %v135
    %v216 = vpop.f32.mrf.mxu0
    %v217 = vadd.f32 %v110, %v216
    %218 = vmatmul.f32.gmra.mxu0 %v138
    %v219 = vpop.f32.mrf.mxu0
    %v220 = vadd.f32 %v110, %v219
    %221 = vdwg.mxu0
    %222 = vmatpush.msra.mxu0 0.0
    %223 = vmatpush.msra.mxu0 0.0
    %224 = vmatpush.msra.mxu0 0.0
    %225 = vmatpush.msra.mxu0 0.0
    %226 = vmatpush.msra.mxu0 0.0
    %227 = vmatpush.msra.mxu0 0.0
    %228 = vmatpush.msra.mxu0 0.0
    %229 = vmatpush.msra.mxu0 0.0
    %230 = vmatpush.msra.mxu0 0.0
    %231 = vmatpush.msra.mxu0 0.0
    %232 = vmatpush.msra.mxu0 0.0
    %233 = vmatpush.msra.mxu0 0.0
    %234 = vmatpush.msra.mxu0 %v98
    %235 = vmatpush.msra.mxu0 %v95
    %236 = vmatpush.msra.mxu0 %v92
    %237 = vmatpush.msra.mxu0 %v89
    %238 = vmatmul.f32.gmra.mxu0 %v117
    %v239 = vpop.f32.mrf.mxu0
    %v240 = vadd.f32 %v111, %v239
    %241 = vmatmul.f32.gmra.mxu0 %v120
    %v242 = vpop.f32.mrf.mxu0
    %v243 = vadd.f32 %v111, %v242
    %244 = vmatmul.f32.gmra.mxu0 %v123
    %v245 = vpop.f32.mrf.mxu0
    %v246 = vadd.f32 %v111, %v245
    %247 = vmatmul.f32.gmra.mxu0 %v126
    %v248 = vpop.f32.mrf.mxu0
    %v249 = vadd.f32 %v111, %v248
    %250 = vmatmul.f32.gmra.mxu0 %v129
    %v251 = vpop.f32.mrf.mxu0
    %v252 = vadd.f32 %v111, %v251
    %253 = vmatmul.f32.gmra.mxu0 %v132
    %v254 = vpop.f32.mrf.mxu0
    %v255 = vadd.f32 %v111, %v254
    %256 = vmatmul.f32.gmra.mxu0 %v135
    %v257 = vpop.f32.mrf.mxu0
    %v258 = vadd.f32 %v111, %v257
    %259 = vmatmul.f32.gmra.mxu0 %v138
    %v260 = vpop.f32.mrf.mxu0
    %v261 = vadd.f32 %v111, %v260
    %262 = vdwg.mxu0
    %263 = vst [vmem:[#allocation2] sm:$0xff] %v158
    %264 = vst [vmem:[#allocation2 + $0x8] sm:$0xff] %v199
    %265 = vst [vmem:[#allocation2 + $0x10] sm:$0xff] %v240
    %266 = vst [vmem:[#allocation2 + $0x18] sm:$0xff] %v161
    %267 = vst [vmem:[#allocation2 + $0x20] sm:$0xff] %v202
    %268 = vst [vmem:[#allocation2 + $0x28] sm:$0xff] %v243
    %269 = vst [vmem:[#allocation2 + $0x30] sm:$0xff] %v164
    %270 = vst [vmem:[#allocation2 + $0x38] sm:$0xff] %v205
    %271 = vst [vmem:[#allocation2 + $0x40] sm:$0xff] %v246
    %272 = vst [vmem:[#allocation2 + $0x48] sm:$0xff] %v167
    %273 = vst [vmem:[#allocation2 + $0x50] sm:$0xff] %v208
    %274 = vst [vmem:[#allocation2 + $0x58] sm:$0xff] %v249
    %275 = vst [vmem:[#allocation2 + $0x60] sm:$0xff] %v170
    %276 = vst [vmem:[#allocation2 + $0x68] sm:$0xff] %v211
    %277 = vst [vmem:[#allocation2 + $0x70] sm:$0xff] %v252
    %278 = vst [vmem:[#allocation2 + $0x78] sm:$0xff] %v173
    %279 = vst [vmem:[#allocation2 + $0x80] sm:$0xff] %v214
    %280 = vst [vmem:[#allocation2 + $0x88] sm:$0xff] %v255
    %281 = vst [vmem:[#allocation2 + $0x90] sm:$0xff] %v176
    %282 = vst [vmem:[#allocation2 + $0x98] sm:$0xff] %v217
    %283 = vst [vmem:[#allocation2 + $0xa0] sm:$0xff] %v258
    %284 = vst [vmem:[#allocation2 + $0xa8] sm:$0xff] %v179
    %285 = vst [vmem:[#allocation2 + $0xb0] sm:$0xff] %v220
    %286 = vst [vmem:[#allocation2 + $0xb8] sm:$0xff] %v261
    %v287 = vld [vmem:[#allocation9] sm:$0xff]
    %v288 = vld [vmem:[#allocation9 + $0x8] sm:$0xff]
    %v289 = vld [vmem:[#allocation9 + $0x10] sm:$0xff]
    %v290 = vld [vmem:[#allocation9 + $0x18] sm:$0xff]
    %v291 = vld [vmem:[#allocation9 + $0x20] sm:$0xff]
    %v292 = vld [vmem:[#allocation9 + $0x28] sm:$0xff]
    %v293 = vld [vmem:[#allocation9 + $0x30] sm:$0xff]
    %v294 = vld [vmem:[#allocation9 + $0x38] sm:$0xff]
    %v295 = vld [vmem:[#allocation9 + $0x40] sm:$0xff]
    %v296 = vld [vmem:[#allocation9 + $0x48] sm:$0xff]
    %v297 = vld [vmem:[#allocation9 + $0x50] sm:$0xff]
    %v298 = vld [vmem:[#allocation9 + $0x58] sm:$0xff]
    %v299 = vld [vmem:[#allocation9 + $0x60] sm:$0xff]
    %v300 = vld [vmem:[#allocation9 + $0x68] sm:$0xff]
    %v301 = vld [vmem:[#allocation9 + $0x70] sm:$0xff]
    %v302 = vld [vmem:[#allocation9 + $0x78] sm:$0xff]
    %v303 = vld [vmem:[#allocation9 + $0x80] sm:$0xff]
    %v304 = vld [vmem:[#allocation9 + $0x88] sm:$0xff]
    %v305 = vld [vmem:[#allocation9 + $0x90] sm:$0xff]
    %v306 = vld [vmem:[#allocation9 + $0x98] sm:$0xff]
    %v307 = vld [vmem:[#allocation9 + $0xa0] sm:$0xff]
    %v308 = vld [vmem:[#allocation9 + $0xa8] sm:$0xff]
    %v309 = vld [vmem:[#allocation9 + $0xb0] sm:$0xff]
    %v310 = vld [vmem:[#allocation9 + $0xb8] sm:$0xff]
    %v311 = vld [vmem:[#allocation9 + $0xc0] sm:$0xff]
    %v312 = vld [vmem:[#allocation9 + $0xc8] sm:$0xff]
    %v313 = vld [vmem:[#allocation9 + $0xd0] sm:$0xff]
    %v314 = vld [vmem:[#allocation9 + $0xd8] sm:$0xff]
    %v315 = vld [vmem:[#allocation9 + $0xe0] sm:$0xff]
    %v316 = vld [vmem:[#allocation9 + $0xe8] sm:$0xff]
    %v317 = vld [vmem:[#allocation9 + $0xf0] sm:$0xff]
    %v318 = vld [vmem:[#allocation9 + $0xf8] sm:$0xff]
    %v319 = vld [vmem:[#allocation9 + $0x100] sm:$0xff]
    %v320 = vld [vmem:[#allocation9 + $0x108] sm:$0xff]
    %v321 = vld [vmem:[#allocation9 + $0x110] sm:$0xff]
    %v322 = vld [vmem:[#allocation9 + $0x118] sm:$0xff]
    %v323 = vld [vmem:[#allocation9 + $0x120] sm:$0xff]
    %v324 = vld [vmem:[#allocation9 + $0x128] sm:$0xff]
    %v325 = vld [vmem:[#allocation9 + $0x130] sm:$0xff]
    %v326 = vld [vmem:[#allocation9 + $0x138] sm:$0xff]
    %v327 = vld [vmem:[#allocation9 + $0x140] sm:$0xff]
    %v328 = vld [vmem:[#allocation9 + $0x148] sm:$0xff]
    %v329 = vld [vmem:[#allocation9 + $0x150] sm:$0xff]
    %v330 = vld [vmem:[#allocation9 + $0x158] sm:$0xff]
    %v331 = vld [vmem:[#allocation9 + $0x160] sm:$0xff]
    %v332 = vld [vmem:[#allocation9 + $0x168] sm:$0xff]
    %v333 = vld [vmem:[#allocation9 + $0x170] sm:$0xff]
    %v334 = vld [vmem:[#allocation9 + $0x178] sm:$0xff]
    %v335 = vld [vmem:[%s4] sm:$0x1]
    %v337 = vperm.slane %v335, 0
    %v339 = vld [vmem:[#allocation3] sm:$0xff]
    %v340 = vld [vmem:[#allocation2] sm:$0xff]
    %v341 = vld [vmem:[#allocation2 + $0x8] sm:$0xff]
    %v342 = vld [vmem:[#allocation2 + $0x10] sm:$0xff]
    %343 = vmatpush.msra.mxu0 %v332
    %344 = vmatpush.msra.mxu0 %v329
    %345 = vmatpush.msra.mxu0 %v326
    %346 = vmatpush.msra.mxu0 %v323
    %347 = vmatpush.msra.mxu0 %v320
    %348 = vmatpush.msra.mxu0 %v317
    %349 = vmatpush.msra.mxu0 %v314
    %350 = vmatpush.msra.mxu0 %v311
    %351 = vmatpush.msra.mxu0 %v308
    %352 = vmatpush.msra.mxu0 %v305
    %353 = vmatpush.msra.mxu0 %v302
    %354 = vmatpush.msra.mxu0 %v299
    %355 = vmatpush.msra.mxu0 %v296
    %356 = vmatpush.msra.mxu0 %v293
    %357 = vmatpush.msra.mxu0 %v290
    %358 = vmatpush.msra.mxu0 %v287
    %359 = vmatmul.f32.gmra.mxu0 %v339
    %v360 = vpop.f32.mrf.mxu0
    %v361 = vadd.f32 0.0, %v360
    %362 = vdwg.mxu0
    %363 = vmatpush.msra.mxu0 %v333
    %364 = vmatpush.msra.mxu0 %v330
    %365 = vmatpush.msra.mxu0 %v327
    %366 = vmatpush.msra.mxu0 %v324
    %367 = vmatpush.msra.mxu0 %v321
    %368 = vmatpush.msra.mxu0 %v318
    %369 = vmatpush.msra.mxu0 %v315
    %370 = vmatpush.msra.mxu0 %v312
    %371 = vmatpush.msra.mxu0 %v309
    %372 = vmatpush.msra.mxu0 %v306
    %373 = vmatpush.msra.mxu0 %v303
    %374 = vmatpush.msra.mxu0 %v300
    %375 = vmatpush.msra.mxu0 %v297
    %376 = vmatpush.msra.mxu0 %v294
    %377 = vmatpush.msra.mxu0 %v291
    %378 = vmatpush.msra.mxu0 %v288
    %379 = vmatmul.f32.gmra.mxu0 %v339
    %v380 = vpop.f32.mrf.mxu0
    %v381 = vadd.f32 0.0, %v380
    %382 = vdwg.mxu0
    %383 = vmatpush.msra.mxu0 %v334
    %384 = vmatpush.msra.mxu0 %v331
    %385 = vmatpush.msra.mxu0 %v328
    %386 = vmatpush.msra.mxu0 %v325
    %387 = vmatpush.msra.mxu0 %v322
    %388 = vmatpush.msra.mxu0 %v319
    %389 = vmatpush.msra.mxu0 %v316
    %390 = vmatpush.msra.mxu0 %v313
    %391 = vmatpush.msra.mxu0 %v310
    %392 = vmatpush.msra.mxu0 %v307
    %393 = vmatpush.msra.mxu0 %v304
    %394 = vmatpush.msra.mxu0 %v301
    %395 = vmatpush.msra.mxu0 %v298
    %396 = vmatpush.msra.mxu0 %v295
    %397 = vmatpush.msra.mxu0 %v292
    %398 = vmatpush.msra.mxu0 %v289
    %399 = vmatmul.f32.gmra.mxu0 %v339
    %v400 = vpop.f32.mrf.mxu0
    %v401 = vadd.f32 0.0, %v400
    %402 = vdwg.mxu0
    %v403 = vadd.f32 %v340, %v361
    %v404 = vadd.f32 %v341, %v381
    %v405 = vxor.u32 %v403, 2147483648
    %v406 = vxor.u32 %v404, 2147483648
    %v407 = vmul.f32 %v405, 1.442695
    %v408 = vpow.pop %v407
    %v409 = vmul.f32 %v406, 1.442695
    %v410 = vpow.pop %v409
    %v411 = vadd.f32 %v408, 1.0
    %v412 = vadd.f32 %v410, 1.0
    %v413 = vrcp.pop %v411
    %v414 = vmul.f32 %v411, %v413
    %v415 = vsub.f32 1.0, %v414
    %v416 = vmul.f32 %v413, %v415
    %v417 = vadd.f32 %v413, %v416
    %vm418 = vweird.f32 %v411
    %vm419 = vweird.f32 %v413
    %vm420 = vmor %vm418, %vm419
    %v421 = vsel %vm420, %v413, %v417
    %v422 = vand.u32 2147483647, %v411
    %vm423 = vcmp.eq.f32.partialorder %v422, 8.507059e+37
    %v424 = vand.u32 %v411, 2147483648
    %v425 = vor.u32 1.1754944e-38, %v424
    %v426 = vsel %vm423, %v425, %v421
    %v427 = vmul.f32 1.0, %v426
    %v428 = vrcp.pop %v412
    %v429 = vmul.f32 %v412, %v428
    %v430 = vsub.f32 1.0, %v429
    %v431 = vmul.f32 %v428, %v430
    %v432 = vadd.f32 %v428, %v431
    %vm433 = vweird.f32 %v412
    %vm434 = vweird.f32 %v428
    %vm435 = vmor %vm433, %vm434
    %v436 = vsel %vm435, %v428, %v432
    %v437 = vand.u32 2147483647, %v412
    %vm438 = vcmp.eq.f32.partialorder %v437, 8.507059e+37
    %v439 = vand.u32 %v412, 2147483648
    %v440 = vor.u32 1.1754944e-38, %v439
    %v441 = vsel %vm438, %v440, %v436
    %v442 = vmul.f32 1.0, %v441
    %v443 = vadd.f32 %v401, %v337
    %v444 = vmul.f32 %v427, %v443
    %v445 = vadd.f32 %v342, %v444
    %v446 = vtanh.pop %v445
    %v447 = vsub.f32 1.0, %v442
    %v448 = vmul.f32 %v447, %v446
    %v449 = vmul.f32 %v442, %v339
    %v450 = vadd.f32 %v448, %v449
    %s451 = scalar_lea.vmem [#allocation2], 24
    %v452 = vld [vmem:[%s451] sm:$0xff]
    %v453 = vld [vmem:[%s451 + $0x8] sm:$0xff]
    %v454 = vld [vmem:[%s451 + $0x10] sm:$0xff]
    %455 = vmatpush.msra.mxu0 %v332
    %456 = vmatpush.msra.mxu0 %v329
    %457 = vmatpush.msra.mxu0 %v326
    %458 = vmatpush.msra.mxu0 %v323
    %459 = vmatpush.msra.mxu0 %v320
    %460 = vmatpush.msra.mxu0 %v317
    %461 = vmatpush.msra.mxu0 %v314
    %462 = vmatpush.msra.mxu0 %v311
    %463 = vmatpush.msra.mxu0 %v308
    %464 = vmatpush.msra.mxu0 %v305
    %465 = vmatpush.msra.mxu0 %v302
    %466 = vmatpush.msra.mxu0 %v299
    %467 = vmatpush.msra.mxu0 %v296
    %468 = vmatpush.msra.mxu0 %v293
    %469 = vmatpush.msra.mxu0 %v290
    %470 = vmatpush.msra.mxu0 %v287
    %471 = vmatmul.f32.gmra.mxu0 %v450
    %v472 = vpop.f32.mrf.mxu0
    %v473 = vadd.f32 0.0, %v472
    %474 = vdwg.mxu0
    %475 = vmatpush.msra.mxu0 %v333
    %476 = vmatpush.msra.mxu0 %v330
    %477 = vmatpush.msra.mxu0 %v327
    %478 = vmatpush.msra.mxu0 %v324
    %479 = vmatpush.msra.mxu0 %v321
    %480 = vmatpush.msra.mxu0 %v318
    %481 = vmatpush.msra.mxu0 %v315
    %482 = vmatpush.msra.mxu0 %v312
    %483 = vmatpush.msra.mxu0 %v309
    %484 = vmatpush.msra.mxu0 %v306
    %485 = vmatpush.msra.mxu0 %v303
    %486 = vmatpush.msra.mxu0 %v300
    %487 = vmatpush.msra.mxu0 %v297
    %488 = vmatpush.msra.mxu0 %v294
    %489 = vmatpush.msra.mxu0 %v291
    %490 = vmatpush.msra.mxu0 %v288
    %491 = vmatmul.f32.gmra.mxu0 %v450
    %v492 = vpop.f32.mrf.mxu0
    %v493 = vadd.f32 0.0, %v492
    %494 = vdwg.mxu0
    %495 = vmatpush.msra.mxu0 %v334
    %496 = vmatpush.msra.mxu0 %v331
    %497 = vmatpush.msra.mxu0 %v328
    %498 = vmatpush.msra.mxu0 %v325
    %499 = vmatpush.msra.mxu0 %v322
    %500 = vmatpush.msra.mxu0 %v319
    %501 = vmatpush.msra.mxu0 %v316
    %502 = vmatpush.msra.mxu0 %v313
    %503 = vmatpush.msra.mxu0 %v310
    %504 = vmatpush.msra.mxu0 %v307
    %505 = vmatpush.msra.mxu0 %v304
    %506 = vmatpush.msra.mxu0 %v301
    %507 = vmatpush.msra.mxu0 %v298
    %508 = vmatpush.msra.mxu0 %v295
    %509 = vmatpush.msra.mxu0 %v292
    %510 = vmatpush.msra.mxu0 %v289
    %511 = vmatmul.f32.gmra.mxu0 %v450
    %v512 = vpop.f32.mrf.mxu0
    %v513 = vadd.f32 0.0, %v512
    %514 = vdwg.mxu0
    %v515 = vadd.f32 %v452, %v473
    %v516 = vadd.f32 %v453, %v493
    %v517 = vxor.u32 %v515, 2147483648
    %v518 = vxor.u32 %v516, 2147483648
    %v519 = vmul.f32 %v517, 1.442695
    %v520 = vpow.pop %v519
    %v521 = vmul.f32 %v518, 1.442695
    %v522 = vpow.pop %v521
    %v523 = vadd.f32 %v520, 1.0
    %v524 = vadd.f32 %v522, 1.0
    %v525 = vrcp.pop %v523
    %v526 = vmul.f32 %v523, %v525
    %v527 = vsub.f32 1.0, %v526
    %v528 = vmul.f32 %v525, %v527
    %v529 = vadd.f32 %v525, %v528
    %vm530 = vweird.f32 %v523
    %vm531 = vweird.f32 %v525
    %vm532 = vmor %vm530, %vm531
    %v533 = vsel %vm532, %v525, %v529
    %v534 = vand.u32 2147483647, %v523
    %vm535 = vcmp.eq.f32.partialorder %v534, 8.507059e+37
    %v536 = vand.u32 %v523, 2147483648
    %v537 = vor.u32 1.1754944e-38, %v536
    %v538 = vsel %vm535, %v537, %v533
    %v539 = vmul.f32 1.0, %v538
    %v540 = vrcp.pop %v524
    %v541 = vmul.f32 %v524, %v540
    %v542 = vsub.f32 1.0, %v541
    %v543 = vmul.f32 %v540, %v542
    %v544 = vadd.f32 %v540, %v543
    %vm545 = vweird.f32 %v524
    %vm546 = vweird.f32 %v540
    %vm547 = vmor %vm545, %vm546
    %v548 = vsel %vm547, %v540, %v544
    %v549 = vand.u32 2147483647, %v524
    %vm550 = vcmp.eq.f32.partialorder %v549, 8.507059e+37
    %v551 = vand.u32 %v524, 2147483648
    %v552 = vor.u32 1.1754944e-38, %v551
    %v553 = vsel %vm550, %v552, %v548
    %v554 = vmul.f32 1.0, %v553
    %v555 = vadd.f32 %v513, %v337
    %v556 = vmul.f32 %v539, %v555
    %v557 = vadd.f32 %v454, %v556
    %v558 = vtanh.pop %v557
    %v559 = vsub.f32 1.0, %v554
    %v560 = vmul.f32 %v559, %v558
    %v561 = vmul.f32 %v554, %v450
    %v562 = vadd.f32 %v560, %v561
    %s563 = scalar_lea.vmem [#allocation2], 48
    %v564 = vld [vmem:[%s563] sm:$0xff]
    %v565 = vld [vmem:[%s563 + $0x8] sm:$0xff]
    %v566 = vld [vmem:[%s563 + $0x10] sm:$0xff]
    %567 = vmatpush.msra.mxu0 %v332
    %568 = vmatpush.msra.mxu0 %v329
    %569 = vmatpush.msra.mxu0 %v326
    %570 = vmatpush.msra.mxu0 %v323
    %571 = vmatpush.msra.mxu0 %v320
    %572 = vmatpush.msra.mxu0 %v317
    %573 = vmatpush.msra.mxu0 %v314
    %574 = vmatpush.msra.mxu0 %v311
    %575 = vmatpush.msra.mxu0 %v308
    %576 = vmatpush.msra.mxu0 %v305
    %577 = vmatpush.msra.mxu0 %v302
    %578 = vmatpush.msra.mxu0 %v299
    %579 = vmatpush.msra.mxu0 %v296
    %580 = vmatpush.msra.mxu0 %v293
    %581 = vmatpush.msra.mxu0 %v290
    %582 = vmatpush.msra.mxu0 %v287
    %583 = vmatmul.f32.gmra.mxu0 %v562
    %v584 = vpop.f32.mrf.mxu0
    %v585 = vadd.f32 0.0, %v584
    %586 = vdwg.mxu0
    %587 = vmatpush.msra.mxu0 %v333
    %588 = vmatpush.msra.mxu0 %v330
    %589 = vmatpush.msra.mxu0 %v327
    %590 = vmatpush.msra.mxu0 %v324
    %591 = vmatpush.msra.mxu0 %v321
    %592 = vmatpush.msra.mxu0 %v318
    %593 = vmatpush.msra.mxu0 %v315
    %594 = vmatpush.msra.mxu0 %v312
    %595 = vmatpush.msra.mxu0 %v309
    %596 = vmatpush.msra.mxu0 %v306
    %597 = vmatpush.msra.mxu0 %v303
    %598 = vmatpush.msra.mxu0 %v300
    %599 = vmatpush.msra.mxu0 %v297
    %600 = vmatpush.msra.mxu0 %v294
    %601 = vmatpush.msra.mxu0 %v291
    %602 = vmatpush.msra.mxu0 %v288
    %603 = vmatmul.f32.gmra.mxu0 %v562
    %v604 = vpop.f32.mrf.mxu0
    %v605 = vadd.f32 0.0, %v604
    %606 = vdwg.mxu0
    %607 = vmatpush.msra.mxu0 %v334
    %608 = vmatpush.msra.mxu0 %v331
    %609 = vmatpush.msra.mxu0 %v328
    %610 = vmatpush.msra.mxu0 %v325
    %611 = vmatpush.msra.mxu0 %v322
    %612 = vmatpush.msra.mxu0 %v319
    %613 = vmatpush.msra.mxu0 %v316
    %614 = vmatpush.msra.mxu0 %v313
    %615 = vmatpush.msra.mxu0 %v310
    %616 = vmatpush.msra.mxu0 %v307
    %617 = vmatpush.msra.mxu0 %v304
    %618 = vmatpush.msra.mxu0 %v301
    %619 = vmatpush.msra.mxu0 %v298
    %620 = vmatpush.msra.mxu0 %v295
    %621 = vmatpush.msra.mxu0 %v292
    %622 = vmatpush.msra.mxu0 %v289
    %623 = vmatmul.f32.gmra.mxu0 %v562
    %v624 = vpop.f32.mrf.mxu0
    %v625 = vadd.f32 0.0, %v624
    %626 = vdwg.mxu0
    %v627 = vadd.f32 %v564, %v585
    %v628 = vadd.f32 %v565, %v605
    %v629 = vxor.u32 %v627, 2147483648
    %v630 = vxor.u32 %v628, 2147483648
    %v631 = vmul.f32 %v629, 1.442695
    %v632 = vpow.pop %v631
    %v633 = vmul.f32 %v630, 1.442695
    %v634 = vpow.pop %v633
    %v635 = vadd.f32 %v632, 1.0
    %v636 = vadd.f32 %v634, 1.0
    %v637 = vrcp.pop %v635
    %v638 = vmul.f32 %v635, %v637
    %v639 = vsub.f32 1.0, %v638
    %v640 = vmul.f32 %v637, %v639
    %v641 = vadd.f32 %v637, %v640
    %vm642 = vweird.f32 %v635
    %vm643 = vweird.f32 %v637
    %vm644 = vmor %vm642, %vm643
    %v645 = vsel %vm644, %v637, %v641
    %v646 = vand.u32 2147483647, %v635
    %vm647 = vcmp.eq.f32.partialorder %v646, 8.507059e+37
    %v648 = vand.u32 %v635, 2147483648
    %v649 = vor.u32 1.1754944e-38, %v648
    %v650 = vsel %vm647, %v649, %v645
    %v651 = vmul.f32 1.0, %v650
    %v652 = vrcp.pop %v636
    %v653 = vmul.f32 %v636, %v652
    %v654 = vsub.f32 1.0, %v653
    %v655 = vmul.f32 %v652, %v654
    %v656 = vadd.f32 %v652, %v655
    %vm657 = vweird.f32 %v636
    %vm658 = vweird.f32 %v652
    %vm659 = vmor %vm657, %vm658
    %v660 = vsel %vm659, %v652, %v656
    %v661 = vand.u32 2147483647, %v636
    %vm662 = vcmp.eq.f32.partialorder %v661, 8.507059e+37
    %v663 = vand.u32 %v636, 2147483648
    %v664 = vor.u32 1.1754944e-38, %v663
    %v665 = vsel %vm662, %v664, %v660
    %v666 = vmul.f32 1.0, %v665
    %v667 = vadd.f32 %v625, %v337
    %v668 = vmul.f32 %v651, %v667
    %v669 = vadd.f32 %v566, %v668
    %v670 = vtanh.pop %v669
    %v671 = vsub.f32 1.0, %v666
    %v672 = vmul.f32 %v671, %v670
    %v673 = vmul.f32 %v666, %v562
    %v674 = vadd.f32 %v672, %v673
    %s675 = scalar_lea.vmem [#allocation2], 72
    %v676 = vld [vmem:[%s675] sm:$0xff]
    %v677 = vld [vmem:[%s675 + $0x8] sm:$0xff]
    %v678 = vld [vmem:[%s675 + $0x10] sm:$0xff]
    %679 = vmatpush.msra.mxu0 %v332
    %680 = vmatpush.msra.mxu0 %v329
    %681 = vmatpush.msra.mxu0 %v326
    %682 = vmatpush.msra.mxu0 %v323
    %683 = vmatpush.msra.mxu0 %v320
    %684 = vmatpush.msra.mxu0 %v317
    %685 = vmatpush.msra.mxu0 %v314
    %686 = vmatpush.msra.mxu0 %v311
    %687 = vmatpush.msra.mxu0 %v308
    %688 = vmatpush.msra.mxu0 %v305
    %689 = vmatpush.msra.mxu0 %v302
    %690 = vmatpush.msra.mxu0 %v299
    %691 = vmatpush.msra.mxu0 %v296
    %692 = vmatpush.msra.mxu0 %v293
    %693 = vmatpush.msra.mxu0 %v290
    %694 = vmatpush.msra.mxu0 %v287
    %695 = vmatmul.f32.gmra.mxu0 %v674
    %v696 = vpop.f32.mrf.mxu0
    %v697 = vadd.f32 0.0, %v696
    %698 = vdwg.mxu0
    %699 = vmatpush.msra.mxu0 %v333
    %700 = vmatpush.msra.mxu0 %v330
    %701 = vmatpush.msra.mxu0 %v327
    %702 = vmatpush.msra.mxu0 %v324
    %703 = vmatpush.msra.mxu0 %v321
    %704 = vmatpush.msra.mxu0 %v318
    %705 = vmatpush.msra.mxu0 %v315
    %706 = vmatpush.msra.mxu0 %v312
    %707 = vmatpush.msra.mxu0 %v309
    %708 = vmatpush.msra.mxu0 %v306
    %709 = vmatpush.msra.mxu0 %v303
    %710 = vmatpush.msra.mxu0 %v300
    %711 = vmatpush.msra.mxu0 %v297
    %712 = vmatpush.msra.mxu0 %v294
    %713 = vmatpush.msra.mxu0 %v291
    %714 = vmatpush.msra.mxu0 %v288
    %715 = vmatmul.f32.gmra.mxu0 %v674
    %v716 = vpop.f32.mrf.mxu0
    %v717 = vadd.f32 0.0, %v716
    %718 = vdwg.mxu0
    %719 = vmatpush.msra.mxu0 %v334
    %720 = vmatpush.msra.mxu0 %v331
    %721 = vmatpush.msra.mxu0 %v328
    %722 = vmatpush.msra.mxu0 %v325
    %723 = vmatpush.msra.mxu0 %v322
    %724 = vmatpush.msra.mxu0 %v319
    %725 = vmatpush.msra.mxu0 %v316
    %726 = vmatpush.msra.mxu0 %v313
    %727 = vmatpush.msra.mxu0 %v310
    %728 = vmatpush.msra.mxu0 %v307
    %729 = vmatpush.msra.mxu0 %v304
    %730 = vmatpush.msra.mxu0 %v301
    %731 = vmatpush.msra.mxu0 %v298
    %732 = vmatpush.msra.mxu0 %v295
    %733 = vmatpush.msra.mxu0 %v292
    %734 = vmatpush.msra.mxu0 %v289
    %735 = vmatmul.f32.gmra.mxu0 %v674
    %v736 = vpop.f32.mrf.mxu0
    %v737 = vadd.f32 0.0, %v736
    %738 = vdwg.mxu0
    %v739 = vadd.f32 %v676, %v697
    %v740 = vadd.f32 %v677, %v717
    %v741 = vxor.u32 %v739, 2147483648
    %v742 = vxor.u32 %v740, 2147483648
    %v743 = vmul.f32 %v741, 1.442695
    %v744 = vpow.pop %v743
    %v745 = vmul.f32 %v742, 1.442695
    %v746 = vpow.pop %v745
    %v747 = vadd.f32 %v744, 1.0
    %v748 = vadd.f32 %v746, 1.0
    %v749 = vrcp.pop %v747
    %v750 = vmul.f32 %v747, %v749
    %v751 = vsub.f32 1.0, %v750
    %v752 = vmul.f32 %v749, %v751
    %v753 = vadd.f32 %v749, %v752
    %vm754 = vweird.f32 %v747
    %vm755 = vweird.f32 %v749
    %vm756 = vmor %vm754, %vm755
    %v757 = vsel %vm756, %v749, %v753
    %v758 = vand.u32 2147483647, %v747
    %vm759 = vcmp.eq.f32.partialorder %v758, 8.507059e+37
    %v760 = vand.u32 %v747, 2147483648
    %v761 = vor.u32 1.1754944e-38, %v760
    %v762 = vsel %vm759, %v761, %v757
    %v763 = vmul.f32 1.0, %v762
    %v764 = vrcp.pop %v748
    %v765 = vmul.f32 %v748, %v764
    %v766 = vsub.f32 1.0, %v765
    %v767 = vmul.f32 %v764, %v766
    %v768 = vadd.f32 %v764, %v767
    %vm769 = vweird.f32 %v748
    %vm770 = vweird.f32 %v764
    %vm771 = vmor %vm769, %vm770
    %v772 = vsel %vm771, %v764, %v768
    %v773 = vand.u32 2147483647, %v748
    %vm774 = vcmp.eq.f32.partialorder %v773, 8.507059e+37
    %v775 = vand.u32 %v748, 2147483648
    %v776 = vor.u32 1.1754944e-38, %v775
    %v777 = vsel %vm774, %v776, %v772
    %v778 = vmul.f32 1.0, %v777
    %v779 = vadd.f32 %v737, %v337
    %v780 = vmul.f32 %v763, %v779
    %v781 = vadd.f32 %v678, %v780
    %v782 = vtanh.pop %v781
    %v783 = vsub.f32 1.0, %v778
    %v784 = vmul.f32 %v783, %v782
    %v785 = vmul.f32 %v778, %v674
    %v786 = vadd.f32 %v784, %v785
    %s787 = scalar_lea.vmem [#allocation2], 96
    %v788 = vld [vmem:[%s787] sm:$0xff]
    %v789 = vld [vmem:[%s787 + $0x8] sm:$0xff]
    %v790 = vld [vmem:[%s787 + $0x10] sm:$0xff]
    %791 = vmatpush.msra.mxu0 %v332
    %792 = vmatpush.msra.mxu0 %v329
    %793 = vmatpush.msra.mxu0 %v326
    %794 = vmatpush.msra.mxu0 %v323
    %795 = vmatpush.msra.mxu0 %v320
    %796 = vmatpush.msra.mxu0 %v317
    %797 = vmatpush.msra.mxu0 %v314
    %798 = vmatpush.msra.mxu0 %v311
    %799 = vmatpush.msra.mxu0 %v308
    %800 = vmatpush.msra.mxu0 %v305
    %801 = vmatpush.msra.mxu0 %v302
    %802 = vmatpush.msra.mxu0 %v299
    %803 = vmatpush.msra.mxu0 %v296
    %804 = vmatpush.msra.mxu0 %v293
    %805 = vmatpush.msra.mxu0 %v290
    %806 = vmatpush.msra.mxu0 %v287
    %807 = vmatmul.f32.gmra.mxu0 %v786
    %v808 = vpop.f32.mrf.mxu0
    %v809 = vadd.f32 0.0, %v808
    %810 = vdwg.mxu0
    %811 = vmatpush.msra.mxu0 %v333
    %812 = vmatpush.msra.mxu0 %v330
    %813 = vmatpush.msra.mxu0 %v327
    %814 = vmatpush.msra.mxu0 %v324
    %815 = vmatpush.msra.mxu0 %v321
    %816 = vmatpush.msra.mxu0 %v318
    %817 = vmatpush.msra.mxu0 %v315
    %818 = vmatpush.msra.mxu0 %v312
    %819 = vmatpush.msra.mxu0 %v309
    %820 = vmatpush.msra.mxu0 %v306
    %821 = vmatpush.msra.mxu0 %v303
    %822 = vmatpush.msra.mxu0 %v300
    %823 = vmatpush.msra.mxu0 %v297
    %824 = vmatpush.msra.mxu0 %v294
    %825 = vmatpush.msra.mxu0 %v291
    %826 = vmatpush.msra.mxu0 %v288
    %827 = vmatmul.f32.gmra.mxu0 %v786
    %v828 = vpop.f32.mrf.mxu0
    %v829 = vadd.f32 0.0, %v828
    %830 = vdwg.mxu0
    %831 = vmatpush.msra.mxu0 %v334
    %832 = vmatpush.msra.mxu0 %v331
    %833 = vmatpush.msra.mxu0 %v328
    %834 = vmatpush.msra.mxu0 %v325
    %835 = vmatpush.msra.mxu0 %v322
    %836 = vmatpush.msra.mxu0 %v319
    %837 = vmatpush.msra.mxu0 %v316
    %838 = vmatpush.msra.mxu0 %v313
    %839 = vmatpush.msra.mxu0 %v310
    %840 = vmatpush.msra.mxu0 %v307
    %841 = vmatpush.msra.mxu0 %v304
    %842 = vmatpush.msra.mxu0 %v301
    %843 = vmatpush.msra.mxu0 %v298
    %844 = vmatpush.msra.mxu0 %v295
    %845 = vmatpush.msra.mxu0 %v292
    %846 = vmatpush.msra.mxu0 %v289
    %847 = vmatmul.f32.gmra.mxu0 %v786
    %v848 = vpop.f32.mrf.mxu0
    %v849 = vadd.f32 0.0, %v848
    %850 = vdwg.mxu0
    %v851 = vadd.f32 %v788, %v809
    %v852 = vadd.f32 %v789, %v829
    %v853 = vxor.u32 %v851, 2147483648
    %v854 = vxor.u32 %v852, 2147483648
    %v855 = vmul.f32 %v853, 1.442695
    %v856 = vpow.pop %v855
    %v857 = vmul.f32 %v854, 1.442695
    %v858 = vpow.pop %v857
    %v859 = vadd.f32 %v856, 1.0
    %v860 = vadd.f32 %v858, 1.0
    %v861 = vrcp.pop %v859
    %v862 = vmul.f32 %v859, %v861
    %v863 = vsub.f32 1.0, %v862
    %v864 = vmul.f32 %v861, %v863
    %v865 = vadd.f32 %v861, %v864
    %vm866 = vweird.f32 %v859
    %vm867 = vweird.f32 %v861
    %vm868 = vmor %vm866, %vm867
    %v869 = vsel %vm868, %v861, %v865
    %v870 = vand.u32 2147483647, %v859
    %vm871 = vcmp.eq.f32.partialorder %v870, 8.507059e+37
    %v872 = vand.u32 %v859, 2147483648
    %v873 = vor.u32 1.1754944e-38, %v872
    %v874 = vsel %vm871, %v873, %v869
    %v875 = vmul.f32 1.0, %v874
    %v876 = vrcp.pop %v860
    %v877 = vmul.f32 %v860, %v876
    %v878 = vsub.f32 1.0, %v877
    %v879 = vmul.f32 %v876, %v878
    %v880 = vadd.f32 %v876, %v879
    %vm881 = vweird.f32 %v860
    %vm882 = vweird.f32 %v876
    %vm883 = vmor %vm881, %vm882
    %v884 = vsel %vm883, %v876, %v880
    %v885 = vand.u32 2147483647, %v860
    %vm886 = vcmp.eq.f32.partialorder %v885, 8.507059e+37
    %v887 = vand.u32 %v860, 2147483648
    %v888 = vor.u32 1.1754944e-38, %v887
    %v889 = vsel %vm886, %v888, %v884
    %v890 = vmul.f32 1.0, %v889
    %v891 = vadd.f32 %v849, %v337
    %v892 = vmul.f32 %v875, %v891
    %v893 = vadd.f32 %v790, %v892
    %v894 = vtanh.pop %v893
    %v895 = vsub.f32 1.0, %v890
    %v896 = vmul.f32 %v895, %v894
    %v897 = vmul.f32 %v890, %v786
    %v898 = vadd.f32 %v896, %v897
    %s899 = scalar_lea.vmem [#allocation2], 120
    %v900 = vld [vmem:[%s899] sm:$0xff]
    %v901 = vld [vmem:[%s899 + $0x8] sm:$0xff]
    %v902 = vld [vmem:[%s899 + $0x10] sm:$0xff]
    %903 = vmatpush.msra.mxu0 %v332
    %904 = vmatpush.msra.mxu0 %v329
    %905 = vmatpush.msra.mxu0 %v326
    %906 = vmatpush.msra.mxu0 %v323
    %907 = vmatpush.msra.mxu0 %v320
    %908 = vmatpush.msra.mxu0 %v317
    %909 = vmatpush.msra.mxu0 %v314
    %910 = vmatpush.msra.mxu0 %v311
    %911 = vmatpush.msra.mxu0 %v308
    %912 = vmatpush.msra.mxu0 %v305
    %913 = vmatpush.msra.mxu0 %v302
    %914 = vmatpush.msra.mxu0 %v299
    %915 = vmatpush.msra.mxu0 %v296
    %916 = vmatpush.msra.mxu0 %v293
    %917 = vmatpush.msra.mxu0 %v290
    %918 = vmatpush.msra.mxu0 %v287
    %919 = vmatmul.f32.gmra.mxu0 %v898
    %v920 = vpop.f32.mrf.mxu0
    %v921 = vadd.f32 0.0, %v920
    %922 = vdwg.mxu0
    %923 = vmatpush.msra.mxu0 %v333
    %924 = vmatpush.msra.mxu0 %v330
    %925 = vmatpush.msra.mxu0 %v327
    %926 = vmatpush.msra.mxu0 %v324
    %927 = vmatpush.msra.mxu0 %v321
    %928 = vmatpush.msra.mxu0 %v318
    %929 = vmatpush.msra.mxu0 %v315
    %930 = vmatpush.msra.mxu0 %v312
    %931 = vmatpush.msra.mxu0 %v309
    %932 = vmatpush.msra.mxu0 %v306
    %933 = vmatpush.msra.mxu0 %v303
    %934 = vmatpush.msra.mxu0 %v300
    %935 = vmatpush.msra.mxu0 %v297
    %936 = vmatpush.msra.mxu0 %v294
    %937 = vmatpush.msra.mxu0 %v291
    %938 = vmatpush.msra.mxu0 %v288
    %939 = vmatmul.f32.gmra.mxu0 %v898
    %v940 = vpop.f32.mrf.mxu0
    %v941 = vadd.f32 0.0, %v940
    %942 = vdwg.mxu0
    %943 = vmatpush.msra.mxu0 %v334
    %944 = vmatpush.msra.mxu0 %v331
    %945 = vmatpush.msra.mxu0 %v328
    %946 = vmatpush.msra.mxu0 %v325
    %947 = vmatpush.msra.mxu0 %v322
    %948 = vmatpush.msra.mxu0 %v319
    %949 = vmatpush.msra.mxu0 %v316
    %950 = vmatpush.msra.mxu0 %v313
    %951 = vmatpush.msra.mxu0 %v310
    %952 = vmatpush.msra.mxu0 %v307
    %953 = vmatpush.msra.mxu0 %v304
    %954 = vmatpush.msra.mxu0 %v301
    %955 = vmatpush.msra.mxu0 %v298
    %956 = vmatpush.msra.mxu0 %v295
    %957 = vmatpush.msra.mxu0 %v292
    %958 = vmatpush.msra.mxu0 %v289
    %959 = vmatmul.f32.gmra.mxu0 %v898
    %v960 = vpop.f32.mrf.mxu0
    %v961 = vadd.f32 0.0, %v960
    %962 = vdwg.mxu0
    %v963 = vadd.f32 %v900, %v921
    %v964 = vadd.f32 %v901, %v941
    %v965 = vxor.u32 %v963, 2147483648
    %v966 = vxor.u32 %v964, 2147483648
    %v967 = vmul.f32 %v965, 1.442695
    %v968 = vpow.pop %v967
    %v969 = vmul.f32 %v966, 1.442695
    %v970 = vpow.pop %v969
    %v971 = vadd.f32 %v968, 1.0
    %v972 = vadd.f32 %v970, 1.0
    %v973 = vrcp.pop %v971
    %v974 = vmul.f32 %v971, %v973
    %v975 = vsub.f32 1.0, %v974
    %v976 = vmul.f32 %v973, %v975
    %v977 = vadd.f32 %v973, %v976
    %vm978 = vweird.f32 %v971
    %vm979 = vweird.f32 %v973
    %vm980 = vmor %vm978, %vm979
    %v981 = vsel %vm980, %v973, %v977
    %v982 = vand.u32 2147483647, %v971
    %vm983 = vcmp.eq.f32.partialorder %v982, 8.507059e+37
    %v984 = vand.u32 %v971, 2147483648
    %v985 = vor.u32 1.1754944e-38, %v984
    %v986 = vsel %vm983, %v985, %v981
    %v987 = vmul.f32 1.0, %v986
    %v988 = vrcp.pop %v972
    %v989 = vmul.f32 %v972, %v988
    %v990 = vsub.f32 1.0, %v989
    %v991 = vmul.f32 %v988, %v990
    %v992 = vadd.f32 %v988, %v991
    %vm993 = vweird.f32 %v972
    %vm994 = vweird.f32 %v988
    %vm995 = vmor %vm993, %vm994
    %v996 = vsel %vm995, %v988, %v992
    %v997 = vand.u32 2147483647, %v972
    %vm998 = vcmp.eq.f32.partialorder %v997, 8.507059e+37
    %v999 = vand.u32 %v972, 2147483648
    %v1000 = vor.u32 1.1754944e-38, %v999
    %v1001 = vsel %vm998, %v1000, %v996
    %v1002 = vmul.f32 1.0, %v1001
    %v1003 = vadd.f32 %v961, %v337
    %v1004 = vmul.f32 %v987, %v1003
    %v1005 = vadd.f32 %v902, %v1004
    %v1006 = vtanh.pop %v1005
    %v1007 = vsub.f32 1.0, %v1002
    %v1008 = vmul.f32 %v1007, %v1006
    %v1009 = vmul.f32 %v1002, %v898
    %v1010 = vadd.f32 %v1008, %v1009
    %s1011 = scalar_lea.vmem [#allocation2], 144
    %v1012 = vld [vmem:[%s1011] sm:$0xff]
    %v1013 = vld [vmem:[%s1011 + $0x8] sm:$0xff]
    %v1014 = vld [vmem:[%s1011 + $0x10] sm:$0xff]
    %1015 = vmatpush.msra.mxu0 %v332
    %1016 = vmatpush.msra.mxu0 %v329
    %1017 = vmatpush.msra.mxu0 %v326
    %1018 = vmatpush.msra.mxu0 %v323
    %1019 = vmatpush.msra.mxu0 %v320
    %1020 = vmatpush.msra.mxu0 %v317
    %1021 = vmatpush.msra.mxu0 %v314
    %1022 = vmatpush.msra.mxu0 %v311
    %1023 = vmatpush.msra.mxu0 %v308
    %1024 = vmatpush.msra.mxu0 %v305
    %1025 = vmatpush.msra.mxu0 %v302
    %1026 = vmatpush.msra.mxu0 %v299
    %1027 = vmatpush.msra.mxu0 %v296
    %1028 = vmatpush.msra.mxu0 %v293
    %1029 = vmatpush.msra.mxu0 %v290
    %1030 = vmatpush.msra.mxu0 %v287
    %1031 = vmatmul.f32.gmra.mxu0 %v1010
    %v1032 = vpop.f32.mrf.mxu0
    %v1033 = vadd.f32 0.0, %v1032
    %1034 = vdwg.mxu0
    %1035 = vmatpush.msra.mxu0 %v333
    %1036 = vmatpush.msra.mxu0 %v330
    %1037 = vmatpush.msra.mxu0 %v327
    %1038 = vmatpush.msra.mxu0 %v324
    %1039 = vmatpush.msra.mxu0 %v321
    %1040 = vmatpush.msra.mxu0 %v318
    %1041 = vmatpush.msra.mxu0 %v315
    %1042 = vmatpush.msra.mxu0 %v312
    %1043 = vmatpush.msra.mxu0 %v309
    %1044 = vmatpush.msra.mxu0 %v306
    %1045 = vmatpush.msra.mxu0 %v303
    %1046 = vmatpush.msra.mxu0 %v300
    %1047 = vmatpush.msra.mxu0 %v297
    %1048 = vmatpush.msra.mxu0 %v294
    %1049 = vmatpush.msra.mxu0 %v291
    %1050 = vmatpush.msra.mxu0 %v288
    %1051 = vmatmul.f32.gmra.mxu0 %v1010
    %v1052 = vpop.f32.mrf.mxu0
    %v1053 = vadd.f32 0.0, %v1052
    %1054 = vdwg.mxu0
    %1055 = vmatpush.msra.mxu0 %v334
    %1056 = vmatpush.msra.mxu0 %v331
    %1057 = vmatpush.msra.mxu0 %v328
    %1058 = vmatpush.msra.mxu0 %v325
    %1059 = vmatpush.msra.mxu0 %v322
    %1060 = vmatpush.msra.mxu0 %v319
    %1061 = vmatpush.msra.mxu0 %v316
    %1062 = vmatpush.msra.mxu0 %v313
    %1063 = vmatpush.msra.mxu0 %v310
    %1064 = vmatpush.msra.mxu0 %v307
    %1065 = vmatpush.msra.mxu0 %v304
    %1066 = vmatpush.msra.mxu0 %v301
    %1067 = vmatpush.msra.mxu0 %v298
    %1068 = vmatpush.msra.mxu0 %v295
    %1069 = vmatpush.msra.mxu0 %v292
    %1070 = vmatpush.msra.mxu0 %v289
    %1071 = vmatmul.f32.gmra.mxu0 %v1010
    %v1072 = vpop.f32.mrf.mxu0
    %v1073 = vadd.f32 0.0, %v1072
    %1074 = vdwg.mxu0
    %v1075 = vadd.f32 %v1012, %v1033
    %v1076 = vadd.f32 %v1013, %v1053
    %v1077 = vxor.u32 %v1075, 2147483648
    %v1078 = vxor.u32 %v1076, 2147483648
    %v1079 = vmul.f32 %v1077, 1.442695
    %v1080 = vpow.pop %v1079
    %v1081 = vmul.f32 %v1078, 1.442695
    %v1082 = vpow.pop %v1081
    %v1083 = vadd.f32 %v1080, 1.0
    %v1084 = vadd.f32 %v1082, 1.0
    %v1085 = vrcp.pop %v1083
    %v1086 = vmul.f32 %v1083, %v1085
    %v1087 = vsub.f32 1.0, %v1086
    %v1088 = vmul.f32 %v1085, %v1087
    %v1089 = vadd.f32 %v1085, %v1088
    %vm1090 = vweird.f32 %v1083
    %vm1091 = vweird.f32 %v1085
    %vm1092 = vmor %vm1090, %vm1091
    %v1093 = vsel %vm1092, %v1085, %v1089
    %v1094 = vand.u32 2147483647, %v1083
    %vm1095 = vcmp.eq.f32.partialorder %v1094, 8.507059e+37
    %v1096 = vand.u32 %v1083, 2147483648
    %v1097 = vor.u32 1.1754944e-38, %v1096
    %v1098 = vsel %vm1095, %v1097, %v1093
    %v1099 = vmul.f32 1.0, %v1098
    %v1100 = vrcp.pop %v1084
    %v1101 = vmul.f32 %v1084, %v1100
    %v1102 = vsub.f32 1.0, %v1101
    %v1103 = vmul.f32 %v1100, %v1102
    %v1104 = vadd.f32 %v1100, %v1103
    %vm1105 = vweird.f32 %v1084
    %vm1106 = vweird.f32 %v1100
    %vm1107 = vmor %vm1105, %vm1106
    %v1108 = vsel %vm1107, %v1100, %v1104
    %v1109 = vand.u32 2147483647, %v1084
    %vm1110 = vcmp.eq.f32.partialorder %v1109, 8.507059e+37
    %v1111 = vand.u32 %v1084, 2147483648
    %v1112 = vor.u32 1.1754944e-38, %v1111
    %v1113 = vsel %vm1110, %v1112, %v1108
    %v1114 = vmul.f32 1.0, %v1113
    %v1115 = vadd.f32 %v1073, %v337
    %v1116 = vmul.f32 %v1099, %v1115
    %v1117 = vadd.f32 %v1014, %v1116
    %v1118 = vtanh.pop %v1117
    %v1119 = vsub.f32 1.0, %v1114
    %v1120 = vmul.f32 %v1119, %v1118
    %v1121 = vmul.f32 %v1114, %v1010
    %v1122 = vadd.f32 %v1120, %v1121
    %s1123 = scalar_lea.vmem [#allocation2], 168
    %v1124 = vld [vmem:[%s1123] sm:$0xff]
    %v1125 = vld [vmem:[%s1123 + $0x8] sm:$0xff]
    %v1126 = vld [vmem:[%s1123 + $0x10] sm:$0xff]
    %1127 = vmatpush.msra.mxu0 %v332
    %1128 = vmatpush.msra.mxu0 %v329
    %1129 = vmatpush.msra.mxu0 %v326
    %1130 = vmatpush.msra.mxu0 %v323
    %1131 = vmatpush.msra.mxu0 %v320
    %1132 = vmatpush.msra.mxu0 %v317
    %1133 = vmatpush.msra.mxu0 %v314
    %1134 = vmatpush.msra.mxu0 %v311
    %1135 = vmatpush.msra.mxu0 %v308
    %1136 = vmatpush.msra.mxu0 %v305
    %1137 = vmatpush.msra.mxu0 %v302
    %1138 = vmatpush.msra.mxu0 %v299
    %1139 = vmatpush.msra.mxu0 %v296
    %1140 = vmatpush.msra.mxu0 %v293
    %1141 = vmatpush.msra.mxu0 %v290
    %1142 = vmatpush.msra.mxu0 %v287
    %1143 = vmatmul.f32.gmra.mxu0 %v1122
    %v1144 = vpop.f32.mrf.mxu0
    %v1145 = vadd.f32 0.0, %v1144
    %1146 = vdwg.mxu0
    %1147 = vmatpush.msra.mxu0 %v333
    %1148 = vmatpush.msra.mxu0 %v330
    %1149 = vmatpush.msra.mxu0 %v327
    %1150 = vmatpush.msra.mxu0 %v324
    %1151 = vmatpush.msra.mxu0 %v321
    %1152 = vmatpush.msra.mxu0 %v318
    %1153 = vmatpush.msra.mxu0 %v315
    %1154 = vmatpush.msra.mxu0 %v312
    %1155 = vmatpush.msra.mxu0 %v309
    %1156 = vmatpush.msra.mxu0 %v306
    %1157 = vmatpush.msra.mxu0 %v303
    %1158 = vmatpush.msra.mxu0 %v300
    %1159 = vmatpush.msra.mxu0 %v297
    %1160 = vmatpush.msra.mxu0 %v294
    %1161 = vmatpush.msra.mxu0 %v291
    %1162 = vmatpush.msra.mxu0 %v288
    %1163 = vmatmul.f32.gmra.mxu0 %v1122
    %v1164 = vpop.f32.mrf.mxu0
    %v1165 = vadd.f32 0.0, %v1164
    %1166 = vdwg.mxu0
    %1167 = vmatpush.msra.mxu0 %v334
    %1168 = vmatpush.msra.mxu0 %v331
    %1169 = vmatpush.msra.mxu0 %v328
    %1170 = vmatpush.msra.mxu0 %v325
    %1171 = vmatpush.msra.mxu0 %v322
    %1172 = vmatpush.msra.mxu0 %v319
    %1173 = vmatpush.msra.mxu0 %v316
    %1174 = vmatpush.msra.mxu0 %v313
    %1175 = vmatpush.msra.mxu0 %v310
    %1176 = vmatpush.msra.mxu0 %v307
    %1177 = vmatpush.msra.mxu0 %v304
    %1178 = vmatpush.msra.mxu0 %v301
    %1179 = vmatpush.msra.mxu0 %v298
    %1180 = vmatpush.msra.mxu0 %v295
    %1181 = vmatpush.msra.mxu0 %v292
    %1182 = vmatpush.msra.mxu0 %v289
    %1183 = vmatmul.f32.gmra.mxu0 %v1122
    %v1184 = vpop.f32.mrf.mxu0
    %v1185 = vadd.f32 0.0, %v1184
    %1186 = vdwg.mxu0
    %v1187 = vadd.f32 %v1124, %v1145
    %v1188 = vadd.f32 %v1125, %v1165
    %v1189 = vxor.u32 %v1187, 2147483648
    %v1190 = vxor.u32 %v1188, 2147483648
    %v1191 = vmul.f32 %v1189, 1.442695
    %v1192 = vpow.pop %v1191
    %v1193 = vmul.f32 %v1190, 1.442695
    %v1194 = vpow.pop %v1193
    %v1195 = vadd.f32 %v1192, 1.0
    %v1196 = vadd.f32 %v1194, 1.0
    %v1197 = vrcp.pop %v1195
    %v1198 = vmul.f32 %v1195, %v1197
    %v1199 = vsub.f32 1.0, %v1198
    %v1200 = vmul.f32 %v1197, %v1199
    %v1201 = vadd.f32 %v1197, %v1200
    %vm1202 = vweird.f32 %v1195
    %vm1203 = vweird.f32 %v1197
    %vm1204 = vmor %vm1202, %vm1203
    %v1205 = vsel %vm1204, %v1197, %v1201
    %v1206 = vand.u32 2147483647, %v1195
    %vm1207 = vcmp.eq.f32.partialorder %v1206, 8.507059e+37
    %v1208 = vand.u32 %v1195, 2147483648
    %v1209 = vor.u32 1.1754944e-38, %v1208
    %v1210 = vsel %vm1207, %v1209, %v1205
    %v1211 = vmul.f32 1.0, %v1210
    %v1212 = vrcp.pop %v1196
    %v1213 = vmul.f32 %v1196, %v1212
    %v1214 = vsub.f32 1.0, %v1213
    %v1215 = vmul.f32 %v1212, %v1214
    %v1216 = vadd.f32 %v1212, %v1215
    %vm1217 = vweird.f32 %v1196
    %vm1218 = vweird.f32 %v1212
    %vm1219 = vmor %vm1217, %vm1218
    %v1220 = vsel %vm1219, %v1212, %v1216
    %v1221 = vand.u32 2147483647, %v1196
    %vm1222 = vcmp.eq.f32.partialorder %v1221, 8.507059e+37
    %v1223 = vand.u32 %v1196, 2147483648
    %v1224 = vor.u32 1.1754944e-38, %v1223
    %v1225 = vsel %vm1222, %v1224, %v1220
    %v1226 = vmul.f32 1.0, %v1225
    %v1227 = vadd.f32 %v1185, %v337
    %v1228 = vmul.f32 %v1211, %v1227
    %v1229 = vadd.f32 %v1126, %v1228
    %v1230 = vtanh.pop %v1229
    %v1231 = vsub.f32 1.0, %v1226
    %v1232 = vmul.f32 %v1231, %v1230
    %v1233 = vmul.f32 %v1226, %v1122
    %v1234 = vadd.f32 %v1232, %v1233
    %1235 = vst [vmem:[#allocation3] sm:$0xff] %v1234
    // Predicated region
    $region42: #{tpu_custom_call.1} parent=1 // pred_check
      %p1236 = pneg %p82
    $region43: #{tpu_custom_call.1} parent=1 // pred_check_branch
      %1238 = sbr.rel (%p1236) target = $region45
    $region44: #{tpu_custom_call.1} parent=1 // pred_region
      %v1239 = vld [vmem:[#allocation3] sm:$0xff]
      %1240 = vst [vmem:[#allocation12] sm:$0xff] %v1239
    $region45: #{tpu_custom_call.1} parent=1 // pred_fallthru
      _
    // Predicated region
    $region46: #{tpu_custom_call.1} parent=1 // pred_check
      _
    $region47: #{tpu_custom_call.1} parent=1 // pred_check_branch
      %1242 = sbr.rel (0) target = $region49
    $region48: #{tpu_custom_call.1} parent=1 // pred_region
      %1244 = vsyncadd [#allocation6], 0
      %s1246 = sshll.u32 [#allocation12], 4
      %s1247 = int_to_ptr.vmem [resolvable:$true] %s1246
      %s1248 = sshll.u32 %s5, 4
      %s1249 = int_to_ptr.hbm [resolvable:$true] %s1248
      %1251 = dma.vmem_to_hbm [thread:$0]  %s1247, 128, %s1249, [#allocation6]
    $region49: #{tpu_custom_call.1} parent=1 // pred_fallthru
      _
    // Predicated region
    $region50: #{tpu_custom_call.1} parent=1 // pred_check
      _
    $region51: #{tpu_custom_call.1} parent=1 // pred_check_branch
      %1253 = sbr.rel (0) target = $region53
    $region52: #{tpu_custom_call.1} parent=1 // pred_region
      %1255 = dma.done [#allocation6], 128
    $region53: #{tpu_custom_call.1} parent=1 // pred_fallthru
      _
    %1256 = vsyncpa [#allocation5], 1
    %1257 = vsyncpa [#allocation8], 1
    %1258 = vsyncpa [#allocation11], 1
    %1259 = vsyncpa [#allocation6], 1

</llo_original>
